<compile_context>
chip_gen: v5e
topology: v5e:2x2
jax: 0.10.0
libtpu: 0.0.40
codegen_flags: <defaults>
</compile_context>

<pallas_src>
import functools

import jax
import jax.numpy as jnp
import numpy as np
from jax.experimental import pallas as pl
from jax.experimental.pallas import tpu as pltpu


def _round_up(n, m):
    return ((n + m - 1) // m) * m


# --------------------------------------------------------------------------
# Pallas kernel 1: fused token path
#   conv-embed (im2col matmul) x2 + bias + pos + LayerNorm + cross-attention
#   input rows are batch-folded: row index = b*L + l
# --------------------------------------------------------------------------

def _token_kernel(ph_ref, pm_ref, wh_ref, wm_ref, bh_ref, bm_ref, pos_ref,
                  g_ref, bt_ref, wqv1_ref, wk2_ref, o_ref,
                  *, B, L, num_heads):
    # Embedding matmuls (bf16 operands, f32 accumulation).
    zh = jnp.dot(ph_ref[...], wh_ref[...], preferred_element_type=jnp.float32)
    zm = jnp.dot(pm_ref[...], wm_ref[...], preferred_element_type=jnp.float32)
    # pos is passed once as (L, C); replicate across the batch in VMEM.
    pos = jnp.concatenate([pos_ref[...]] * B, axis=0)
    zh = zh + bh_ref[...] + pos
    zm = zm + bm_ref[...] + pos

    def layernorm(z):                      # statistics stay in f32
        mu = jnp.mean(z, axis=-1, keepdims=True)
        d = z - mu
        var = jnp.mean(d * d, axis=-1, keepdims=True)
        return d * jax.lax.rsqrt(var + 1e-5) * g_ref[...] + bt_ref[...]

    xn = layernorm(zh).astype(jnp.bfloat16)
    yn = layernorm(zm).astype(jnp.bfloat16)

    # Only the projections that are used: [Q*scale | V] from qkv_1, K from qkv_2.
    qv = jnp.dot(xn, wqv1_ref[...], preferred_element_type=jnp.float32)   # (B*L, 2C)
    k2 = jnp.dot(yn, wk2_ref[...], preferred_element_type=jnp.float32)    # (B*L, C)

    C = o_ref.shape[1]
    D = C // num_heads
    for b in range(B):                     # small static loops (B=2, H=4)
        r0 = b * L
        for h in range(num_heads):
            q = qv[r0:r0 + L, h * D:(h + 1) * D].astype(jnp.bfloat16)
            v = qv[r0:r0 + L, C + h * D:C + (h + 1) * D].astype(jnp.bfloat16)
            k = k2[r0:r0 + L, h * D:(h + 1) * D].astype(jnp.bfloat16)
            # q @ k^T without materializing a transpose (contract last axes);
            # the softmax scale is already folded into the Q weight columns.
            s = jax.lax.dot_general(q, k, (((1,), (1,)), ((), ())),
                                    preferred_element_type=jnp.float32)
            s = s - jnp.max(s, axis=-1, keepdims=True)
            e = jnp.exp(s)
            inv = pl.reciprocal(jnp.sum(e, axis=-1, keepdims=True), approx=True)
            p = (e * inv).astype(jnp.bfloat16)
            out = jnp.dot(p, v, preferred_element_type=jnp.float32)
            # Direct per-head store (no concatenate): rows b*L+l, cols h*D:(h+1)*D.
            o_ref[r0:r0 + L, h * D:(h + 1) * D] = out.astype(o_ref.dtype)


def fused_token_path(p_hsi, p_msi, w_h, w_m, b_h, b_m, pos, g, bt,
                     wqv1, wk2, *, B, L, num_heads):
    BL = p_hsi.shape[0]
    C = w_h.shape[1]
    return pl.pallas_call(
        functools.partial(_token_kernel, B=B, L=L, num_heads=num_heads),
        out_shape=jax.ShapeDtypeStruct((BL, C), jnp.bfloat16),
    )(p_hsi, p_msi, w_h, w_m, b_h, b_m, pos, g, bt, wqv1, wk2)


# --------------------------------------------------------------------------
# Pallas kernel 2: localization MLP -> theta (K-tiled, bf16 x bf16 -> f32)
# TODO(synk): fusing this into the token kernel needs an in-kernel
# (B*L, C) -> (B, L*C) relayout or a multi-axis dot_general; kept separate
# with bf16 weights + K-tiled pipelining instead.
# --------------------------------------------------------------------------

def _loc_mlp_kernel(xf_ref, w1_ref, b1_ref, w2_ref, b2_ref, o_ref, acc_ref):
    k = pl.program_id(0)

    @pl.when(k == 0)
    def _():
        acc_ref[...] = jnp.zeros_like(acc_ref)

    acc_ref[...] += jnp.dot(xf_ref[...], w1_ref[...],
                            preferred_element_type=jnp.float32)

    @pl.when(k == pl.num_programs(0) - 1)
    def _():
        h = jnp.maximum(acc_ref[...] + b1_ref[...], 0.0)
        o_ref[...] = jnp.dot(h, w2_ref[...],
                             precision=jax.lax.Precision.HIGHEST,
                             preferred_element_type=jnp.float32) + b2_ref[...]


def localization_mlp(x_flat, w1, b1, w2, b2, *, tk=4096):
    B, K = x_flat.shape
    n_hid = w1.shape[1]
    n_out = w2.shape[1]
    if K % tk != 0:
        tk = K                                  # fallback: single step
    nk = K // tk
    return pl.pallas_call(
        _loc_mlp_kernel,
        out_shape=jax.ShapeDtypeStruct((B, n_out), jnp.float32),
        grid=(nk,),
        in_specs=[
            pl.BlockSpec((B, tk), lambda k: (0, k)),
            pl.BlockSpec((tk, n_hid), lambda k: (k, 0)),
            pl.BlockSpec((1, n_hid), lambda k: (0, 0)),
            pl.BlockSpec((n_hid, n_out), lambda k: (0, 0)),
            pl.BlockSpec((1, n_out), lambda k: (0, 0)),
        ],
        out_specs=pl.BlockSpec((B, n_out), lambda k: (0, 0)),
        scratch_shapes=[pltpu.VMEM((B, n_hid), jnp.float32)],
        compiler_params=pltpu.CompilerParams(
            dimension_semantics=("arbitrary",)),
    )(x_flat, w1, b1, w2, b2)


# --------------------------------------------------------------------------
# Pallas kernel 3: affine_grid + grid_sample (bilinear, zeros padding,
# align_corners=False), channels-first / lane-dense, output-pixel tiled.
# --------------------------------------------------------------------------

def _warp_kernel(theta_ref, x_ref, o_ref, *, H, W, T, factored):
    # theta_ref: (B, 6) in SMEM.  x_ref: (1, C, H*W).  o_ref: (1, C, T).
    b = pl.program_id(0)
    t = pl.program_id(1)
    t00 = theta_ref[b, 0]
    t01 = theta_ref[b, 1]
    t02 = theta_ref[b, 2]
    t10 = theta_ref[b, 3]
    t11 = theta_ref[b, 4]
    t12 = theta_ref[b, 5]

    HW = H * W
    # Output pixels of this tile live on the lane axis.
    oi = (t * T + jax.lax.broadcasted_iota(jnp.int32, (1, T), 1)).astype(jnp.float32)
    row = jnp.floor(oi / W)
    col = oi - row * W
    # affine_grid, align_corners=False base coordinates
    xb = (2.0 * col + 1.0 - W) / W
    yb = (2.0 * row + 1.0 - H) / H
    gx = t00 * xb + t01 * yb + t02
    gy = t10 * xb + t11 * yb + t12
    # grid_sample unnormalization, align_corners=False
    ix = ((gx + 1.0) * W - 1.0) * 0.5
    iy = ((gy + 1.0) * H - 1.0) * 0.5
    ix0 = jnp.floor(ix)
    iy0 = jnp.floor(iy)
    wx1 = ix - ix0
    wx0 = 1.0 - wx1
    wy1 = iy - iy0
    wy0 = 1.0 - wy1

    if factored:
        # Separable bilinear masks: (H,T) row mask x (W,T) column mask, then a
        # single broadcast-multiply expansion.  Zeros padding falls out of the
        # equality masks: out-of-range iy0/ix0 never match any index.
        ph = jax.lax.broadcasted_iota(jnp.int32, (H, 1), 0).astype(jnp.float32)
        qw = jax.lax.broadcasted_iota(jnp.int32, (W, 1), 0).astype(jnp.float32)
        my = jnp.where(ph == iy0, wy0, 0.0) + jnp.where(ph == iy0 + 1.0, wy1, 0.0)
        mx = jnp.where(qw == ix0, wx0, 0.0) + jnp.where(qw == ix0 + 1.0, wx1, 0.0)
        m = (my[:, None, :] * mx[None, :, :]).reshape(HW, T)
    else:
        # Full-size fallback (used when W is not a sublane multiple).
        ii = jax.lax.broadcasted_iota(jnp.int32, (HW, 1), 0).astype(jnp.float32)
        p = jnp.floor(ii / W)
        q = ii - p * W
        my = jnp.where(p == iy0, wy0, 0.0) + jnp.where(p == iy0 + 1.0, wy1, 0.0)
        mx = jnp.where(q == ix0, wx0, 0.0) + jnp.where(q == ix0 + 1.0, wx1, 0.0)
        m = my * mx
    # (C, HW) @ (HW, T) -> (C, T): output last dim is the HW tile (lane-dense).
    # Precision pinned so the f32 sampling matmul is exact vs the gather ref.
    o_ref[0] = jnp.dot(x_ref[0], m, precision=jax.lax.Precision.HIGHEST,
                       preferred_element_type=jnp.float32)


def _pick_output_tile(HW, m_budget_bytes=6 << 20):
    """Largest T (multiple of 128 dividing HW) s.t. the (HW, T) f32 sampling
    matrix stays under the VMEM budget (portable down to v7x's 64 MiB VMEM)."""
    if HW <= 512 or HW % 128 != 0:
        return HW
    T = 512 if HW % 512 == 0 else (256 if HW % 256 == 0 else 128)
    while T > 128 and HW * T * 4 > m_budget_bytes:
        T //= 2
    return T


def affine_warp(theta, x_img):
    """F.affine_grid(theta, x.size()) + F.grid_sample(x, grid) (defaults)."""
    B, C, H, W = x_img.shape
    HW = H * W
    T = _pick_output_tile(HW)
    x_cf = x_img.reshape(B, C, HW)        # channels-first, free reshape
    out = pl.pallas_call(
        functools.partial(_warp_kernel, H=H, W=W, T=T, factored=(W % 8 == 0)),
        out_shape=jax.ShapeDtypeStruct((B, C, HW), jnp.float32),
        grid=(B, HW // T),
        in_specs=[
            pl.BlockSpec(memory_space=pltpu.MemorySpace.SMEM),   # theta scalars
            pl.BlockSpec((1, C, HW), lambda b, t: (b, 0, 0)),
        ],
        out_specs=pl.BlockSpec((1, C, T), lambda b, t: (b, 0, t)),
        compiler_params=pltpu.CompilerParams(
            dimension_semantics=("parallel", "arbitrary"),
            vmem_limit_bytes=32 * 1024 * 1024),
    )(theta, x_cf)
    return out.reshape(B, C, H, W)


# --------------------------------------------------------------------------
# Glue (plain JAX): im2col, parameter setup, full forward
# --------------------------------------------------------------------------

def im2col_3x3(x, k_pad=None):
    """(B, Cin, H, W) -> (B, H*W, Kp), patch index = ci*9 + di*3 + dj,
    zero-padded on K up to k_pad (pad fused into the patch-prep op chain)."""
    B, Cin, H, W = x.shape
    xp = jnp.pad(x, ((0, 0), (0, 0), (1, 1), (1, 1)))
    cols = [xp[:, :, di:di + H, dj:dj + W] for di in range(3) for dj in range(3)]
    patches = jnp.stack(cols, axis=2).reshape(B, Cin * 9, H * W)
    patches = jnp.transpose(patches, (0, 2, 1))
    if k_pad is not None and k_pad > Cin * 9:
        patches = jnp.pad(patches, ((0, 0), (0, 0), (0, k_pad - Cin * 9)))
    return patches


def _pad_weight_rows(w_flat, k_pad):
    K = w_flat.shape[0]
    if k_pad > K:
        w_flat = jnp.pad(w_flat, ((0, k_pad - K), (0, 0)))
    return w_flat


def init_params(key, patch_size=32, dim=256, in_ch_msi=3, in_ch_hsi=31):
    p = patch_size // 4
    L = p * p
    ks = jax.random.split(key, 9)
    return dict(
        pos_embed=0.02 * jax.random.normal(ks[0], (L, dim), jnp.float32),
        w_hsi=0.05 * jax.random.normal(ks[1], (dim, in_ch_hsi, 3, 3), jnp.float32),
        b_hsi=0.05 * jax.random.normal(ks[2], (dim,), jnp.float32),
        w_msi=0.05 * jax.random.normal(ks[3], (dim, in_ch_msi, 3, 3), jnp.float32),
        b_msi=0.05 * jax.random.normal(ks[4], (dim,), jnp.float32),
        ln_gamma=jnp.ones((dim,), jnp.float32),
        ln_beta=jnp.zeros((dim,), jnp.float32),
        # Linear weights stored transposed relative to PyTorch: (in, out)
        w_qkv1=0.02 * jax.random.normal(ks[5], (dim, 3 * dim), jnp.float32),
        w_qkv2=0.02 * jax.random.normal(ks[6], (dim, 3 * dim), jnp.float32),
        w_loc1=0.02 * jax.random.normal(ks[7], (dim * L, 32), jnp.float32),
        b_loc1=jnp.zeros((32,), jnp.float32),
        w_loc2=0.01 * jax.random.normal(ks[8], (32, 6), jnp.float32),
        b_loc2=jnp.array([1.0, 0.0, 0.0, 0.0, 1.0, 0.0], jnp.float32),
    )


def coarse_registration_forward(params, x, x_org, y, num_heads=4,
                                return_theta=False):
    B = x_org.shape[0]
    dim = params["pos_embed"].shape[-1]
    L = params["pos_embed"].shape[0]
    head_dim = dim // num_heads
    scale = head_dim ** -0.5

    # -- fused token path (Pallas): embed + pos + LN + trimmed QKV + attention
    K_h = _round_up(x_org.shape[1] * 9, 128)
    K_m = _round_up(y.shape[1] * 9, 128)
    p_hsi = im2col_3x3(x_org, K_h).reshape(B * L, K_h).astype(jnp.bfloat16)
    p_msi = im2col_3x3(y, K_m).reshape(B * L, K_m).astype(jnp.bfloat16)
    w_hsi_flat = _pad_weight_rows(params["w_hsi"].reshape(dim, -1).T, K_h).astype(jnp.bfloat16)
    w_msi_flat = _pad_weight_rows(params["w_msi"].reshape(dim, -1).T, K_m).astype(jnp.bfloat16)
    # Only the used QKV columns: [Q*scale | V] from qkv_1 and K from qkv_2.
    wqv1 = jnp.concatenate(
        [params["w_qkv1"][:, :dim] * scale, params["w_qkv1"][:, 2 * dim:]],
        axis=1).astype(jnp.bfloat16)                              # (dim, 2*dim)
    wk2 = params["w_qkv2"][:, dim:2 * dim].astype(jnp.bfloat16)   # (dim, dim)

    attn = fused_token_path(
        p_hsi, p_msi, w_hsi_flat, w_msi_flat,
        params["b_hsi"].reshape(1, dim), params["b_msi"].reshape(1, dim),
        params["pos_embed"],
        params["ln_gamma"].reshape(1, dim), params["ln_beta"].reshape(1, dim),
        wqv1, wk2, B=B, L=L, num_heads=num_heads)                 # (B*L, C) bf16

    # -- localization MLP -> theta (Pallas, bf16 weights, K-tiled) ------------
    theta = localization_mlp(attn.reshape(B, L * dim),            # free reshape
                             params["w_loc1"].astype(jnp.bfloat16),
                             params["b_loc1"].reshape(1, -1),
                             params["w_loc2"], params["b_loc2"].reshape(1, -1))

    # -- affine_grid + grid_sample (Pallas) -----------------------------------
    out = affine_warp(theta, x)
    if return_theta:
        return out, theta
    return out


# --------------------------------------------------------------------------
# Pure-JAX f32 reference (mirrors the PyTorch forward) for the sanity check
# --------------------------------------------------------------------------

def reference_theta(params, x_org, y, num_heads=4):
    dim = params["pos_embed"].shape[-1]
    B = x_org.shape[0]

    def conv(inp, w, b):
        out = jax.lax.conv_general_dilated(
            inp, w, window_strides=(1, 1), padding="SAME",
            dimension_numbers=("NCHW", "OIHW", "NCHW"))
        return out + b[None, :, None, None]

    def ln(z):
        mu = jnp.mean(z, axis=-1, keepdims=True)
        var = jnp.mean((z - mu) ** 2, axis=-1, keepdims=True)
        return (z - mu) / jnp.sqrt(var + 1e-5) * params["ln_gamma"] + params["ln_beta"]

    xo = conv(x_org, params["w_hsi"], params["b_hsi"])
    yo = conv(y, params["w_msi"], params["b_msi"])
    xo = jnp.transpose(xo.reshape(B, dim, -1), (0, 2, 1)) + params["pos_embed"][None]
    yo = jnp.transpose(yo.reshape(B, dim, -1), (0, 2, 1)) + params["pos_embed"][None]
    xn, yn = ln(xo), ln(yo)
    L = xn.shape[1]
    head_dim = dim // num_heads
    scale = head_dim ** -0.5

    def qkv(z, w):
        out = (z @ w).reshape(B, L, 3, num_heads, head_dim)
        out = jnp.transpose(out, (2, 0, 3, 1, 4))
        return out[0], out[1], out[2]

    q1, _, v1 = qkv(xn, params["w_qkv1"])
    _, k2, _ = qkv(yn, params["w_qkv2"])
    attn = jax.nn.softmax(jnp.einsum("bhld,bhmd->bhlm", q1, k2) * scale, axis=-1)
    out = jnp.einsum("bhlm,bhmd->bhld", attn, v1)
    out = jnp.transpose(out, (0, 2, 1, 3)).reshape(B, L * dim)
    h = jax.nn.relu(out @ params["w_loc1"] + params["b_loc1"])
    return h @ params["w_loc2"] + params["b_loc2"]           # (B, 6)


def reference_warp(x, theta6):
    B, C, H, W = x.shape
    theta = theta6.reshape(B, 2, 3)
    xs = (2.0 * jnp.arange(W) + 1.0 - W) / W
    ys = (2.0 * jnp.arange(H) + 1.0 - H) / H
    X, Y = jnp.meshgrid(xs, ys, indexing="xy")
    base = jnp.stack([X, Y, jnp.ones_like(X)], axis=-1)
    grid = jnp.einsum("hwk,bnk->bhwn", base, theta)
    gx, gy = grid[..., 0], grid[..., 1]
    ix = ((gx + 1.0) * W - 1.0) / 2.0
    iy = ((gy + 1.0) * H - 1.0) / 2.0
    ix0, iy0 = jnp.floor(ix), jnp.floor(iy)
    wx1, wy1 = ix - ix0, iy - iy0
    wx0, wy0 = 1.0 - wx1, 1.0 - wy1
    bidx = jnp.arange(B)[:, None, None]

    def corner(px, py, wgt):
        valid = (px >= 0) & (px < W) & (py >= 0) & (py < H)
        pxc = jnp.clip(px, 0, W - 1).astype(jnp.int32)
        pyc = jnp.clip(py, 0, H - 1).astype(jnp.int32)
        val = x[bidx, :, pyc, pxc]                           # (B, H, W, C)
        return val * (wgt * valid)[..., None]

    out_img = (corner(ix0, iy0, wx0 * wy0) + corner(ix0 + 1, iy0, wx1 * wy0)
               + corner(ix0, iy0 + 1, wx0 * wy1) + corner(ix0 + 1, iy0 + 1, wx1 * wy1))
    return jnp.transpose(out_img, (0, 3, 1, 2))


# --------------------------------------------------------------------------

if __name__ == "__main__":
    key = jax.random.PRNGKey(0)
    kp, kx, kxo, ky = jax.random.split(key, 4)
    B = 2
    params = init_params(kp, patch_size=32, dim=256, in_ch_msi=3, in_ch_hsi=31)

    # patch_size=32 -> tokens from 8x8 feature maps (L=64); the image to be
    # warped (x) can have any spatial size.
    x = jax.random.normal(kx, (B, 31, 16, 16), jnp.float32)      # image to warp
    x_org = jax.random.normal(kxo, (B, 31, 8, 8), jnp.float32)   # HSI patch
    y = jax.random.normal(ky, (B, 3, 8, 8), jnp.float32)         # MSI patch

    out, theta = coarse_registration_forward(params, x, x_org, y,
                                             return_theta=True)
    out = jax.block_until_ready(out)
    theta = jax.block_until_ready(theta)

    # Two-stage check vs the f32 reference (token/loc path runs bf16 on MXU):
    #  (1) theta against the f32 reference with a bf16-appropriate tolerance,
    #  (2) the warp kernel against the gather-based reference using the SAME
    #      theta (f32 vs f32 at HIGHEST precision, should be near-exact).
    theta_ref = jax.block_until_ready(reference_theta(params, x_org, y))
    warp_ref = jax.block_until_ready(reference_warp(x, theta))

    theta_diff = jnp.abs(theta - theta_ref)
    theta_ok = bool(jnp.all(theta_diff <= 1e-2 + 1e-2 * jnp.abs(theta_ref)))
    err_theta = float(jnp.max(theta_diff))
    err_warp = float(jnp.max(jnp.abs(out - warp_ref)))

    if theta_ok and err_warp < 1e-3 and np.isfinite(err_theta) and np.isfinite(err_warp):
        print("KERNEL_OK")
    else:
        e2e = float(jnp.max(jnp.abs(out - reference_warp(x, theta_ref))))
        print(f"THETA_MAX_DIFF={err_theta} WARP_MAX_DIFF={err_warp} E2E_MAX_DIFF={e2e}")
</pallas_src>

<mosaic_0001>
module attributes {stable_mosaic.version = 11 : i64} {
  func.func @_token_kernel(%arg0: memref<128x384xbf16, #tpu.memory_space<vmem>>, %arg1: memref<128x128xbf16, #tpu.memory_space<vmem>>, %arg2: memref<384x256xbf16, #tpu.memory_space<vmem>>, %arg3: memref<128x256xbf16, #tpu.memory_space<vmem>>, %arg4: memref<1x256xf32, #tpu.memory_space<vmem>>, %arg5: memref<1x256xf32, #tpu.memory_space<vmem>>, %arg6: memref<64x256xf32, #tpu.memory_space<vmem>>, %arg7: memref<1x256xf32, #tpu.memory_space<vmem>>, %arg8: memref<1x256xf32, #tpu.memory_space<vmem>>, %arg9: memref<256x512xbf16, #tpu.memory_space<vmem>>, %arg10: memref<256x256xbf16, #tpu.memory_space<vmem>>, %arg11: memref<128x256xbf16, #tpu.memory_space<vmem>>) attributes {dimension_semantics = [], scalar_prefetch = 0 : i64, scratch_operands = 0 : i64, tpu.core_type = #tpu.core_type<tc>} {
    %c0 = arith.constant 0 : index
    %c0_0 = arith.constant 0 : index
    %0 = vector.load %arg0[%c0, %c0_0] : memref<128x384xbf16, #tpu.memory_space<vmem>>, vector<128x384xbf16>
    %c0_1 = arith.constant 0 : index
    %c0_2 = arith.constant 0 : index
    %1 = vector.load %arg2[%c0_1, %c0_2] : memref<384x256xbf16, #tpu.memory_space<vmem>>, vector<384x256xbf16>
    %cst = arith.constant dense<0.000000e+00> : vector<128x256xf32>
    %2 = tpu.matmul %0, %1, %cst {dimension_numbers = #tpu.dot_dimension_numbers<[1], [0], [0], [1], [0, 0, 1, 1], [], []>} : vector<128x384xbf16>, vector<384x256xbf16>, vector<128x256xf32> -> vector<128x256xf32>
    %c0_3 = arith.constant 0 : index
    %c0_4 = arith.constant 0 : index
    %3 = vector.load %arg1[%c0_3, %c0_4] : memref<128x128xbf16, #tpu.memory_space<vmem>>, vector<128x128xbf16>
    %c0_5 = arith.constant 0 : index
    %c0_6 = arith.constant 0 : index
    %4 = vector.load %arg3[%c0_5, %c0_6] : memref<128x256xbf16, #tpu.memory_space<vmem>>, vector<128x256xbf16>
    %cst_7 = arith.constant dense<0.000000e+00> : vector<128x256xf32>
    %5 = tpu.matmul %3, %4, %cst_7 {dimension_numbers = #tpu.dot_dimension_numbers<[1], [0], [0], [1], [0, 0, 1, 1], [], []>} : vector<128x128xbf16>, vector<128x256xbf16>, vector<128x256xf32> -> vector<128x256xf32>
    %c0_8 = arith.constant 0 : index
    %c0_9 = arith.constant 0 : index
    %6 = vector.load %arg6[%c0_8, %c0_9] : memref<64x256xf32, #tpu.memory_space<vmem>>, vector<64x256xf32>
    %7 = tpu.concatenate %6, %6 in 0 : vector<64x256xf32>, vector<64x256xf32> -> vector<128x256xf32>
    %c0_10 = arith.constant 0 : index
    %c0_11 = arith.constant 0 : index
    %8 = vector.load %arg4[%c0_10, %c0_11] : memref<1x256xf32, #tpu.memory_space<vmem>>, vector<1x256xf32>
    %9 = vector.broadcast %8 : vector<1x256xf32> to vector<128x256xf32>
    %10 = arith.addf %2, %9 : vector<128x256xf32>
    %11 = arith.addf %10, %7 : vector<128x256xf32>
    %c0_12 = arith.constant 0 : index
    %c0_13 = arith.constant 0 : index
    %12 = vector.load %arg5[%c0_12, %c0_13] : memref<1x256xf32, #tpu.memory_space<vmem>>, vector<1x256xf32>
    %13 = vector.broadcast %12 : vector<1x256xf32> to vector<128x256xf32>
    %14 = arith.addf %5, %13 : vector<128x256xf32>
    %15 = arith.addf %14, %7 : vector<128x256xf32>
    %cst_14 = arith.constant dense<0.000000e+00> : vector<128xf32>
    %16 = vector.multi_reduction <add>, %11, %cst_14 [1] : vector<128x256xf32> to vector<128xf32>
    %17 = vector.shape_cast %16 : vector<128xf32> to vector<128x1xf32>
    %cst_15 = arith.constant 2.560000e+02 : f32
    %18 = vector.broadcast %cst_15 : f32 to vector<128x1xf32>
    %19 = arith.divf %17, %18 : vector<128x1xf32>
    %20 = vector.broadcast %19 : vector<128x1xf32> to vector<128x256xf32>
    %21 = arith.subf %11, %20 : vector<128x256xf32>
    %22 = arith.mulf %21, %21 : vector<128x256xf32>
    %cst_16 = arith.constant dense<0.000000e+00> : vector<128xf32>
    %23 = vector.multi_reduction <add>, %22, %cst_16 [1] : vector<128x256xf32> to vector<128xf32>
    %24 = vector.shape_cast %23 : vector<128xf32> to vector<128x1xf32>
    %cst_17 = arith.constant 2.560000e+02 : f32
    %25 = vector.broadcast %cst_17 : f32 to vector<128x1xf32>
    %26 = arith.divf %24, %25 : vector<128x1xf32>
    %cst_18 = arith.constant 9.99999974E-6 : f32
    %27 = vector.broadcast %cst_18 : f32 to vector<128x1xf32>
    %28 = arith.addf %26, %27 : vector<128x1xf32>
    %29 = math.rsqrt %28 : vector<128x1xf32>
    %30 = vector.broadcast %29 : vector<128x1xf32> to vector<128x256xf32>
    %31 = arith.mulf %21, %30 : vector<128x256xf32>
    %c0_19 = arith.constant 0 : index
    %c0_20 = arith.constant 0 : index
    %32 = vector.load %arg7[%c0_19, %c0_20] : memref<1x256xf32, #tpu.memory_space<vmem>>, vector<1x256xf32>
    %33 = vector.broadcast %32 : vector<1x256xf32> to vector<128x256xf32>
    %34 = arith.mulf %31, %33 : vector<128x256xf32>
    %c0_21 = arith.constant 0 : index
    %c0_22 = arith.constant 0 : index
    %35 = vector.load %arg8[%c0_21, %c0_22] : memref<1x256xf32, #tpu.memory_space<vmem>>, vector<1x256xf32>
    %36 = vector.broadcast %35 : vector<1x256xf32> to vector<128x256xf32>
    %37 = arith.addf %34, %36 : vector<128x256xf32>
    %38 = arith.truncf %37 : vector<128x256xf32> to vector<128x256xbf16>
    %cst_23 = arith.constant dense<0.000000e+00> : vector<128xf32>
    %39 = vector.multi_reduction <add>, %15, %cst_23 [1] : vector<128x256xf32> to vector<128xf32>
    %40 = vector.shape_cast %39 : vector<128xf32> to vector<128x1xf32>
    %cst_24 = arith.constant 2.560000e+02 : f32
    %41 = vector.broadcast %cst_24 : f32 to vector<128x1xf32>
    %42 = arith.divf %40, %41 : vector<128x1xf32>
    %43 = vector.broadcast %42 : vector<128x1xf32> to vector<128x256xf32>
    %44 = arith.subf %15, %43 : vector<128x256xf32>
    %45 = arith.mulf %44, %44 : vector<128x256xf32>
    %cst_25 = arith.constant dense<0.000000e+00> : vector<128xf32>
    %46 = vector.multi_reduction <add>, %45, %cst_25 [1] : vector<128x256xf32> to vector<128xf32>
    %47 = vector.shape_cast %46 : vector<128xf32> to vector<128x1xf32>
    %cst_26 = arith.constant 2.560000e+02 : f32
    %48 = vector.broadcast %cst_26 : f32 to vector<128x1xf32>
    %49 = arith.divf %47, %48 : vector<128x1xf32>
    %cst_27 = arith.constant 9.99999974E-6 : f32
    %50 = vector.broadcast %cst_27 : f32 to vector<128x1xf32>
    %51 = arith.addf %49, %50 : vector<128x1xf32>
    %52 = math.rsqrt %51 : vector<128x1xf32>
    %53 = vector.broadcast %52 : vector<128x1xf32> to vector<128x256xf32>
    %54 = arith.mulf %44, %53 : vector<128x256xf32>
    %c0_28 = arith.constant 0 : index
    %c0_29 = arith.constant 0 : index
    %55 = vector.load %arg7[%c0_28, %c0_29] : memref<1x256xf32, #tpu.memory_space<vmem>>, vector<1x256xf32>
    %56 = vector.broadcast %55 : vector<1x256xf32> to vector<128x256xf32>
    %57 = arith.mulf %54, %56 : vector<128x256xf32>
    %c0_30 = arith.constant 0 : index
    %c0_31 = arith.constant 0 : index
    %58 = vector.load %arg8[%c0_30, %c0_31] : memref<1x256xf32, #tpu.memory_space<vmem>>, vector<1x256xf32>
    %59 = vector.broadcast %58 : vector<1x256xf32> to vector<128x256xf32>
    %60 = arith.addf %57, %59 : vector<128x256xf32>
    %61 = arith.truncf %60 : vector<128x256xf32> to vector<128x256xbf16>
    %c0_32 = arith.constant 0 : index
    %c0_33 = arith.constant 0 : index
    %62 = vector.load %arg9[%c0_32, %c0_33] : memref<256x512xbf16, #tpu.memory_space<vmem>>, vector<256x512xbf16>
    %cst_34 = arith.constant dense<0.000000e+00> : vector<128x512xf32>
    %63 = tpu.matmul %38, %62, %cst_34 {dimension_numbers = #tpu.dot_dimension_numbers<[1], [0], [0], [1], [0, 0, 1, 1], [], []>} : vector<128x256xbf16>, vector<256x512xbf16>, vector<128x512xf32> -> vector<128x512xf32>
    %c0_35 = arith.constant 0 : index
    %c0_36 = arith.constant 0 : index
    %64 = vector.load %arg10[%c0_35, %c0_36] : memref<256x256xbf16, #tpu.memory_space<vmem>>, vector<256x256xbf16>
    %cst_37 = arith.constant dense<0.000000e+00> : vector<128x256xf32>
    %65 = tpu.matmul %61, %64, %cst_37 {dimension_numbers = #tpu.dot_dimension_numbers<[1], [0], [0], [1], [0, 0, 1, 1], [], []>} : vector<128x256xbf16>, vector<256x256xbf16>, vector<128x256xf32> -> vector<128x256xf32>
    %66 = vector.extract_strided_slice %63 {offsets = [0, 0], sizes = [64, 64], strides = [1, 1]} : vector<128x512xf32> to vector<64x64xf32>
    %67 = arith.truncf %66 : vector<64x64xf32> to vector<64x64xbf16>
    %68 = vector.extract_strided_slice %63 {offsets = [0, 256], sizes = [64, 64], strides = [1, 1]} : vector<128x512xf32> to vector<64x64xf32>
    %69 = arith.truncf %68 : vector<64x64xf32> to vector<64x64xbf16>
    %70 = vector.extract_strided_slice %65 {offsets = [0, 0], sizes = [64, 64], strides = [1, 1]} : vector<128x256xf32> to vector<64x64xf32>
    %71 = arith.truncf %70 : vector<64x64xf32> to vector<64x64xbf16>
    %cst_38 = arith.constant dense<0.000000e+00> : vector<64x64xf32>
    %72 = tpu.matmul %67, %71, %cst_38 {dimension_numbers = #tpu.dot_dimension_numbers<[1], [1], [0], [0], [0, 0, 1, 0], [], []>} : vector<64x64xbf16>, vector<64x64xbf16>, vector<64x64xf32> -> vector<64x64xf32>
    %cst_39 = arith.constant dense<0xFF800000> : vector<64xf32>
    %73 = vector.multi_reduction <maximumf>, %72, %cst_39 [1] : vector<64x64xf32> to vector<64xf32>
    %74 = vector.shape_cast %73 : vector<64xf32> to vector<64x1xf32>
    %75 = vector.broadcast %74 : vector<64x1xf32> to vector<64x64xf32>
    %76 = arith.subf %72, %75 : vector<64x64xf32>
    %77 = math.exp %76 : vector<64x64xf32>
    %cst_40 = arith.constant dense<0.000000e+00> : vector<64xf32>
    %78 = vector.multi_reduction <add>, %77, %cst_40 [1] : vector<64x64xf32> to vector<64xf32>
    %79 = vector.shape_cast %78 : vector<64xf32> to vector<64x1xf32>
    %80 = tpu.reciprocal %79 {approx = true} : vector<64x1xf32> -> vector<64x1xf32>
    %81 = vector.broadcast %80 : vector<64x1xf32> to vector<64x64xf32>
    %82 = arith.mulf %77, %81 : vector<64x64xf32>
    %83 = arith.truncf %82 : vector<64x64xf32> to vector<64x64xbf16>
    %cst_41 = arith.constant dense<0.000000e+00> : vector<64x64xf32>
    %84 = tpu.matmul %83, %69, %cst_41 {dimension_numbers = #tpu.dot_dimension_numbers<[1], [0], [0], [1], [0, 0, 1, 1], [], []>} : vector<64x64xbf16>, vector<64x64xbf16>, vector<64x64xf32> -> vector<64x64xf32>
    %85 = arith.truncf %84 : vector<64x64xf32> to vector<64x64xbf16>
    %c0_42 = arith.constant 0 : index
    %c0_43 = arith.constant 0 : index
    %86 = vector.load %arg11[%c0_42, %c0_43] : memref<128x256xbf16, #tpu.memory_space<vmem>>, vector<64x64xbf16>
    tpu.vector_store %arg11[%c0_42, %c0_43], %85 {strides = array<i32>} : memref<128x256xbf16, #tpu.memory_space<vmem>>, vector<64x64xbf16>,
    %87 = vector.extract_strided_slice %63 {offsets = [0, 64], sizes = [64, 64], strides = [1, 1]} : vector<128x512xf32> to vector<64x64xf32>
    %88 = arith.truncf %87 : vector<64x64xf32> to vector<64x64xbf16>
    %89 = vector.extract_strided_slice %63 {offsets = [0, 320], sizes = [64, 64], strides = [1, 1]} : vector<128x512xf32> to vector<64x64xf32>
    %90 = arith.truncf %89 : vector<64x64xf32> to vector<64x64xbf16>
    %91 = vector.extract_strided_slice %65 {offsets = [0, 64], sizes = [64, 64], strides = [1, 1]} : vector<128x256xf32> to vector<64x64xf32>
    %92 = arith.truncf %91 : vector<64x64xf32> to vector<64x64xbf16>
    %cst_44 = arith.constant dense<0.000000e+00> : vector<64x64xf32>
    %93 = tpu.matmul %88, %92, %cst_44 {dimension_numbers = #tpu.dot_dimension_numbers<[1], [1], [0], [0], [0, 0, 1, 0], [], []>} : vector<64x64xbf16>, vector<64x64xbf16>, vector<64x64xf32> -> vector<64x64xf32>
    %cst_45 = arith.constant dense<0xFF800000> : vector<64xf32>
    %94 = vector.multi_reduction <maximumf>, %93, %cst_45 [1] : vector<64x64xf32> to vector<64xf32>
    %95 = vector.shape_cast %94 : vector<64xf32> to vector<64x1xf32>
    %96 = vector.broadcast %95 : vector<64x1xf32> to vector<64x64xf32>
    %97 = arith.subf %93, %96 : vector<64x64xf32>
    %98 = math.exp %97 : vector<64x64xf32>
    %cst_46 = arith.constant dense<0.000000e+00> : vector<64xf32>
    %99 = vector.multi_reduction <add>, %98, %cst_46 [1] : vector<64x64xf32> to vector<64xf32>
    %100 = vector.shape_cast %99 : vector<64xf32> to vector<64x1xf32>
    %101 = tpu.reciprocal %100 {approx = true} : vector<64x1xf32> -> vector<64x1xf32>
    %102 = vector.broadcast %101 : vector<64x1xf32> to vector<64x64xf32>
    %103 = arith.mulf %98, %102 : vector<64x64xf32>
    %104 = arith.truncf %103 : vector<64x64xf32> to vector<64x64xbf16>
    %cst_47 = arith.constant dense<0.000000e+00> : vector<64x64xf32>
    %105 = tpu.matmul %104, %90, %cst_47 {dimension_numbers = #tpu.dot_dimension_numbers<[1], [0], [0], [1], [0, 0, 1, 1], [], []>} : vector<64x64xbf16>, vector<64x64xbf16>, vector<64x64xf32> -> vector<64x64xf32>
    %106 = arith.truncf %105 : vector<64x64xf32> to vector<64x64xbf16>
    %c0_48 = arith.constant 0 : index
    %c64 = arith.constant 64 : index
    %107 = vector.load %arg11[%c0_48, %c64] : memref<128x256xbf16, #tpu.memory_space<vmem>>, vector<64x64xbf16>
    tpu.vector_store %arg11[%c0_48, %c64], %106 {strides = array<i32>} : memref<128x256xbf16, #tpu.memory_space<vmem>>, vector<64x64xbf16>,
    %108 = vector.extract_strided_slice %63 {offsets = [0, 128], sizes = [64, 64], strides = [1, 1]} : vector<128x512xf32> to vector<64x64xf32>
    %109 = arith.truncf %108 : vector<64x64xf32> to vector<64x64xbf16>
    %110 = vector.extract_strided_slice %63 {offsets = [0, 384], sizes = [64, 64], strides = [1, 1]} : vector<128x512xf32> to vector<64x64xf32>
    %111 = arith.truncf %110 : vector<64x64xf32> to vector<64x64xbf16>
    %112 = vector.extract_strided_slice %65 {offsets = [0, 128], sizes = [64, 64], strides = [1, 1]} : vector<128x256xf32> to vector<64x64xf32>
    %113 = arith.truncf %112 : vector<64x64xf32> to vector<64x64xbf16>
    %cst_49 = arith.constant dense<0.000000e+00> : vector<64x64xf32>
    %114 = tpu.matmul %109, %113, %cst_49 {dimension_numbers = #tpu.dot_dimension_numbers<[1], [1], [0], [0], [0, 0, 1, 0], [], []>} : vector<64x64xbf16>, vector<64x64xbf16>, vector<64x64xf32> -> vector<64x64xf32>
    %cst_50 = arith.constant dense<0xFF800000> : vector<64xf32>
    %115 = vector.multi_reduction <maximumf>, %114, %cst_50 [1] : vector<64x64xf32> to vector<64xf32>
    %116 = vector.shape_cast %115 : vector<64xf32> to vector<64x1xf32>
    %117 = vector.broadcast %116 : vector<64x1xf32> to vector<64x64xf32>
    %118 = arith.subf %114, %117 : vector<64x64xf32>
    %119 = math.exp %118 : vector<64x64xf32>
    %cst_51 = arith.constant dense<0.000000e+00> : vector<64xf32>
    %120 = vector.multi_reduction <add>, %119, %cst_51 [1] : vector<64x64xf32> to vector<64xf32>
    %121 = vector.shape_cast %120 : vector<64xf32> to vector<64x1xf32>
    %122 = tpu.reciprocal %121 {approx = true} : vector<64x1xf32> -> vector<64x1xf32>
    %123 = vector.broadcast %122 : vector<64x1xf32> to vector<64x64xf32>
    %124 = arith.mulf %119, %123 : vector<64x64xf32>
    %125 = arith.truncf %124 : vector<64x64xf32> to vector<64x64xbf16>
    %cst_52 = arith.constant dense<0.000000e+00> : vector<64x64xf32>
    %126 = tpu.matmul %125, %111, %cst_52 {dimension_numbers = #tpu.dot_dimension_numbers<[1], [0], [0], [1], [0, 0, 1, 1], [], []>} : vector<64x64xbf16>, vector<64x64xbf16>, vector<64x64xf32> -> vector<64x64xf32>
    %127 = arith.truncf %126 : vector<64x64xf32> to vector<64x64xbf16>
    %c0_53 = arith.constant 0 : index
    %c128 = arith.constant 128 : index
    %128 = vector.load %arg11[%c0_53, %c128] : memref<128x256xbf16, #tpu.memory_space<vmem>>, vector<64x64xbf16>
    tpu.vector_store %arg11[%c0_53, %c128], %127 {strides = array<i32>} : memref<128x256xbf16, #tpu.memory_space<vmem>>, vector<64x64xbf16>,
    %129 = vector.extract_strided_slice %63 {offsets = [0, 192], sizes = [64, 64], strides = [1, 1]} : vector<128x512xf32> to vector<64x64xf32>
    %130 = arith.truncf %129 : vector<64x64xf32> to vector<64x64xbf16>
    %131 = vector.extract_strided_slice %63 {offsets = [0, 448], sizes = [64, 64], strides = [1, 1]} : vector<128x512xf32> to vector<64x64xf32>
    %132 = arith.truncf %131 : vector<64x64xf32> to vector<64x64xbf16>
    %133 = vector.extract_strided_slice %65 {offsets = [0, 192], sizes = [64, 64], strides = [1, 1]} : vector<128x256xf32> to vector<64x64xf32>
    %134 = arith.truncf %133 : vector<64x64xf32> to vector<64x64xbf16>
    %cst_54 = arith.constant dense<0.000000e+00> : vector<64x64xf32>
    %135 = tpu.matmul %130, %134, %cst_54 {dimension_numbers = #tpu.dot_dimension_numbers<[1], [1], [0], [0], [0, 0, 1, 0], [], []>} : vector<64x64xbf16>, vector<64x64xbf16>, vector<64x64xf32> -> vector<64x64xf32>
    %cst_55 = arith.constant dense<0xFF800000> : vector<64xf32>
    %136 = vector.multi_reduction <maximumf>, %135, %cst_55 [1] : vector<64x64xf32> to vector<64xf32>
    %137 = vector.shape_cast %136 : vector<64xf32> to vector<64x1xf32>
    %138 = vector.broadcast %137 : vector<64x1xf32> to vector<64x64xf32>
    %139 = arith.subf %135, %138 : vector<64x64xf32>
    %140 = math.exp %139 : vector<64x64xf32>
    %cst_56 = arith.constant dense<0.000000e+00> : vector<64xf32>
    %141 = vector.multi_reduction <add>, %140, %cst_56 [1] : vector<64x64xf32> to vector<64xf32>
    %142 = vector.shape_cast %141 : vector<64xf32> to vector<64x1xf32>
    %143 = tpu.reciprocal %142 {approx = true} : vector<64x1xf32> -> vector<64x1xf32>
    %144 = vector.broadcast %143 : vector<64x1xf32> to vector<64x64xf32>
    %145 = arith.mulf %140, %144 : vector<64x64xf32>
    %146 = arith.truncf %145 : vector<64x64xf32> to vector<64x64xbf16>
    %cst_57 = arith.constant dense<0.000000e+00> : vector<64x64xf32>
    %147 = tpu.matmul %146, %132, %cst_57 {dimension_numbers = #tpu.dot_dimension_numbers<[1], [0], [0], [1], [0, 0, 1, 1], [], []>} : vector<64x64xbf16>, vector<64x64xbf16>, vector<64x64xf32> -> vector<64x64xf32>
    %148 = arith.truncf %147 : vector<64x64xf32> to vector<64x64xbf16>
    %c0_58 = arith.constant 0 : index
    %c192 = arith.constant 192 : index
    %149 = vector.load %arg11[%c0_58, %c192] : memref<128x256xbf16, #tpu.memory_space<vmem>>, vector<64x64xbf16>
    tpu.vector_store %arg11[%c0_58, %c192], %148 {strides = array<i32>} : memref<128x256xbf16, #tpu.memory_space<vmem>>, vector<64x64xbf16>,
    %150 = vector.extract_strided_slice %63 {offsets = [64, 0], sizes = [64, 64], strides = [1, 1]} : vector<128x512xf32> to vector<64x64xf32>
    %151 = arith.truncf %150 : vector<64x64xf32> to vector<64x64xbf16>
    %152 = vector.extract_strided_slice %63 {offsets = [64, 256], sizes = [64, 64], strides = [1, 1]} : vector<128x512xf32> to vector<64x64xf32>
    %153 = arith.truncf %152 : vector<64x64xf32> to vector<64x64xbf16>
    %154 = vector.extract_strided_slice %65 {offsets = [64, 0], sizes = [64, 64], strides = [1, 1]} : vector<128x256xf32> to vector<64x64xf32>
    %155 = arith.truncf %154 : vector<64x64xf32> to vector<64x64xbf16>
    %cst_59 = arith.constant dense<0.000000e+00> : vector<64x64xf32>
    %156 = tpu.matmul %151, %155, %cst_59 {dimension_numbers = #tpu.dot_dimension_numbers<[1], [1], [0], [0], [0, 0, 1, 0], [], []>} : vector<64x64xbf16>, vector<64x64xbf16>, vector<64x64xf32> -> vector<64x64xf32>
    %cst_60 = arith.constant dense<0xFF800000> : vector<64xf32>
    %157 = vector.multi_reduction <maximumf>, %156, %cst_60 [1] : vector<64x64xf32> to vector<64xf32>
    %158 = vector.shape_cast %157 : vector<64xf32> to vector<64x1xf32>
    %159 = vector.broadcast %158 : vector<64x1xf32> to vector<64x64xf32>
    %160 = arith.subf %156, %159 : vector<64x64xf32>
    %161 = math.exp %160 : vector<64x64xf32>
    %cst_61 = arith.constant dense<0.000000e+00> : vector<64xf32>
    %162 = vector.multi_reduction <add>, %161, %cst_61 [1] : vector<64x64xf32> to vector<64xf32>
    %163 = vector.shape_cast %162 : vector<64xf32> to vector<64x1xf32>
    %164 = tpu.reciprocal %163 {approx = true} : vector<64x1xf32> -> vector<64x1xf32>
    %165 = vector.broadcast %164 : vector<64x1xf32> to vector<64x64xf32>
    %166 = arith.mulf %161, %165 : vector<64x64xf32>
    %167 = arith.truncf %166 : vector<64x64xf32> to vector<64x64xbf16>
    %cst_62 = arith.constant dense<0.000000e+00> : vector<64x64xf32>
    %168 = tpu.matmul %167, %153, %cst_62 {dimension_numbers = #tpu.dot_dimension_numbers<[1], [0], [0], [1], [0, 0, 1, 1], [], []>} : vector<64x64xbf16>, vector<64x64xbf16>, vector<64x64xf32> -> vector<64x64xf32>
    %169 = arith.truncf %168 : vector<64x64xf32> to vector<64x64xbf16>
    %c64_63 = arith.constant 64 : index
    %c0_64 = arith.constant 0 : index
    %170 = vector.load %arg11[%c64_63, %c0_64] : memref<128x256xbf16, #tpu.memory_space<vmem>>, vector<64x64xbf16>
    tpu.vector_store %arg11[%c64_63, %c0_64], %169 {strides = array<i32>} : memref<128x256xbf16, #tpu.memory_space<vmem>>, vector<64x64xbf16>,
    %171 = vector.extract_strided_slice %63 {offsets = [64, 64], sizes = [64, 64], strides = [1, 1]} : vector<128x512xf32> to vector<64x64xf32>
    %172 = arith.truncf %171 : vector<64x64xf32> to vector<64x64xbf16>
    %173 = vector.extract_strided_slice %63 {offsets = [64, 320], sizes = [64, 64], strides = [1, 1]} : vector<128x512xf32> to vector<64x64xf32>
    %174 = arith.truncf %173 : vector<64x64xf32> to vector<64x64xbf16>
    %175 = vector.extract_strided_slice %65 {offsets = [64, 64], sizes = [64, 64], strides = [1, 1]} : vector<128x256xf32> to vector<64x64xf32>
    %176 = arith.truncf %175 : vector<64x64xf32> to vector<64x64xbf16>
    %cst_65 = arith.constant dense<0.000000e+00> : vector<64x64xf32>
    %177 = tpu.matmul %172, %176, %cst_65 {dimension_numbers = #tpu.dot_dimension_numbers<[1], [1], [0], [0], [0, 0, 1, 0], [], []>} : vector<64x64xbf16>, vector<64x64xbf16>, vector<64x64xf32> -> vector<64x64xf32>
    %cst_66 = arith.constant dense<0xFF800000> : vector<64xf32>
    %178 = vector.multi_reduction <maximumf>, %177, %cst_66 [1] : vector<64x64xf32> to vector<64xf32>
    %179 = vector.shape_cast %178 : vector<64xf32> to vector<64x1xf32>
    %180 = vector.broadcast %179 : vector<64x1xf32> to vector<64x64xf32>
    %181 = arith.subf %177, %180 : vector<64x64xf32>
    %182 = math.exp %181 : vector<64x64xf32>
    %cst_67 = arith.constant dense<0.000000e+00> : vector<64xf32>
    %183 = vector.multi_reduction <add>, %182, %cst_67 [1] : vector<64x64xf32> to vector<64xf32>
    %184 = vector.shape_cast %183 : vector<64xf32> to vector<64x1xf32>
    %185 = tpu.reciprocal %184 {approx = true} : vector<64x1xf32> -> vector<64x1xf32>
    %186 = vector.broadcast %185 : vector<64x1xf32> to vector<64x64xf32>
    %187 = arith.mulf %182, %186 : vector<64x64xf32>
    %188 = arith.truncf %187 : vector<64x64xf32> to vector<64x64xbf16>
    %cst_68 = arith.constant dense<0.000000e+00> : vector<64x64xf32>
    %189 = tpu.matmul %188, %174, %cst_68 {dimension_numbers = #tpu.dot_dimension_numbers<[1], [0], [0], [1], [0, 0, 1, 1], [], []>} : vector<64x64xbf16>, vector<64x64xbf16>, vector<64x64xf32> -> vector<64x64xf32>
    %190 = arith.truncf %189 : vector<64x64xf32> to vector<64x64xbf16>
    %c64_69 = arith.constant 64 : index
    %c64_70 = arith.constant 64 : index
    %191 = vector.load %arg11[%c64_69, %c64_70] : memref<128x256xbf16, #tpu.memory_space<vmem>>, vector<64x64xbf16>
    tpu.vector_store %arg11[%c64_69, %c64_70], %190 {strides = array<i32>} : memref<128x256xbf16, #tpu.memory_space<vmem>>, vector<64x64xbf16>,
    %192 = vector.extract_strided_slice %63 {offsets = [64, 128], sizes = [64, 64], strides = [1, 1]} : vector<128x512xf32> to vector<64x64xf32>
    %193 = arith.truncf %192 : vector<64x64xf32> to vector<64x64xbf16>
    %194 = vector.extract_strided_slice %63 {offsets = [64, 384], sizes = [64, 64], strides = [1, 1]} : vector<128x512xf32> to vector<64x64xf32>
    %195 = arith.truncf %194 : vector<64x64xf32> to vector<64x64xbf16>
    %196 = vector.extract_strided_slice %65 {offsets = [64, 128], sizes = [64, 64], strides = [1, 1]} : vector<128x256xf32> to vector<64x64xf32>
    %197 = arith.truncf %196 : vector<64x64xf32> to vector<64x64xbf16>
    %cst_71 = arith.constant dense<0.000000e+00> : vector<64x64xf32>
    %198 = tpu.matmul %193, %197, %cst_71 {dimension_numbers = #tpu.dot_dimension_numbers<[1], [1], [0], [0], [0, 0, 1, 0], [], []>} : vector<64x64xbf16>, vector<64x64xbf16>, vector<64x64xf32> -> vector<64x64xf32>
    %cst_72 = arith.constant dense<0xFF800000> : vector<64xf32>
    %199 = vector.multi_reduction <maximumf>, %198, %cst_72 [1] : vector<64x64xf32> to vector<64xf32>
    %200 = vector.shape_cast %199 : vector<64xf32> to vector<64x1xf32>
    %201 = vector.broadcast %200 : vector<64x1xf32> to vector<64x64xf32>
    %202 = arith.subf %198, %201 : vector<64x64xf32>
    %203 = math.exp %202 : vector<64x64xf32>
    %cst_73 = arith.constant dense<0.000000e+00> : vector<64xf32>
    %204 = vector.multi_reduction <add>, %203, %cst_73 [1] : vector<64x64xf32> to vector<64xf32>
    %205 = vector.shape_cast %204 : vector<64xf32> to vector<64x1xf32>
    %206 = tpu.reciprocal %205 {approx = true} : vector<64x1xf32> -> vector<64x1xf32>
    %207 = vector.broadcast %206 : vector<64x1xf32> to vector<64x64xf32>
    %208 = arith.mulf %203, %207 : vector<64x64xf32>
    %209 = arith.truncf %208 : vector<64x64xf32> to vector<64x64xbf16>
    %cst_74 = arith.constant dense<0.000000e+00> : vector<64x64xf32>
    %210 = tpu.matmul %209, %195, %cst_74 {dimension_numbers = #tpu.dot_dimension_numbers<[1], [0], [0], [1], [0, 0, 1, 1], [], []>} : vector<64x64xbf16>, vector<64x64xbf16>, vector<64x64xf32> -> vector<64x64xf32>
    %211 = arith.truncf %210 : vector<64x64xf32> to vector<64x64xbf16>
    %c64_75 = arith.constant 64 : index
    %c128_76 = arith.constant 128 : index
    %212 = vector.load %arg11[%c64_75, %c128_76] : memref<128x256xbf16, #tpu.memory_space<vmem>>, vector<64x64xbf16>
    tpu.vector_store %arg11[%c64_75, %c128_76], %211 {strides = array<i32>} : memref<128x256xbf16, #tpu.memory_space<vmem>>, vector<64x64xbf16>,
    %213 = vector.extract_strided_slice %63 {offsets = [64, 192], sizes = [64, 64], strides = [1, 1]} : vector<128x512xf32> to vector<64x64xf32>
    %214 = arith.truncf %213 : vector<64x64xf32> to vector<64x64xbf16>
    %215 = vector.extract_strided_slice %63 {offsets = [64, 448], sizes = [64, 64], strides = [1, 1]} : vector<128x512xf32> to vector<64x64xf32>
    %216 = arith.truncf %215 : vector<64x64xf32> to vector<64x64xbf16>
    %217 = vector.extract_strided_slice %65 {offsets = [64, 192], sizes = [64, 64], strides = [1, 1]} : vector<128x256xf32> to vector<64x64xf32>
    %218 = arith.truncf %217 : vector<64x64xf32> to vector<64x64xbf16>
    %cst_77 = arith.constant dense<0.000000e+00> : vector<64x64xf32>
    %219 = tpu.matmul %214, %218, %cst_77 {dimension_numbers = #tpu.dot_dimension_numbers<[1], [1], [0], [0], [0, 0, 1, 0], [], []>} : vector<64x64xbf16>, vector<64x64xbf16>, vector<64x64xf32> -> vector<64x64xf32>
    %cst_78 = arith.constant dense<0xFF800000> : vector<64xf32>
    %220 = vector.multi_reduction <maximumf>, %219, %cst_78 [1] : vector<64x64xf32> to vector<64xf32>
    %221 = vector.shape_cast %220 : vector<64xf32> to vector<64x1xf32>
    %222 = vector.broadcast %221 : vector<64x1xf32> to vector<64x64xf32>
    %223 = arith.subf %219, %222 : vector<64x64xf32>
    %224 = math.exp %223 : vector<64x64xf32>
    %cst_79 = arith.constant dense<0.000000e+00> : vector<64xf32>
    %225 = vector.multi_reduction <add>, %224, %cst_79 [1] : vector<64x64xf32> to vector<64xf32>
    %226 = vector.shape_cast %225 : vector<64xf32> to vector<64x1xf32>
    %227 = tpu.reciprocal %226 {approx = true} : vector<64x1xf32> -> vector<64x1xf32>
    %228 = vector.broadcast %227 : vector<64x1xf32> to vector<64x64xf32>
    %229 = arith.mulf %224, %228 : vector<64x64xf32>
    %230 = arith.truncf %229 : vector<64x64xf32> to vector<64x64xbf16>
    %cst_80 = arith.constant dense<0.000000e+00> : vector<64x64xf32>
    %231 = tpu.matmul %230, %216, %cst_80 {dimension_numbers = #tpu.dot_dimension_numbers<[1], [0], [0], [1], [0, 0, 1, 1], [], []>} : vector<64x64xbf16>, vector<64x64xbf16>, vector<64x64xf32> -> vector<64x64xf32>
    %232 = arith.truncf %231 : vector<64x64xf32> to vector<64x64xbf16>
    %c64_81 = arith.constant 64 : index
    %c192_82 = arith.constant 192 : index
    %233 = vector.load %arg11[%c64_81, %c192_82] : memref<128x256xbf16, #tpu.memory_space<vmem>>, vector<64x64xbf16>
    tpu.vector_store %arg11[%c64_81, %c192_82], %232 {strides = array<i32>} : memref<128x256xbf16, #tpu.memory_space<vmem>>, vector<64x64xbf16>,
    return
  }
}

</mosaic_0001>

<llo_original>
// kernel: tpu_custom_call.1
$region0: #{tpu_custom_call.1}
  #allocation0 [shape = 'u32[]', space=smem, size = 0x4, offset = 0x4, fixed_abs, tag = 'smem constant byte address 0x4 - core index']
  #allocation1 [shape = 'u32[72,128]{1,0:T(1,128)}', space=vmem, size = 0x9000, scoped, tag = 'internal scratch']
  %s0 = inlined_call_operand.hbm [shape: bf16[128,384], index: 0, kind: input, shape index: {}]
  %s1 = inlined_call_operand.hbm [shape: bf16[128,128], index: 1, kind: input, shape index: {}]
  %s2 = inlined_call_operand.hbm [shape: bf16[384,256], index: 2, kind: input, shape index: {}]
  %s3 = inlined_call_operand.hbm [shape: bf16[128,256], index: 3, kind: input, shape index: {}]
  %s4 = inlined_call_operand.vmem [shape: f32[1,256], index: 4, kind: input, shape index: {}]
  %s5 = inlined_call_operand.vmem [shape: f32[1,256], index: 5, kind: input, shape index: {}]
  %s6 = inlined_call_operand.hbm [shape: f32[64,256], index: 6, kind: input, shape index: {}]
  %s7 = inlined_call_operand.vmem [shape: f32[1,256], index: 7, kind: input, shape index: {}]
  %s8 = inlined_call_operand.hbm [shape: f32[1,256], index: 8, kind: input, shape index: {}]
  %s9 = inlined_call_operand.hbm [shape: bf16[256,512], index: 9, kind: input, shape index: {}]
  %s10 = inlined_call_operand.hbm [shape: bf16[256,256], index: 10, kind: input, shape index: {}]
  %s11 = inlined_call_operand.hbm [shape: bf16[128,256], index: 11, kind: output, shape index: {}]
  %s12 = sld [smem:[#allocation0]]
  $region86: #{tpu_custom_call.1} parent=0
    _
  %s14 = ssub.s32 1, %s12
  %s15 = scalar_select 0, %s14, %s12
  $region1: #{tpu_custom_call.1} parent=0
    #allocation2 [shape = 'u8[98304]{0}', space=vmem, size = 0x18000, scoped, tag = 'input window, operand 0, single buffered']
    #allocation3 [shape = 's32[1]{0}', space=sflag, size = 0x4, scoped, tag = 'scoped memory for tpu_custom_call.1']
    #allocation4 [shape = 's32[1]{0}', space=sflag, size = 0x4, scoped, tag = 'scoped memory for tpu_custom_call.1']
    #allocation5 [shape = 'u8[32768]{0}', space=vmem, size = 0x8000, scoped, tag = 'input window, operand 1, single buffered']
    #allocation6 [shape = 's32[1]{0}', space=sflag, size = 0x4, scoped, tag = 'scoped memory for tpu_custom_call.1']
    #allocation7 [shape = 'u8[196608]{0}', space=vmem, size = 0x30000, scoped, tag = 'input window, operand 2, single buffered']
    #allocation8 [shape = 'u8[65536]{0}', space=vmem, size = 0x10000, scoped, tag = 'input window, operand 3, single buffered']
    #allocation9 [shape = 's32[1]{0}', space=sflag, size = 0x4, scoped, tag = 'scoped memory for tpu_custom_call.1']
    #allocation10 [shape = 'u8[65536]{0}', space=vmem, size = 0x10000, scoped, tag = 'input window, operand 6, single buffered']
    #allocation11 [shape = 'u8[1024]{0}', space=vmem, size = 0x400, scoped, tag = 'input window, operand 8, single buffered']
    #allocation12 [shape = 's32[1]{0}', space=sflag, size = 0x4, scoped, tag = 'scoped memory for tpu_custom_call.1']
    #allocation13 [shape = 'u8[262144]{0}', space=vmem, size = 0x40000, scoped, tag = 'input window, operand 9, single buffered']
    #allocation14 [shape = 'u8[131072]{0}', space=vmem, size = 0x20000, scoped, tag = 'input window, operand 10, single buffered']
    #allocation15 [shape = 's32[1]{0}', space=sflag, size = 0x4, scoped, tag = 'scoped memory for tpu_custom_call.1']
    #allocation16 [shape = 'u8[65536]{0}', space=vmem, size = 0x10000, scoped, tag = 'output window, operand 0, single buffered']
    %16 = vsyncpa [#allocation3], 0
    %17 = vsyncpa [#allocation6], 0
    %18 = vsyncpa [#allocation9], 0
    %19 = vsyncpa [#allocation12], 0
    %20 = vsyncpa [#allocation15], 0
    %21 = vsyncpa [#allocation4], 0
    // Predicated region
    $region2: #{tpu_custom_call.1} parent=1 // pred_check
      _
    $region3: #{tpu_custom_call.1} parent=1 // pred_check_branch
      %23 = sbr.rel (0) target = $region5
    $region4: #{tpu_custom_call.1} parent=1 // pred_region
      %25 = vsyncadd [#allocation3], 0
      %s26 = sshll.u32 %s0, 4
      %s27 = int_to_ptr.hbm [resolvable:$true] %s26
      %s28 = sshll.u32 [#allocation2], 4
      %s29 = int_to_ptr.vmem [resolvable:$true] %s28
      %34 = dma.hbm_to_vmem [thread:$0]  %s27, 3072, %s29, [#allocation3], 192, 192, 12
    $region5: #{tpu_custom_call.1} parent=1 // pred_fallthru
      _
    // Predicated region
    $region6: #{tpu_custom_call.1} parent=1 // pred_check
      _
    $region7: #{tpu_custom_call.1} parent=1 // pred_check_branch
      %36 = sbr.rel (0) target = $region9
    $region8: #{tpu_custom_call.1} parent=1 // pred_region
      %38 = vsyncadd [#allocation6], 0
      %s39 = sshll.u32 %s1, 4
      %s40 = int_to_ptr.hbm [resolvable:$true] %s39
      %s41 = sshll.u32 [#allocation5], 4
      %s42 = int_to_ptr.vmem [resolvable:$true] %s41
      %47 = dma.hbm_to_vmem [thread:$0]  %s40, 1024, %s42, [#allocation6], 64, 64, 4
    $region9: #{tpu_custom_call.1} parent=1 // pred_fallthru
      _
    // Predicated region
    $region10: #{tpu_custom_call.1} parent=1 // pred_check
      _
    $region11: #{tpu_custom_call.1} parent=1 // pred_check_branch
      %49 = sbr.rel (0) target = $region13
    $region12: #{tpu_custom_call.1} parent=1 // pred_region
      %51 = vsyncadd [#allocation6], 0
      %s52 = sshll.u32 %s2, 4
      %s53 = int_to_ptr.hbm [resolvable:$true] %s52
      %s54 = sshll.u32 [#allocation7], 4
      %s55 = int_to_ptr.vmem [resolvable:$true] %s54
      %60 = dma.hbm_to_vmem [thread:$0]  %s53, 6144, %s55, [#allocation6], 128, 128, 8
    $region13: #{tpu_custom_call.1} parent=1 // pred_fallthru
      _
    // Predicated region
    $region14: #{tpu_custom_call.1} parent=1 // pred_check
      _
    $region15: #{tpu_custom_call.1} parent=1 // pred_check_branch
      %62 = sbr.rel (0) target = $region17
    $region16: #{tpu_custom_call.1} parent=1 // pred_region
      %64 = vsyncadd [#allocation9], 0
      %s65 = sshll.u32 %s3, 4
      %s66 = int_to_ptr.hbm [resolvable:$true] %s65
      %s67 = sshll.u32 [#allocation8], 4
      %s68 = int_to_ptr.vmem [resolvable:$true] %s67
      %73 = dma.hbm_to_vmem [thread:$0]  %s66, 2048, %s68, [#allocation9], 128, 128, 8
    $region17: #{tpu_custom_call.1} parent=1 // pred_fallthru
      _
    // Predicated region
    $region18: #{tpu_custom_call.1} parent=1 // pred_check
      _
    $region19: #{tpu_custom_call.1} parent=1 // pred_check_branch
      %75 = sbr.rel (0) target = $region21
    $region20: #{tpu_custom_call.1} parent=1 // pred_region
      _
    $region21: #{tpu_custom_call.1} parent=1 // pred_fallthru
      _
    // Predicated region
    $region22: #{tpu_custom_call.1} parent=1 // pred_check
      _
    $region23: #{tpu_custom_call.1} parent=1 // pred_check_branch
      %77 = sbr.rel (0) target = $region25
    $region24: #{tpu_custom_call.1} parent=1 // pred_region
      _
    $region25: #{tpu_custom_call.1} parent=1 // pred_fallthru
      _
    // Predicated region
    $region26: #{tpu_custom_call.1} parent=1 // pred_check
      _
    $region27: #{tpu_custom_call.1} parent=1 // pred_check_branch
      %79 = sbr.rel (0) target = $region29
    $region28: #{tpu_custom_call.1} parent=1 // pred_region
      %81 = vsyncadd [#allocation9], 0
      %s82 = sshll.u32 %s6, 4
      %s83 = int_to_ptr.hbm [resolvable:$true] %s82
      %s84 = sshll.u32 [#allocation10], 4
      %s85 = int_to_ptr.vmem [resolvable:$true] %s84
      %90 = dma.hbm_to_vmem [thread:$0]  %s83, 2048, %s85, [#allocation9], 256, 256, 16
    $region29: #{tpu_custom_call.1} parent=1 // pred_fallthru
      _
    // Predicated region
    $region30: #{tpu_custom_call.1} parent=1 // pred_check
      _
    $region31: #{tpu_custom_call.1} parent=1 // pred_check_branch
      %92 = sbr.rel (0) target = $region33
    $region32: #{tpu_custom_call.1} parent=1 // pred_region
      _
    $region33: #{tpu_custom_call.1} parent=1 // pred_fallthru
      _
    // Predicated region
    $region34: #{tpu_custom_call.1} parent=1 // pred_check
      _
    $region35: #{tpu_custom_call.1} parent=1 // pred_check_branch
      %94 = sbr.rel (0) target = $region37
    $region36: #{tpu_custom_call.1} parent=1 // pred_region
      %96 = vsyncadd [#allocation12], 0
      %s98 = sshll.u32 %s8, 4
      %s99 = int_to_ptr.hbm [resolvable:$true] %s98
      %s100 = sshll.u32 [#allocation11], 4
      %s101 = int_to_ptr.vmem [resolvable:$true] %s100
      %103 = dma.hbm_to_vmem [thread:$0]  %s99, 32, %s101, [#allocation12]
    $region37: #{tpu_custom_call.1} parent=1 // pred_fallthru
      _
    // Predicated region
    $region38: #{tpu_custom_call.1} parent=1 // pred_check
      _
    $region39: #{tpu_custom_call.1} parent=1 // pred_check_branch
      %105 = sbr.rel (0) target = $region41
    $region40: #{tpu_custom_call.1} parent=1 // pred_region
      %107 = vsyncadd [#allocation12], 0
      %s108 = sshll.u32 %s9, 4
      %s109 = int_to_ptr.hbm [resolvable:$true] %s108
      %s110 = sshll.u32 [#allocation13], 4
      %s111 = int_to_ptr.vmem [resolvable:$true] %s110
      %116 = dma.hbm_to_vmem [thread:$0]  %s109, 8192, %s111, [#allocation12], 256, 256, 16
    $region41: #{tpu_custom_call.1} parent=1 // pred_fallthru
      _
    // Predicated region
    $region42: #{tpu_custom_call.1} parent=1 // pred_check
      _
    $region43: #{tpu_custom_call.1} parent=1 // pred_check_branch
      %118 = sbr.rel (0) target = $region45
    $region44: #{tpu_custom_call.1} parent=1 // pred_region
      %120 = vsyncadd [#allocation15], 0
      %s121 = sshll.u32 %s10, 4
      %s122 = int_to_ptr.hbm [resolvable:$true] %s121
      %s123 = sshll.u32 [#allocation14], 4
      %s124 = int_to_ptr.vmem [resolvable:$true] %s123
      %129 = dma.hbm_to_vmem [thread:$0]  %s122, 4096, %s124, [#allocation15], 128, 128, 8
    $region45: #{tpu_custom_call.1} parent=1 // pred_fallthru
      _
    // Predicated region
    $region46: #{tpu_custom_call.1} parent=1 // pred_check
      _
    $region47: #{tpu_custom_call.1} parent=1 // pred_check_branch
      %131 = sbr.rel (0) target = $region49
    $region48: #{tpu_custom_call.1} parent=1 // pred_region
      %133 = dma.done [#allocation3], 3072
    $region49: #{tpu_custom_call.1} parent=1 // pred_fallthru
      _
    // Predicated region
    $region50: #{tpu_custom_call.1} parent=1 // pred_check
      _
    $region51: #{tpu_custom_call.1} parent=1 // pred_check_branch
      %135 = sbr.rel (0) target = $region53
    $region52: #{tpu_custom_call.1} parent=1 // pred_region
      %137 = dma.done [#allocation6], 1024
    $region53: #{tpu_custom_call.1} parent=1 // pred_fallthru
      _
    // Predicated region
    $region54: #{tpu_custom_call.1} parent=1 // pred_check
      _
    $region55: #{tpu_custom_call.1} parent=1 // pred_check_branch
      %139 = sbr.rel (0) target = $region57
    $region56: #{tpu_custom_call.1} parent=1 // pred_region
      %141 = dma.done [#allocation6], 6144
    $region57: #{tpu_custom_call.1} parent=1 // pred_fallthru
      _
    // Predicated region
    $region58: #{tpu_custom_call.1} parent=1 // pred_check
      _
    $region59: #{tpu_custom_call.1} parent=1 // pred_check_branch
      %143 = sbr.rel (0) target = $region61
    $region60: #{tpu_custom_call.1} parent=1 // pred_region
      %145 = dma.done [#allocation9], 2048
    $region61: #{tpu_custom_call.1} parent=1 // pred_fallthru
      _
    // Predicated region
    $region62: #{tpu_custom_call.1} parent=1 // pred_check
      _
    $region63: #{tpu_custom_call.1} parent=1 // pred_check_branch
      %147 = sbr.rel (0) target = $region65
    $region64: #{tpu_custom_call.1} parent=1 // pred_region
      %149 = dma.done [#allocation9], 2048
    $region65: #{tpu_custom_call.1} parent=1 // pred_fallthru
      _
    // Predicated region
    $region66: #{tpu_custom_call.1} parent=1 // pred_check
      _
    $region67: #{tpu_custom_call.1} parent=1 // pred_check_branch
      %151 = sbr.rel (0) target = $region69
    $region68: #{tpu_custom_call.1} parent=1 // pred_region
      %153 = dma.done [#allocation12], 32
    $region69: #{tpu_custom_call.1} parent=1 // pred_fallthru
      _
    // Predicated region
    $region70: #{tpu_custom_call.1} parent=1 // pred_check
      _
    $region71: #{tpu_custom_call.1} parent=1 // pred_check_branch
      %155 = sbr.rel (0) target = $region73
    $region72: #{tpu_custom_call.1} parent=1 // pred_region
      %157 = dma.done [#allocation12], 8192
    $region73: #{tpu_custom_call.1} parent=1 // pred_fallthru
      _
    // Predicated region
    $region74: #{tpu_custom_call.1} parent=1 // pred_check
      _
    $region75: #{tpu_custom_call.1} parent=1 // pred_check_branch
      %159 = sbr.rel (0) target = $region77
    $region76: #{tpu_custom_call.1} parent=1 // pred_region
      %161 = dma.done [#allocation15], 4096
    $region77: #{tpu_custom_call.1} parent=1 // pred_fallthru
      _
    %v163 = vld [vmem:[#allocation2] sm:$0xff]
    %v164 = vld [vmem:[#allocation2 + $0x8] sm:$0xf]
    %v165 = vld [vmem:[#allocation2 + $0xc] sm:$0xff]
    %v166 = vld [vmem:[#allocation2 + $0x14] sm:$0xf]
    %v167 = vld [vmem:[#allocation2 + $0x18] sm:$0xff]
    %v168 = vld [vmem:[#allocation2 + $0x20] sm:$0xf]
    %v169 = vld [vmem:[#allocation2 + $0x24] sm:$0xff]
    %v170 = vld [vmem:[#allocation2 + $0x2c] sm:$0xf]
    %v171 = vld [vmem:[#allocation2 + $0x30] sm:$0xff]
    %v172 = vld [vmem:[#allocation2 + $0x38] sm:$0xf]
    %v173 = vld [vmem:[#allocation2 + $0x3c] sm:$0xff]
    %v174 = vld [vmem:[#allocation2 + $0x44] sm:$0xf]
    %v175 = vld [vmem:[#allocation2 + $0x48] sm:$0xff]
    %v176 = vld [vmem:[#allocation2 + $0x50] sm:$0xf]
    %v177 = vld [vmem:[#allocation2 + $0x54] sm:$0xff]
    %v178 = vld [vmem:[#allocation2 + $0x5c] sm:$0xf]
    %v179 = vld [vmem:[#allocation2 + $0x60] sm:$0xff]
    %v180 = vld [vmem:[#allocation2 + $0x68] sm:$0xf]
    %v181 = vld [vmem:[#allocation2 + $0x6c] sm:$0xff]
    %v182 = vld [vmem:[#allocation2 + $0x74] sm:$0xf]
    %v183 = vld [vmem:[#allocation2 + $0x78] sm:$0xff]
    %v184 = vld [vmem:[#allocation2 + $0x80] sm:$0xf]
    %v185 = vld [vmem:[#allocation2 + $0x84] sm:$0xff]
    %v186 = vld [vmem:[#allocation2 + $0x8c] sm:$0xf]
    %v187 = vld [vmem:[#allocation2 + $0x90] sm:$0xff]
    %v188 = vld [vmem:[#allocation2 + $0x98] sm:$0xf]
    %v189 = vld [vmem:[#allocation2 + $0x9c] sm:$0xff]
    %v190 = vld [vmem:[#allocation2 + $0xa4] sm:$0xf]
    %v191 = vld [vmem:[#allocation2 + $0xa8] sm:$0xff]
    %v192 = vld [vmem:[#allocation2 + $0xb0] sm:$0xf]
    %v193 = vld [vmem:[#allocation2 + $0xb4] sm:$0xff]
    %v194 = vld [vmem:[#allocation2 + $0xbc] sm:$0xf]
    %v195 = vld [vmem:[#allocation7] sm:$0xff]
    %v196 = vld [vmem:[#allocation7 + $0x8] sm:$0xff]
    %v197 = vld [vmem:[#allocation7 + $0x10] sm:$0xff]
    %v198 = vld [vmem:[#allocation7 + $0x18] sm:$0xff]
    %v199 = vld [vmem:[#allocation7 + $0x20] sm:$0xff]
    %v200 = vld [vmem:[#allocation7 + $0x28] sm:$0xff]
    %v201 = vld [vmem:[#allocation7 + $0x30] sm:$0xff]
    %v202 = vld [vmem:[#allocation7 + $0x38] sm:$0xff]
    %v203 = vld [vmem:[#allocation7 + $0x40] sm:$0xff]
    %v204 = vld [vmem:[#allocation7 + $0x48] sm:$0xff]
    %v205 = vld [vmem:[#allocation7 + $0x50] sm:$0xff]
    %v206 = vld [vmem:[#allocation7 + $0x58] sm:$0xff]
    %v207 = vld [vmem:[#allocation7 + $0x60] sm:$0xff]
    %v208 = vld [vmem:[#allocation7 + $0x68] sm:$0xff]
    %v209 = vld [vmem:[#allocation7 + $0x70] sm:$0xff]
    %v210 = vld [vmem:[#allocation7 + $0x78] sm:$0xff]
    %v211 = vld [vmem:[#allocation7 + $0x80] sm:$0xff]
    %v212 = vld [vmem:[#allocation7 + $0x88] sm:$0xff]
    %v213 = vld [vmem:[#allocation7 + $0x90] sm:$0xff]
    %v214 = vld [vmem:[#allocation7 + $0x98] sm:$0xff]
    %v215 = vld [vmem:[#allocation7 + $0xa0] sm:$0xff]
    %v216 = vld [vmem:[#allocation7 + $0xa8] sm:$0xff]
    %v217 = vld [vmem:[#allocation7 + $0xb0] sm:$0xff]
    %v218 = vld [vmem:[#allocation7 + $0xb8] sm:$0xff]
    %v219 = vld [vmem:[#allocation7 + $0xc0] sm:$0xff]
    %v220 = vld [vmem:[#allocation7 + $0xc8] sm:$0xff]
    %v221 = vld [vmem:[#allocation7 + $0xd0] sm:$0xff]
    %v222 = vld [vmem:[#allocation7 + $0xd8] sm:$0xff]
    %v223 = vld [vmem:[#allocation7 + $0xe0] sm:$0xff]
    %v224 = vld [vmem:[#allocation7 + $0xe8] sm:$0xff]
    %v225 = vld [vmem:[#allocation7 + $0xf0] sm:$0xff]
    %v226 = vld [vmem:[#allocation7 + $0xf8] sm:$0xff]
    %v227 = vld [vmem:[#allocation7 + $0x100] sm:$0xff]
    %v228 = vld [vmem:[#allocation7 + $0x108] sm:$0xff]
    %v229 = vld [vmem:[#allocation7 + $0x110] sm:$0xff]
    %v230 = vld [vmem:[#allocation7 + $0x118] sm:$0xff]
    %v231 = vld [vmem:[#allocation7 + $0x120] sm:$0xff]
    %v232 = vld [vmem:[#allocation7 + $0x128] sm:$0xff]
    %v233 = vld [vmem:[#allocation7 + $0x130] sm:$0xff]
    %v234 = vld [vmem:[#allocation7 + $0x138] sm:$0xff]
    %v235 = vld [vmem:[#allocation7 + $0x140] sm:$0xff]
    %v236 = vld [vmem:[#allocation7 + $0x148] sm:$0xff]
    %v237 = vld [vmem:[#allocation7 + $0x150] sm:$0xff]
    %v238 = vld [vmem:[#allocation7 + $0x158] sm:$0xff]
    %v239 = vld [vmem:[#allocation7 + $0x160] sm:$0xff]
    %v240 = vld [vmem:[#allocation7 + $0x168] sm:$0xff]
    %v241 = vld [vmem:[#allocation7 + $0x170] sm:$0xff]
    %v242 = vld [vmem:[#allocation7 + $0x178] sm:$0xff]
    %v243 = vld [vmem:[#allocation5] sm:$0xf]
    %v244 = vld [vmem:[#allocation5 + $0x4] sm:$0xf]
    %v245 = vld [vmem:[#allocation5 + $0x8] sm:$0xf]
    %v246 = vld [vmem:[#allocation5 + $0xc] sm:$0xf]
    %v247 = vld [vmem:[#allocation5 + $0x10] sm:$0xf]
    %v248 = vld [vmem:[#allocation5 + $0x14] sm:$0xf]
    %v249 = vld [vmem:[#allocation5 + $0x18] sm:$0xf]
    %v250 = vld [vmem:[#allocation5 + $0x1c] sm:$0xf]
    %v251 = vld [vmem:[#allocation5 + $0x20] sm:$0xf]
    %v252 = vld [vmem:[#allocation5 + $0x24] sm:$0xf]
    %v253 = vld [vmem:[#allocation5 + $0x28] sm:$0xf]
    %v254 = vld [vmem:[#allocation5 + $0x2c] sm:$0xf]
    %v255 = vld [vmem:[#allocation5 + $0x30] sm:$0xf]
    %v256 = vld [vmem:[#allocation5 + $0x34] sm:$0xf]
    %v257 = vld [vmem:[#allocation5 + $0x38] sm:$0xf]
    %v258 = vld [vmem:[#allocation5 + $0x3c] sm:$0xf]
    %v259 = vld [vmem:[#allocation8] sm:$0xff]
    %v260 = vld [vmem:[#allocation8 + $0x8] sm:$0xff]
    %v261 = vld [vmem:[#allocation8 + $0x10] sm:$0xff]
    %v262 = vld [vmem:[#allocation8 + $0x18] sm:$0xff]
    %v263 = vld [vmem:[#allocation8 + $0x20] sm:$0xff]
    %v264 = vld [vmem:[#allocation8 + $0x28] sm:$0xff]
    %v265 = vld [vmem:[#allocation8 + $0x30] sm:$0xff]
    %v266 = vld [vmem:[#allocation8 + $0x38] sm:$0xff]
    %v267 = vld [vmem:[#allocation8 + $0x40] sm:$0xff]
    %v268 = vld [vmem:[#allocation8 + $0x48] sm:$0xff]
    %v269 = vld [vmem:[#allocation8 + $0x50] sm:$0xff]
    %v270 = vld [vmem:[#allocation8 + $0x58] sm:$0xff]
    %v271 = vld [vmem:[#allocation8 + $0x60] sm:$0xff]
    %v272 = vld [vmem:[#allocation8 + $0x68] sm:$0xff]
    %v273 = vld [vmem:[#allocation8 + $0x70] sm:$0xff]
    %v274 = vld [vmem:[#allocation8 + $0x78] sm:$0xff]
    %v275 = vld [vmem:[#allocation10] sm:$0xff]
    %v276 = vld [vmem:[#allocation10 + $0x8] sm:$0xff]
    %v277 = vld [vmem:[#allocation10 + $0x10] sm:$0xff]
    %v278 = vld [vmem:[#allocation10 + $0x18] sm:$0xff]
    %v279 = vld [vmem:[#allocation10 + $0x20] sm:$0xff]
    %v280 = vld [vmem:[#allocation10 + $0x28] sm:$0xff]
    %v281 = vld [vmem:[#allocation10 + $0x30] sm:$0xff]
    %v282 = vld [vmem:[#allocation10 + $0x38] sm:$0xff]
    %v283 = vld [vmem:[#allocation10 + $0x40] sm:$0xff]
    %v284 = vld [vmem:[#allocation10 + $0x48] sm:$0xff]
    %v285 = vld [vmem:[#allocation10 + $0x50] sm:$0xff]
    %v286 = vld [vmem:[#allocation10 + $0x58] sm:$0xff]
    %v287 = vld [vmem:[#allocation10 + $0x60] sm:$0xff]
    %v288 = vld [vmem:[#allocation10 + $0x68] sm:$0xff]
    %v289 = vld [vmem:[#allocation10 + $0x70] sm:$0xff]
    %v290 = vld [vmem:[#allocation10 + $0x78] sm:$0xff]
    %v291 = vld [vmem:[%s4] sm:$0x3]
    %v293 = vperm.slane %v291, 0
    %v294 = vperm.slane %v291, 1
    %v329 = vunpack.c.l.b16 %v163
    %v330 = vunpack.c.h.b16 %v163
    %v331 = vunpack.c.l.b16 %v164
    %v332 = vunpack.c.l.b16 %v165
    %v333 = vunpack.c.h.b16 %v165
    %v334 = vunpack.c.l.b16 %v166
    %v335 = vunpack.c.l.b16 %v167
    %v336 = vunpack.c.h.b16 %v167
    %v337 = vunpack.c.l.b16 %v168
    %v338 = vunpack.c.l.b16 %v169
    %v339 = vunpack.c.h.b16 %v169
    %v340 = vunpack.c.l.b16 %v170
    %v341 = vunpack.c.l.b16 %v171
    %v342 = vunpack.c.h.b16 %v171
    %v343 = vunpack.c.l.b16 %v172
    %v344 = vunpack.c.l.b16 %v173
    %v345 = vunpack.c.h.b16 %v173
    %v346 = vunpack.c.l.b16 %v174
    %v347 = vunpack.c.l.b16 %v175
    %v348 = vunpack.c.h.b16 %v175
    %v349 = vunpack.c.l.b16 %v176
    %v350 = vunpack.c.l.b16 %v177
    %v351 = vunpack.c.h.b16 %v177
    %v352 = vunpack.c.l.b16 %v178
    %v353 = vunpack.c.l.b16 %v179
    %v354 = vunpack.c.h.b16 %v179
    %v355 = vunpack.c.l.b16 %v180
    %v356 = vunpack.c.l.b16 %v181
    %v357 = vunpack.c.h.b16 %v181
    %v358 = vunpack.c.l.b16 %v182
    %v359 = vunpack.c.l.b16 %v183
    %v360 = vunpack.c.h.b16 %v183
    %v361 = vunpack.c.l.b16 %v184
    %v362 = vunpack.c.l.b16 %v185
    %v363 = vunpack.c.h.b16 %v185
    %v364 = vunpack.c.l.b16 %v186
    %v365 = vunpack.c.l.b16 %v187
    %v366 = vunpack.c.h.b16 %v187
    %v367 = vunpack.c.l.b16 %v188
    %v368 = vunpack.c.l.b16 %v189
    %v369 = vunpack.c.h.b16 %v189
    %v370 = vunpack.c.l.b16 %v190
    %v371 = vunpack.c.l.b16 %v191
    %v372 = vunpack.c.h.b16 %v191
    %v373 = vunpack.c.l.b16 %v192
    %v374 = vunpack.c.l.b16 %v193
    %v375 = vunpack.c.h.b16 %v193
    %v376 = vunpack.c.l.b16 %v194
    %v377 = vpack.c.b16 %v332, %v329
    %v378 = vpack.c.b16 %v333, %v330
    %v379 = vpack.c.b16 %v334, %v331
    %v380 = vpack.c.b16 %v338, %v335
    %v381 = vpack.c.b16 %v339, %v336
    %v382 = vpack.c.b16 %v340, %v337
    %v383 = vpack.c.b16 %v344, %v341
    %v384 = vpack.c.b16 %v345, %v342
    %v385 = vpack.c.b16 %v346, %v343
    %v386 = vpack.c.b16 %v350, %v347
    %v387 = vpack.c.b16 %v351, %v348
    %v388 = vpack.c.b16 %v352, %v349
    %v389 = vpack.c.b16 %v356, %v353
    %v390 = vpack.c.b16 %v357, %v354
    %v391 = vpack.c.b16 %v358, %v355
    %v392 = vpack.c.b16 %v362, %v359
    %v393 = vpack.c.b16 %v363, %v360
    %v394 = vpack.c.b16 %v364, %v361
    %v395 = vpack.c.b16 %v368, %v365
    %v396 = vpack.c.b16 %v369, %v366
    %v397 = vpack.c.b16 %v370, %v367
    %v398 = vpack.c.b16 %v374, %v371
    %v399 = vpack.c.b16 %v375, %v372
    %v400 = vpack.c.b16 %v376, %v373
    %v473 = vunpack.c.l.b16 %v195
    %v474 = vunpack.c.h.b16 %v195
    %v475 = vunpack.c.l.b16 %v196
    %v476 = vunpack.c.h.b16 %v196
    %v477 = vunpack.c.l.b16 %v197
    %v478 = vunpack.c.h.b16 %v197
    %v479 = vunpack.c.l.b16 %v198
    %v480 = vunpack.c.h.b16 %v198
    %v481 = vunpack.c.l.b16 %v199
    %v482 = vunpack.c.h.b16 %v199
    %v483 = vunpack.c.l.b16 %v200
    %v484 = vunpack.c.h.b16 %v200
    %v485 = vunpack.c.l.b16 %v201
    %v486 = vunpack.c.h.b16 %v201
    %v487 = vunpack.c.l.b16 %v202
    %v488 = vunpack.c.h.b16 %v202
    %v489 = vunpack.c.l.b16 %v203
    %v490 = vunpack.c.h.b16 %v203
    %v491 = vunpack.c.l.b16 %v204
    %v492 = vunpack.c.h.b16 %v204
    %v493 = vunpack.c.l.b16 %v205
    %v494 = vunpack.c.h.b16 %v205
    %v495 = vunpack.c.l.b16 %v206
    %v496 = vunpack.c.h.b16 %v206
    %v497 = vunpack.c.l.b16 %v207
    %v498 = vunpack.c.h.b16 %v207
    %v499 = vunpack.c.l.b16 %v208
    %v500 = vunpack.c.h.b16 %v208
    %v501 = vunpack.c.l.b16 %v209
    %v502 = vunpack.c.h.b16 %v209
    %v503 = vunpack.c.l.b16 %v210
    %v504 = vunpack.c.h.b16 %v210
    %v505 = vunpack.c.l.b16 %v211
    %v506 = vunpack.c.h.b16 %v211
    %v507 = vunpack.c.l.b16 %v212
    %v508 = vunpack.c.h.b16 %v212
    %v509 = vunpack.c.l.b16 %v213
    %v510 = vunpack.c.h.b16 %v213
    %v511 = vunpack.c.l.b16 %v214
    %v512 = vunpack.c.h.b16 %v214
    %v513 = vunpack.c.l.b16 %v215
    %v514 = vunpack.c.h.b16 %v215
    %v515 = vunpack.c.l.b16 %v216
    %v516 = vunpack.c.h.b16 %v216
    %v517 = vunpack.c.l.b16 %v217
    %v518 = vunpack.c.h.b16 %v217
    %v519 = vunpack.c.l.b16 %v218
    %v520 = vunpack.c.h.b16 %v218
    %v521 = vunpack.c.l.b16 %v219
    %v522 = vunpack.c.h.b16 %v219
    %v523 = vunpack.c.l.b16 %v220
    %v524 = vunpack.c.h.b16 %v220
    %v525 = vunpack.c.l.b16 %v221
    %v526 = vunpack.c.h.b16 %v221
    %v527 = vunpack.c.l.b16 %v222
    %v528 = vunpack.c.h.b16 %v222
    %v529 = vunpack.c.l.b16 %v223
    %v530 = vunpack.c.h.b16 %v223
    %v531 = vunpack.c.l.b16 %v224
    %v532 = vunpack.c.h.b16 %v224
    %v533 = vunpack.c.l.b16 %v225
    %v534 = vunpack.c.h.b16 %v225
    %v535 = vunpack.c.l.b16 %v226
    %v536 = vunpack.c.h.b16 %v226
    %v537 = vunpack.c.l.b16 %v227
    %v538 = vunpack.c.h.b16 %v227
    %v539 = vunpack.c.l.b16 %v228
    %v540 = vunpack.c.h.b16 %v228
    %v541 = vunpack.c.l.b16 %v229
    %v542 = vunpack.c.h.b16 %v229
    %v543 = vunpack.c.l.b16 %v230
    %v544 = vunpack.c.h.b16 %v230
    %v545 = vunpack.c.l.b16 %v231
    %v546 = vunpack.c.h.b16 %v231
    %v547 = vunpack.c.l.b16 %v232
    %v548 = vunpack.c.h.b16 %v232
    %v549 = vunpack.c.l.b16 %v233
    %v550 = vunpack.c.h.b16 %v233
    %v551 = vunpack.c.l.b16 %v234
    %v552 = vunpack.c.h.b16 %v234
    %v553 = vunpack.c.l.b16 %v235
    %v554 = vunpack.c.h.b16 %v235
    %v555 = vunpack.c.l.b16 %v236
    %v556 = vunpack.c.h.b16 %v236
    %v557 = vunpack.c.l.b16 %v237
    %v558 = vunpack.c.h.b16 %v237
    %v559 = vunpack.c.l.b16 %v238
    %v560 = vunpack.c.h.b16 %v238
    %v561 = vunpack.c.l.b16 %v239
    %v562 = vunpack.c.h.b16 %v239
    %v563 = vunpack.c.l.b16 %v240
    %v564 = vunpack.c.h.b16 %v240
    %v565 = vunpack.c.l.b16 %v241
    %v566 = vunpack.c.h.b16 %v241
    %v567 = vunpack.c.l.b16 %v242
    %v568 = vunpack.c.h.b16 %v242
    %v569 = vpack.c.b16 %v475, %v473
    %v570 = vpack.c.b16 %v476, %v474
    %v571 = vpack.c.b16 %v479, %v477
    %v572 = vpack.c.b16 %v480, %v478
    %v573 = vpack.c.b16 %v483, %v481
    %v574 = vpack.c.b16 %v484, %v482
    %v575 = vpack.c.b16 %v487, %v485
    %v576 = vpack.c.b16 %v488, %v486
    %v577 = vpack.c.b16 %v491, %v489
    %v578 = vpack.c.b16 %v492, %v490
    %v579 = vpack.c.b16 %v495, %v493
    %v580 = vpack.c.b16 %v496, %v494
    %v581 = vpack.c.b16 %v499, %v497
    %v582 = vpack.c.b16 %v500, %v498
    %v583 = vpack.c.b16 %v503, %v501
    %v584 = vpack.c.b16 %v504, %v502
    %v585 = vpack.c.b16 %v507, %v505
    %v586 = vpack.c.b16 %v508, %v506
    %v587 = vpack.c.b16 %v511, %v509
    %v588 = vpack.c.b16 %v512, %v510
    %v589 = vpack.c.b16 %v515, %v513
    %v590 = vpack.c.b16 %v516, %v514
    %v591 = vpack.c.b16 %v519, %v517
    %v592 = vpack.c.b16 %v520, %v518
    %v593 = vpack.c.b16 %v523, %v521
    %v594 = vpack.c.b16 %v524, %v522
    %v595 = vpack.c.b16 %v527, %v525
    %v596 = vpack.c.b16 %v528, %v526
    %v597 = vpack.c.b16 %v531, %v529
    %v598 = vpack.c.b16 %v532, %v530
    %v599 = vpack.c.b16 %v535, %v533
    %v600 = vpack.c.b16 %v536, %v534
    %v601 = vpack.c.b16 %v539, %v537
    %v602 = vpack.c.b16 %v540, %v538
    %v603 = vpack.c.b16 %v543, %v541
    %v604 = vpack.c.b16 %v544, %v542
    %v605 = vpack.c.b16 %v547, %v545
    %v606 = vpack.c.b16 %v548, %v546
    %v607 = vpack.c.b16 %v551, %v549
    %v608 = vpack.c.b16 %v552, %v550
    %v609 = vpack.c.b16 %v555, %v553
    %v610 = vpack.c.b16 %v556, %v554
    %v611 = vpack.c.b16 %v559, %v557
    %v612 = vpack.c.b16 %v560, %v558
    %v613 = vpack.c.b16 %v563, %v561
    %v614 = vpack.c.b16 %v564, %v562
    %v615 = vpack.c.b16 %v567, %v565
    %v616 = vpack.c.b16 %v568, %v566
    %665 = vmatpush.bf16.msra.mxu0 %v583
    %666 = vmatpush.bf16.msra.mxu0 %v581
    %667 = vmatpush.bf16.msra.mxu0 %v579
    %668 = vmatpush.bf16.msra.mxu0 %v577
    %669 = vmatpush.bf16.msra.mxu0 %v575
    %670 = vmatpush.bf16.msra.mxu0 %v573
    %671 = vmatpush.bf16.msra.mxu0 %v571
    %672 = vmatpush.bf16.msra.mxu0 %v569
    %673 = vmatmul.bf16.gmra.mxu0 %v377
    %v674 = vpop.f32.mrf.mxu0
    %v675 = vadd.f32 %v293, %v674
    %v676 = vpop.f32.mrf.mxu0
    %v677 = vadd.f32 %v293, %v676
    %678 = vmatmul.bf16.gmra.mxu0 %v380
    %v679 = vpop.f32.mrf.mxu0
    %v680 = vadd.f32 %v293, %v679
    %v681 = vpop.f32.mrf.mxu0
    %v682 = vadd.f32 %v293, %v681
    %683 = vmatmul.bf16.gmra.mxu0 %v383
    %v684 = vpop.f32.mrf.mxu0
    %v685 = vadd.f32 %v293, %v684
    %v686 = vpop.f32.mrf.mxu0
    %v687 = vadd.f32 %v293, %v686
    %688 = vmatmul.bf16.gmra.mxu0 %v386
    %v689 = vpop.f32.mrf.mxu0
    %v690 = vadd.f32 %v293, %v689
    %v691 = vpop.f32.mrf.mxu0
    %v692 = vadd.f32 %v293, %v691
    %693 = vmatmul.bf16.gmra.mxu0 %v389
    %v694 = vpop.f32.mrf.mxu0
    %v695 = vadd.f32 %v293, %v694
    %v696 = vpop.f32.mrf.mxu0
    %v697 = vadd.f32 %v293, %v696
    %698 = vmatmul.bf16.gmra.mxu0 %v392
    %v699 = vpop.f32.mrf.mxu0
    %v700 = vadd.f32 %v293, %v699
    %v701 = vpop.f32.mrf.mxu0
    %v702 = vadd.f32 %v293, %v701
    %703 = vmatmul.bf16.gmra.mxu0 %v395
    %v704 = vpop.f32.mrf.mxu0
    %v705 = vadd.f32 %v293, %v704
    %v706 = vpop.f32.mrf.mxu0
    %v707 = vadd.f32 %v293, %v706
    %708 = vmatmul.bf16.gmra.mxu0 %v398
    %v709 = vpop.f32.mrf.mxu0
    %v710 = vadd.f32 %v293, %v709
    %v711 = vpop.f32.mrf.mxu0
    %v712 = vadd.f32 %v293, %v711
    %713 = vdwg.mxu0
    %714 = vmatpush.bf16.msra.mxu0 %v599
    %715 = vmatpush.bf16.msra.mxu0 %v597
    %716 = vmatpush.bf16.msra.mxu0 %v595
    %717 = vmatpush.bf16.msra.mxu0 %v593
    %718 = vmatpush.bf16.msra.mxu0 %v591
    %719 = vmatpush.bf16.msra.mxu0 %v589
    %720 = vmatpush.bf16.msra.mxu0 %v587
    %721 = vmatpush.bf16.msra.mxu0 %v585
    %722 = vmatmul.bf16.gmra.mxu0 %v378
    %v723 = vpop.f32.mrf.mxu0
    %v724 = vadd.f32 %v675, %v723
    %v725 = vpop.f32.mrf.mxu0
    %v726 = vadd.f32 %v677, %v725
    %727 = vmatmul.bf16.gmra.mxu0 %v381
    %v728 = vpop.f32.mrf.mxu0
    %v729 = vadd.f32 %v680, %v728
    %v730 = vpop.f32.mrf.mxu0
    %v731 = vadd.f32 %v682, %v730
    %732 = vmatmul.bf16.gmra.mxu0 %v384
    %v733 = vpop.f32.mrf.mxu0
    %v734 = vadd.f32 %v685, %v733
    %v735 = vpop.f32.mrf.mxu0
    %v736 = vadd.f32 %v687, %v735
    %737 = vmatmul.bf16.gmra.mxu0 %v387
    %v738 = vpop.f32.mrf.mxu0
    %v739 = vadd.f32 %v690, %v738
    %v740 = vpop.f32.mrf.mxu0
    %v741 = vadd.f32 %v692, %v740
    %742 = vmatmul.bf16.gmra.mxu0 %v390
    %v743 = vpop.f32.mrf.mxu0
    %v744 = vadd.f32 %v695, %v743
    %v745 = vpop.f32.mrf.mxu0
    %v746 = vadd.f32 %v697, %v745
    %747 = vmatmul.bf16.gmra.mxu0 %v393
    %v748 = vpop.f32.mrf.mxu0
    %v749 = vadd.f32 %v700, %v748
    %v750 = vpop.f32.mrf.mxu0
    %v751 = vadd.f32 %v702, %v750
    %752 = vmatmul.bf16.gmra.mxu0 %v396
    %v753 = vpop.f32.mrf.mxu0
    %v754 = vadd.f32 %v705, %v753
    %v755 = vpop.f32.mrf.mxu0
    %v756 = vadd.f32 %v707, %v755
    %757 = vmatmul.bf16.gmra.mxu0 %v399
    %v758 = vpop.f32.mrf.mxu0
    %v759 = vadd.f32 %v710, %v758
    %v760 = vpop.f32.mrf.mxu0
    %v761 = vadd.f32 %v712, %v760
    %762 = vdwg.mxu0
    %763 = vmatpush.bf16.msra.mxu0 %v615
    %764 = vmatpush.bf16.msra.mxu0 %v613
    %765 = vmatpush.bf16.msra.mxu0 %v611
    %766 = vmatpush.bf16.msra.mxu0 %v609
    %767 = vmatpush.bf16.msra.mxu0 %v607
    %768 = vmatpush.bf16.msra.mxu0 %v605
    %769 = vmatpush.bf16.msra.mxu0 %v603
    %770 = vmatpush.bf16.msra.mxu0 %v601
    %771 = vmatmul.bf16.gmra.mxu0 %v379
    %v772 = vpop.f32.mrf.mxu0
    %v773 = vadd.f32 %v724, %v772
    %v774 = vpop.f32.mrf.mxu0
    %v775 = vadd.f32 %v726, %v774
    %776 = vmatmul.bf16.gmra.mxu0 %v382
    %v777 = vpop.f32.mrf.mxu0
    %v778 = vadd.f32 %v729, %v777
    %v779 = vpop.f32.mrf.mxu0
    %v780 = vadd.f32 %v731, %v779
    %781 = vmatmul.bf16.gmra.mxu0 %v385
    %v782 = vpop.f32.mrf.mxu0
    %v783 = vadd.f32 %v734, %v782
    %v784 = vpop.f32.mrf.mxu0
    %v785 = vadd.f32 %v736, %v784
    %786 = vmatmul.bf16.gmra.mxu0 %v388
    %v787 = vpop.f32.mrf.mxu0
    %v788 = vadd.f32 %v739, %v787
    %v789 = vpop.f32.mrf.mxu0
    %v790 = vadd.f32 %v741, %v789
    %791 = vmatmul.bf16.gmra.mxu0 %v391
    %v792 = vpop.f32.mrf.mxu0
    %v793 = vadd.f32 %v744, %v792
    %v794 = vpop.f32.mrf.mxu0
    %v795 = vadd.f32 %v746, %v794
    %796 = vmatmul.bf16.gmra.mxu0 %v394
    %v797 = vpop.f32.mrf.mxu0
    %v798 = vadd.f32 %v749, %v797
    %v799 = vpop.f32.mrf.mxu0
    %v800 = vadd.f32 %v751, %v799
    %801 = vmatmul.bf16.gmra.mxu0 %v397
    %v802 = vpop.f32.mrf.mxu0
    %v803 = vadd.f32 %v754, %v802
    %v804 = vpop.f32.mrf.mxu0
    %v805 = vadd.f32 %v756, %v804
    %806 = vmatmul.bf16.gmra.mxu0 %v400
    %v807 = vpop.f32.mrf.mxu0
    %v808 = vadd.f32 %v759, %v807
    %v809 = vpop.f32.mrf.mxu0
    %v810 = vadd.f32 %v761, %v809
    %811 = vdwg.mxu0
    %812 = vmatpush.bf16.msra.mxu0 %v584
    %813 = vmatpush.bf16.msra.mxu0 %v582
    %814 = vmatpush.bf16.msra.mxu0 %v580
    %815 = vmatpush.bf16.msra.mxu0 %v578
    %816 = vmatpush.bf16.msra.mxu0 %v576
    %817 = vmatpush.bf16.msra.mxu0 %v574
    %818 = vmatpush.bf16.msra.mxu0 %v572
    %819 = vmatpush.bf16.msra.mxu0 %v570
    %820 = vmatmul.bf16.gmra.mxu0 %v377
    %v821 = vpop.f32.mrf.mxu0
    %v822 = vadd.f32 %v294, %v821
    %v823 = vpop.f32.mrf.mxu0
    %v824 = vadd.f32 %v294, %v823
    %825 = vmatmul.bf16.gmra.mxu0 %v380
    %v826 = vpop.f32.mrf.mxu0
    %v827 = vadd.f32 %v294, %v826
    %v828 = vpop.f32.mrf.mxu0
    %v829 = vadd.f32 %v294, %v828
    %830 = vmatmul.bf16.gmra.mxu0 %v383
    %v831 = vpop.f32.mrf.mxu0
    %v832 = vadd.f32 %v294, %v831
    %v833 = vpop.f32.mrf.mxu0
    %v834 = vadd.f32 %v294, %v833
    %835 = vmatmul.bf16.gmra.mxu0 %v386
    %v836 = vpop.f32.mrf.mxu0
    %v837 = vadd.f32 %v294, %v836
    %v838 = vpop.f32.mrf.mxu0
    %v839 = vadd.f32 %v294, %v838
    %840 = vmatmul.bf16.gmra.mxu0 %v389
    %v841 = vpop.f32.mrf.mxu0
    %v842 = vadd.f32 %v294, %v841
    %v843 = vpop.f32.mrf.mxu0
    %v844 = vadd.f32 %v294, %v843
    %845 = vmatmul.bf16.gmra.mxu0 %v392
    %v846 = vpop.f32.mrf.mxu0
    %v847 = vadd.f32 %v294, %v846
    %v848 = vpop.f32.mrf.mxu0
    %v849 = vadd.f32 %v294, %v848
    %850 = vmatmul.bf16.gmra.mxu0 %v395
    %v851 = vpop.f32.mrf.mxu0
    %v852 = vadd.f32 %v294, %v851
    %v853 = vpop.f32.mrf.mxu0
    %v854 = vadd.f32 %v294, %v853
    %855 = vmatmul.bf16.gmra.mxu0 %v398
    %v856 = vpop.f32.mrf.mxu0
    %v857 = vadd.f32 %v294, %v856
    %v858 = vpop.f32.mrf.mxu0
    %v859 = vadd.f32 %v294, %v858
    %860 = vdwg.mxu0
    %861 = vmatpush.bf16.msra.mxu0 %v600
    %862 = vmatpush.bf16.msra.mxu0 %v598
    %863 = vmatpush.bf16.msra.mxu0 %v596
    %864 = vmatpush.bf16.msra.mxu0 %v594
    %865 = vmatpush.bf16.msra.mxu0 %v592
    %866 = vmatpush.bf16.msra.mxu0 %v590
    %867 = vmatpush.bf16.msra.mxu0 %v588
    %868 = vmatpush.bf16.msra.mxu0 %v586
    %869 = vmatmul.bf16.gmra.mxu0 %v378
    %v870 = vpop.f32.mrf.mxu0
    %v871 = vadd.f32 %v822, %v870
    %v872 = vpop.f32.mrf.mxu0
    %v873 = vadd.f32 %v824, %v872
    %874 = vmatmul.bf16.gmra.mxu0 %v381
    %v875 = vpop.f32.mrf.mxu0
    %v876 = vadd.f32 %v827, %v875
    %v877 = vpop.f32.mrf.mxu0
    %v878 = vadd.f32 %v829, %v877
    %879 = vmatmul.bf16.gmra.mxu0 %v384
    %v880 = vpop.f32.mrf.mxu0
    %v881 = vadd.f32 %v832, %v880
    %v882 = vpop.f32.mrf.mxu0
    %v883 = vadd.f32 %v834, %v882
    %884 = vmatmul.bf16.gmra.mxu0 %v387
    %v885 = vpop.f32.mrf.mxu0
    %v886 = vadd.f32 %v837, %v885
    %v887 = vpop.f32.mrf.mxu0
    %v888 = vadd.f32 %v839, %v887
    %889 = vmatmul.bf16.gmra.mxu0 %v390
    %v890 = vpop.f32.mrf.mxu0
    %v891 = vadd.f32 %v842, %v890
    %v892 = vpop.f32.mrf.mxu0
    %v893 = vadd.f32 %v844, %v892
    %894 = vmatmul.bf16.gmra.mxu0 %v393
    %v895 = vpop.f32.mrf.mxu0
    %v896 = vadd.f32 %v847, %v895
    %v897 = vpop.f32.mrf.mxu0
    %v898 = vadd.f32 %v849, %v897
    %899 = vmatmul.bf16.gmra.mxu0 %v396
    %v900 = vpop.f32.mrf.mxu0
    %v901 = vadd.f32 %v852, %v900
    %v902 = vpop.f32.mrf.mxu0
    %v903 = vadd.f32 %v854, %v902
    %904 = vmatmul.bf16.gmra.mxu0 %v399
    %v905 = vpop.f32.mrf.mxu0
    %v906 = vadd.f32 %v857, %v905
    %v907 = vpop.f32.mrf.mxu0
    %v908 = vadd.f32 %v859, %v907
    %909 = vdwg.mxu0
    %910 = vmatpush.bf16.msra.mxu0 %v616
    %911 = vmatpush.bf16.msra.mxu0 %v614
    %912 = vmatpush.bf16.msra.mxu0 %v612
    %913 = vmatpush.bf16.msra.mxu0 %v610
    %914 = vmatpush.bf16.msra.mxu0 %v608
    %915 = vmatpush.bf16.msra.mxu0 %v606
    %916 = vmatpush.bf16.msra.mxu0 %v604
    %917 = vmatpush.bf16.msra.mxu0 %v602
    %918 = vmatmul.bf16.gmra.mxu0 %v379
    %v919 = vpop.f32.mrf.mxu0
    %v920 = vadd.f32 %v871, %v919
    %v921 = vpop.f32.mrf.mxu0
    %v922 = vadd.f32 %v873, %v921
    %923 = vmatmul.bf16.gmra.mxu0 %v382
    %v924 = vpop.f32.mrf.mxu0
    %v925 = vadd.f32 %v876, %v924
    %v926 = vpop.f32.mrf.mxu0
    %v927 = vadd.f32 %v878, %v926
    %928 = vmatmul.bf16.gmra.mxu0 %v385
    %v929 = vpop.f32.mrf.mxu0
    %v930 = vadd.f32 %v881, %v929
    %v931 = vpop.f32.mrf.mxu0
    %v932 = vadd.f32 %v883, %v931
    %933 = vmatmul.bf16.gmra.mxu0 %v388
    %v934 = vpop.f32.mrf.mxu0
    %v935 = vadd.f32 %v886, %v934
    %v936 = vpop.f32.mrf.mxu0
    %v937 = vadd.f32 %v888, %v936
    %938 = vmatmul.bf16.gmra.mxu0 %v391
    %v939 = vpop.f32.mrf.mxu0
    %v940 = vadd.f32 %v891, %v939
    %v941 = vpop.f32.mrf.mxu0
    %v942 = vadd.f32 %v893, %v941
    %943 = vmatmul.bf16.gmra.mxu0 %v394
    %v944 = vpop.f32.mrf.mxu0
    %v945 = vadd.f32 %v896, %v944
    %v946 = vpop.f32.mrf.mxu0
    %v947 = vadd.f32 %v898, %v946
    %948 = vmatmul.bf16.gmra.mxu0 %v397
    %v949 = vpop.f32.mrf.mxu0
    %v950 = vadd.f32 %v901, %v949
    %v951 = vpop.f32.mrf.mxu0
    %v952 = vadd.f32 %v903, %v951
    %953 = vmatmul.bf16.gmra.mxu0 %v400
    %v954 = vpop.f32.mrf.mxu0
    %v955 = vadd.f32 %v906, %v954
    %v956 = vpop.f32.mrf.mxu0
    %v957 = vadd.f32 %v908, %v956
    %958 = vdwg.mxu0
    %v959 = vadd.f32 %v773, %v275
    %v960 = vadd.f32 %v920, %v276
    %v961 = vadd.f32 %v775, %v277
    %v962 = vadd.f32 %v922, %v278
    %v963 = vadd.f32 %v778, %v279
    %v964 = vadd.f32 %v925, %v280
    %v965 = vadd.f32 %v780, %v281
    %v966 = vadd.f32 %v927, %v282
    %v967 = vadd.f32 %v783, %v283
    %v968 = vadd.f32 %v930, %v284
    %v969 = vadd.f32 %v785, %v285
    %v970 = vadd.f32 %v932, %v286
    %v971 = vadd.f32 %v788, %v287
    %v972 = vadd.f32 %v935, %v288
    %v973 = vadd.f32 %v790, %v289
    %v974 = vadd.f32 %v937, %v290
    %v975 = vadd.f32 %v793, %v275
    %v976 = vadd.f32 %v940, %v276
    %v977 = vadd.f32 %v795, %v277
    %v978 = vadd.f32 %v942, %v278
    %v979 = vadd.f32 %v798, %v279
    %v980 = vadd.f32 %v945, %v280
    %v981 = vadd.f32 %v800, %v281
    %v982 = vadd.f32 %v947, %v282
    %v983 = vadd.f32 %v803, %v283
    %v984 = vadd.f32 %v950, %v284
    %v985 = vadd.f32 %v805, %v285
    %v986 = vadd.f32 %v952, %v286
    %v987 = vadd.f32 %v808, %v287
    %v988 = vadd.f32 %v955, %v288
    %v989 = vadd.f32 %v810, %v289
    %v990 = vadd.f32 %v957, %v290
    %v991 = vld [vmem:[%s5] sm:$0x3]
    %v993 = vperm.slane %v991, 0
    %v994 = vperm.slane %v991, 1
    %v1013 = vunpack.c.l.b16 %v243
    %v1014 = vunpack.c.l.b16 %v244
    %v1015 = vunpack.c.l.b16 %v245
    %v1016 = vunpack.c.l.b16 %v246
    %v1017 = vunpack.c.l.b16 %v247
    %v1018 = vunpack.c.l.b16 %v248
    %v1019 = vunpack.c.l.b16 %v249
    %v1020 = vunpack.c.l.b16 %v250
    %v1021 = vunpack.c.l.b16 %v251
    %v1022 = vunpack.c.l.b16 %v252
    %v1023 = vunpack.c.l.b16 %v253
    %v1024 = vunpack.c.l.b16 %v254
    %v1025 = vunpack.c.l.b16 %v255
    %v1026 = vunpack.c.l.b16 %v256
    %v1027 = vunpack.c.l.b16 %v257
    %v1028 = vunpack.c.l.b16 %v258
    %v1029 = vpack.c.b16 %v1014, %v1013
    %v1030 = vpack.c.b16 %v1016, %v1015
    %v1031 = vpack.c.b16 %v1018, %v1017
    %v1032 = vpack.c.b16 %v1020, %v1019
    %v1033 = vpack.c.b16 %v1022, %v1021
    %v1034 = vpack.c.b16 %v1024, %v1023
    %v1035 = vpack.c.b16 %v1026, %v1025
    %v1036 = vpack.c.b16 %v1028, %v1027
    %v1061 = vunpack.c.l.b16 %v259
    %v1062 = vunpack.c.h.b16 %v259
    %v1063 = vunpack.c.l.b16 %v260
    %v1064 = vunpack.c.h.b16 %v260
    %v1065 = vunpack.c.l.b16 %v261
    %v1066 = vunpack.c.h.b16 %v261
    %v1067 = vunpack.c.l.b16 %v262
    %v1068 = vunpack.c.h.b16 %v262
    %v1069 = vunpack.c.l.b16 %v263
    %v1070 = vunpack.c.h.b16 %v263
    %v1071 = vunpack.c.l.b16 %v264
    %v1072 = vunpack.c.h.b16 %v264
    %v1073 = vunpack.c.l.b16 %v265
    %v1074 = vunpack.c.h.b16 %v265
    %v1075 = vunpack.c.l.b16 %v266
    %v1076 = vunpack.c.h.b16 %v266
    %v1077 = vunpack.c.l.b16 %v267
    %v1078 = vunpack.c.h.b16 %v267
    %v1079 = vunpack.c.l.b16 %v268
    %v1080 = vunpack.c.h.b16 %v268
    %v1081 = vunpack.c.l.b16 %v269
    %v1082 = vunpack.c.h.b16 %v269
    %v1083 = vunpack.c.l.b16 %v270
    %v1084 = vunpack.c.h.b16 %v270
    %v1085 = vunpack.c.l.b16 %v271
    %v1086 = vunpack.c.h.b16 %v271
    %v1087 = vunpack.c.l.b16 %v272
    %v1088 = vunpack.c.h.b16 %v272
    %v1089 = vunpack.c.l.b16 %v273
    %v1090 = vunpack.c.h.b16 %v273
    %v1091 = vunpack.c.l.b16 %v274
    %v1092 = vunpack.c.h.b16 %v274
    %v1093 = vpack.c.b16 %v1063, %v1061
    %v1094 = vpack.c.b16 %v1064, %v1062
    %v1095 = vpack.c.b16 %v1067, %v1065
    %v1096 = vpack.c.b16 %v1068, %v1066
    %v1097 = vpack.c.b16 %v1071, %v1069
    %v1098 = vpack.c.b16 %v1072, %v1070
    %v1099 = vpack.c.b16 %v1075, %v1073
    %v1100 = vpack.c.b16 %v1076, %v1074
    %v1101 = vpack.c.b16 %v1079, %v1077
    %v1102 = vpack.c.b16 %v1080, %v1078
    %v1103 = vpack.c.b16 %v1083, %v1081
    %v1104 = vpack.c.b16 %v1084, %v1082
    %v1105 = vpack.c.b16 %v1087, %v1085
    %v1106 = vpack.c.b16 %v1088, %v1086
    %v1107 = vpack.c.b16 %v1091, %v1089
    %v1108 = vpack.c.b16 %v1092, %v1090
    %1125 = vmatpush.bf16.msra.mxu0 %v1107
    %1126 = vmatpush.bf16.msra.mxu0 %v1105
    %1127 = vmatpush.bf16.msra.mxu0 %v1103
    %1128 = vmatpush.bf16.msra.mxu0 %v1101
    %1129 = vmatpush.bf16.msra.mxu0 %v1099
    %1130 = vmatpush.bf16.msra.mxu0 %v1097
    %1131 = vmatpush.bf16.msra.mxu0 %v1095
    %1132 = vmatpush.bf16.msra.mxu0 %v1093
    %1133 = vmatmul.bf16.gmra.mxu0 %v1029
    %v1134 = vpop.f32.mrf.mxu0
    %v1135 = vadd.f32 %v993, %v1134
    %v1136 = vpop.f32.mrf.mxu0
    %v1137 = vadd.f32 %v993, %v1136
    %1138 = vmatmul.bf16.gmra.mxu0 %v1030
    %v1139 = vpop.f32.mrf.mxu0
    %v1140 = vadd.f32 %v993, %v1139
    %v1141 = vpop.f32.mrf.mxu0
    %v1142 = vadd.f32 %v993, %v1141
    %1143 = vmatmul.bf16.gmra.mxu0 %v1031
    %v1144 = vpop.f32.mrf.mxu0
    %v1145 = vadd.f32 %v993, %v1144
    %v1146 = vpop.f32.mrf.mxu0
    %v1147 = vadd.f32 %v993, %v1146
    %1148 = vmatmul.bf16.gmra.mxu0 %v1032
    %v1149 = vpop.f32.mrf.mxu0
    %v1150 = vadd.f32 %v993, %v1149
    %v1151 = vpop.f32.mrf.mxu0
    %v1152 = vadd.f32 %v993, %v1151
    %1153 = vmatmul.bf16.gmra.mxu0 %v1033
    %v1154 = vpop.f32.mrf.mxu0
    %v1155 = vadd.f32 %v993, %v1154
    %v1156 = vpop.f32.mrf.mxu0
    %v1157 = vadd.f32 %v993, %v1156
    %1158 = vmatmul.bf16.gmra.mxu0 %v1034
    %v1159 = vpop.f32.mrf.mxu0
    %v1160 = vadd.f32 %v993, %v1159
    %v1161 = vpop.f32.mrf.mxu0
    %v1162 = vadd.f32 %v993, %v1161
    %1163 = vmatmul.bf16.gmra.mxu0 %v1035
    %v1164 = vpop.f32.mrf.mxu0
    %v1165 = vadd.f32 %v993, %v1164
    %v1166 = vpop.f32.mrf.mxu0
    %v1167 = vadd.f32 %v993, %v1166
    %1168 = vmatmul.bf16.gmra.mxu0 %v1036
    %v1169 = vpop.f32.mrf.mxu0
    %v1170 = vadd.f32 %v993, %v1169
    %v1171 = vpop.f32.mrf.mxu0
    %v1172 = vadd.f32 %v993, %v1171
    %1173 = vdwg.mxu0
    %1174 = vmatpush.bf16.msra.mxu0 %v1108
    %1175 = vmatpush.bf16.msra.mxu0 %v1106
    %1176 = vmatpush.bf16.msra.mxu0 %v1104
    %1177 = vmatpush.bf16.msra.mxu0 %v1102
    %1178 = vmatpush.bf16.msra.mxu0 %v1100
    %1179 = vmatpush.bf16.msra.mxu0 %v1098
    %1180 = vmatpush.bf16.msra.mxu0 %v1096
    %1181 = vmatpush.bf16.msra.mxu0 %v1094
    %1182 = vmatmul.bf16.gmra.mxu0 %v1029
    %v1183 = vpop.f32.mrf.mxu0
    %v1184 = vadd.f32 %v994, %v1183
    %v1185 = vpop.f32.mrf.mxu0
    %v1186 = vadd.f32 %v994, %v1185
    %1187 = vmatmul.bf16.gmra.mxu0 %v1030
    %v1188 = vpop.f32.mrf.mxu0
    %v1189 = vadd.f32 %v994, %v1188
    %v1190 = vpop.f32.mrf.mxu0
    %v1191 = vadd.f32 %v994, %v1190
    %1192 = vmatmul.bf16.gmra.mxu0 %v1031
    %v1193 = vpop.f32.mrf.mxu0
    %v1194 = vadd.f32 %v994, %v1193
    %v1195 = vpop.f32.mrf.mxu0
    %v1196 = vadd.f32 %v994, %v1195
    %1197 = vmatmul.bf16.gmra.mxu0 %v1032
    %v1198 = vpop.f32.mrf.mxu0
    %v1199 = vadd.f32 %v994, %v1198
    %v1200 = vpop.f32.mrf.mxu0
    %v1201 = vadd.f32 %v994, %v1200
    %1202 = vmatmul.bf16.gmra.mxu0 %v1033
    %v1203 = vpop.f32.mrf.mxu0
    %v1204 = vadd.f32 %v994, %v1203
    %v1205 = vpop.f32.mrf.mxu0
    %v1206 = vadd.f32 %v994, %v1205
    %1207 = vmatmul.bf16.gmra.mxu0 %v1034
    %v1208 = vpop.f32.mrf.mxu0
    %v1209 = vadd.f32 %v994, %v1208
    %v1210 = vpop.f32.mrf.mxu0
    %v1211 = vadd.f32 %v994, %v1210
    %1212 = vmatmul.bf16.gmra.mxu0 %v1035
    %v1213 = vpop.f32.mrf.mxu0
    %v1214 = vadd.f32 %v994, %v1213
    %v1215 = vpop.f32.mrf.mxu0
    %v1216 = vadd.f32 %v994, %v1215
    %1217 = vmatmul.bf16.gmra.mxu0 %v1036
    %v1218 = vpop.f32.mrf.mxu0
    %v1219 = vadd.f32 %v994, %v1218
    %v1220 = vpop.f32.mrf.mxu0
    %v1221 = vadd.f32 %v994, %v1220
    %1222 = vdwg.mxu0
    %v1223 = vadd.f32 %v1135, %v275
    %v1224 = vadd.f32 %v1184, %v276
    %v1225 = vadd.f32 %v1137, %v277
    %v1226 = vadd.f32 %v1186, %v278
    %v1227 = vadd.f32 %v1140, %v279
    %v1228 = vadd.f32 %v1189, %v280
    %v1229 = vadd.f32 %v1142, %v281
    %v1230 = vadd.f32 %v1191, %v282
    %v1231 = vadd.f32 %v1145, %v283
    %v1232 = vadd.f32 %v1194, %v284
    %v1233 = vadd.f32 %v1147, %v285
    %v1234 = vadd.f32 %v1196, %v286
    %v1235 = vadd.f32 %v1150, %v287
    %v1236 = vadd.f32 %v1199, %v288
    %v1237 = vadd.f32 %v1152, %v289
    %v1238 = vadd.f32 %v1201, %v290
    %v1239 = vadd.f32 %v1155, %v275
    %v1240 = vadd.f32 %v1204, %v276
    %v1241 = vadd.f32 %v1157, %v277
    %v1242 = vadd.f32 %v1206, %v278
    %v1243 = vadd.f32 %v1160, %v279
    %v1244 = vadd.f32 %v1209, %v280
    %v1245 = vadd.f32 %v1162, %v281
    %v1246 = vadd.f32 %v1211, %v282
    %v1247 = vadd.f32 %v1165, %v283
    %v1248 = vadd.f32 %v1214, %v284
    %v1249 = vadd.f32 %v1167, %v285
    %v1250 = vadd.f32 %v1216, %v286
    %v1251 = vadd.f32 %v1170, %v287
    %v1252 = vadd.f32 %v1219, %v288
    %v1253 = vadd.f32 %v1172, %v289
    %v1254 = vadd.f32 %v1221, %v290
    %v1255 = vadd.f32 %v959, %v960
    %1256 = vadd.xlane.f32.xlu0 %v1255
    %v1257 = vpop.xlane.xlu0 %1256
    %v1258 = vadd.f32 %v961, %v962
    %1259 = vadd.xlane.f32.xlu0 %v1258
    %v1260 = vpop.xlane.xlu0 %1259
    %v1261 = vadd.f32 %v963, %v964
    %1262 = vadd.xlane.f32.xlu0 %v1261
    %v1263 = vpop.xlane.xlu0 %1262
    %v1264 = vadd.f32 %v965, %v966
    %1265 = vadd.xlane.f32.xlu0 %v1264
    %v1266 = vpop.xlane.xlu0 %1265
    %v1267 = vadd.f32 %v967, %v968
    %1268 = vadd.xlane.f32.xlu0 %v1267
    %v1269 = vpop.xlane.xlu0 %1268
    %v1270 = vadd.f32 %v969, %v970
    %1271 = vadd.xlane.f32.xlu0 %v1270
    %v1272 = vpop.xlane.xlu0 %1271
    %v1273 = vadd.f32 %v971, %v972
    %1274 = vadd.xlane.f32.xlu0 %v1273
    %v1275 = vpop.xlane.xlu0 %1274
    %v1276 = vadd.f32 %v973, %v974
    %1277 = vadd.xlane.f32.xlu0 %v1276
    %v1278 = vpop.xlane.xlu0 %1277
    %v1279 = vadd.f32 %v975, %v976
    %1280 = vadd.xlane.f32.xlu0 %v1279
    %v1281 = vpop.xlane.xlu0 %1280
    %v1282 = vadd.f32 %v977, %v978
    %1283 = vadd.xlane.f32.xlu0 %v1282
    %v1284 = vpop.xlane.xlu0 %1283
    %v1285 = vadd.f32 %v979, %v980
    %1286 = vadd.xlane.f32.xlu0 %v1285
    %v1287 = vpop.xlane.xlu0 %1286
    %v1288 = vadd.f32 %v981, %v982
    %1289 = vadd.xlane.f32.xlu0 %v1288
    %v1290 = vpop.xlane.xlu0 %1289
    %v1291 = vadd.f32 %v983, %v984
    %1292 = vadd.xlane.f32.xlu0 %v1291
    %v1293 = vpop.xlane.xlu0 %1292
    %v1294 = vadd.f32 %v985, %v986
    %1295 = vadd.xlane.f32.xlu0 %v1294
    %v1296 = vpop.xlane.xlu0 %1295
    %v1297 = vadd.f32 %v987, %v988
    %1298 = vadd.xlane.f32.xlu0 %v1297
    %v1299 = vpop.xlane.xlu0 %1298
    %v1300 = vadd.f32 %v989, %v990
    %1301 = vadd.xlane.f32.xlu0 %v1300
    %v1302 = vpop.xlane.xlu0 %1301
    %v1303 = vrcp.pop 256.0
    %v1304 = vmul.f32 256.0, %v1303
    %v1305 = vsub.f32 1.0, %v1304
    %v1306 = vmul.f32 %v1303, %v1305
    %v1307 = vadd.f32 %v1303, %v1306
    %vm1308 = vweird.f32 %v1303
    %v1309 = vsel %vm1308, %v1303, %v1307
    %v1310 = vmul.f32 %v1257, %v1309
    %v1311 = vmul.f32 %v1260, %v1309
    %v1312 = vmul.f32 %v1263, %v1309
    %v1313 = vmul.f32 %v1266, %v1309
    %v1314 = vmul.f32 %v1269, %v1309
    %v1315 = vmul.f32 %v1272, %v1309
    %v1316 = vmul.f32 %v1275, %v1309
    %v1317 = vmul.f32 %v1278, %v1309
    %v1318 = vmul.f32 %v1281, %v1309
    %v1319 = vmul.f32 %v1284, %v1309
    %v1320 = vmul.f32 %v1287, %v1309
    %v1321 = vmul.f32 %v1290, %v1309
    %v1322 = vmul.f32 %v1293, %v1309
    %v1323 = vmul.f32 %v1296, %v1309
    %v1324 = vmul.f32 %v1299, %v1309
    %v1325 = vmul.f32 %v1302, %v1309
    %v1326 = vsub.f32 %v959, %v1310
    %v1327 = vsub.f32 %v960, %v1310
    %v1328 = vsub.f32 %v961, %v1311
    %v1329 = vsub.f32 %v962, %v1311
    %v1330 = vsub.f32 %v963, %v1312
    %v1331 = vsub.f32 %v964, %v1312
    %v1332 = vsub.f32 %v965, %v1313
    %v1333 = vsub.f32 %v966, %v1313
    %v1334 = vsub.f32 %v967, %v1314
    %v1335 = vsub.f32 %v968, %v1314
    %v1336 = vsub.f32 %v969, %v1315
    %v1337 = vsub.f32 %v970, %v1315
    %v1338 = vsub.f32 %v971, %v1316
    %v1339 = vsub.f32 %v972, %v1316
    %v1340 = vsub.f32 %v973, %v1317
    %v1341 = vsub.f32 %v974, %v1317
    %v1342 = vsub.f32 %v975, %v1318
    %v1343 = vsub.f32 %v976, %v1318
    %v1344 = vsub.f32 %v977, %v1319
    %v1345 = vsub.f32 %v978, %v1319
    %v1346 = vsub.f32 %v979, %v1320
    %v1347 = vsub.f32 %v980, %v1320
    %v1348 = vsub.f32 %v981, %v1321
    %v1349 = vsub.f32 %v982, %v1321
    %v1350 = vsub.f32 %v983, %v1322
    %v1351 = vsub.f32 %v984, %v1322
    %v1352 = vsub.f32 %v985, %v1323
    %v1353 = vsub.f32 %v986, %v1323
    %v1354 = vsub.f32 %v987, %v1324
    %v1355 = vsub.f32 %v988, %v1324
    %v1356 = vsub.f32 %v989, %v1325
    %v1357 = vsub.f32 %v990, %v1325
    %v1358 = vmul.f32 %v1326, %v1326
    %v1359 = vmul.f32 %v1327, %v1327
    %v1360 = vmul.f32 %v1328, %v1328
    %v1361 = vmul.f32 %v1329, %v1329
    %v1362 = vmul.f32 %v1330, %v1330
    %v1363 = vmul.f32 %v1331, %v1331
    %v1364 = vmul.f32 %v1332, %v1332
    %v1365 = vmul.f32 %v1333, %v1333
    %v1366 = vmul.f32 %v1334, %v1334
    %v1367 = vmul.f32 %v1335, %v1335
    %v1368 = vmul.f32 %v1336, %v1336
    %v1369 = vmul.f32 %v1337, %v1337
    %v1370 = vmul.f32 %v1338, %v1338
    %v1371 = vmul.f32 %v1339, %v1339
    %v1372 = vmul.f32 %v1340, %v1340
    %v1373 = vmul.f32 %v1341, %v1341
    %v1374 = vmul.f32 %v1342, %v1342
    %v1375 = vmul.f32 %v1343, %v1343
    %v1376 = vmul.f32 %v1344, %v1344
    %v1377 = vmul.f32 %v1345, %v1345
    %v1378 = vmul.f32 %v1346, %v1346
    %v1379 = vmul.f32 %v1347, %v1347
    %v1380 = vmul.f32 %v1348, %v1348
    %v1381 = vmul.f32 %v1349, %v1349
    %v1382 = vmul.f32 %v1350, %v1350
    %v1383 = vmul.f32 %v1351, %v1351
    %v1384 = vmul.f32 %v1352, %v1352
    %v1385 = vmul.f32 %v1353, %v1353
    %v1386 = vmul.f32 %v1354, %v1354
    %v1387 = vmul.f32 %v1355, %v1355
    %v1388 = vmul.f32 %v1356, %v1356
    %v1389 = vmul.f32 %v1357, %v1357
    %v1390 = vadd.f32 %v1358, %v1359
    %1391 = vadd.xlane.f32.xlu0 %v1390
    %v1392 = vpop.xlane.xlu0 %1391
    %v1393 = vadd.f32 %v1360, %v1361
    %1394 = vadd.xlane.f32.xlu0 %v1393
    %v1395 = vpop.xlane.xlu0 %1394
    %v1396 = vadd.f32 %v1362, %v1363
    %1397 = vadd.xlane.f32.xlu0 %v1396
    %v1398 = vpop.xlane.xlu0 %1397
    %v1399 = vadd.f32 %v1364, %v1365
    %1400 = vadd.xlane.f32.xlu0 %v1399
    %v1401 = vpop.xlane.xlu0 %1400
    %v1402 = vadd.f32 %v1366, %v1367
    %1403 = vadd.xlane.f32.xlu0 %v1402
    %v1404 = vpop.xlane.xlu0 %1403
    %v1405 = vadd.f32 %v1368, %v1369
    %1406 = vadd.xlane.f32.xlu0 %v1405
    %v1407 = vpop.xlane.xlu0 %1406
    %v1408 = vadd.f32 %v1370, %v1371
    %1409 = vadd.xlane.f32.xlu0 %v1408
    %v1410 = vpop.xlane.xlu0 %1409
    %v1411 = vadd.f32 %v1372, %v1373
    %1412 = vadd.xlane.f32.xlu0 %v1411
    %v1413 = vpop.xlane.xlu0 %1412
    %v1414 = vadd.f32 %v1374, %v1375
    %1415 = vadd.xlane.f32.xlu0 %v1414
    %v1416 = vpop.xlane.xlu0 %1415
    %v1417 = vadd.f32 %v1376, %v1377
    %1418 = vadd.xlane.f32.xlu0 %v1417
    %v1419 = vpop.xlane.xlu0 %1418
    %v1420 = vadd.f32 %v1378, %v1379
    %1421 = vadd.xlane.f32.xlu0 %v1420
    %v1422 = vpop.xlane.xlu0 %1421
    %v1423 = vadd.f32 %v1380, %v1381
    %1424 = vadd.xlane.f32.xlu0 %v1423
    %v1425 = vpop.xlane.xlu0 %1424
    %v1426 = vadd.f32 %v1382, %v1383
    %1427 = vadd.xlane.f32.xlu0 %v1426
    %v1428 = vpop.xlane.xlu0 %1427
    %v1429 = vadd.f32 %v1384, %v1385
    %1430 = vadd.xlane.f32.xlu0 %v1429
    %v1431 = vpop.xlane.xlu0 %1430
    %v1432 = vadd.f32 %v1386, %v1387
    %1433 = vadd.xlane.f32.xlu0 %v1432
    %v1434 = vpop.xlane.xlu0 %1433
    %v1435 = vadd.f32 %v1388, %v1389
    %1436 = vadd.xlane.f32.xlu0 %v1435
    %v1437 = vpop.xlane.xlu0 %1436
    %v1438 = vmul.f32 %v1392, %v1309
    %v1439 = vmul.f32 %v1395, %v1309
    %v1440 = vmul.f32 %v1398, %v1309
    %v1441 = vmul.f32 %v1401, %v1309
    %v1442 = vmul.f32 %v1404, %v1309
    %v1443 = vmul.f32 %v1407, %v1309
    %v1444 = vmul.f32 %v1410, %v1309
    %v1445 = vmul.f32 %v1413, %v1309
    %v1446 = vmul.f32 %v1416, %v1309
    %v1447 = vmul.f32 %v1419, %v1309
    %v1448 = vmul.f32 %v1422, %v1309
    %v1449 = vmul.f32 %v1425, %v1309
    %v1450 = vmul.f32 %v1428, %v1309
    %v1451 = vmul.f32 %v1431, %v1309
    %v1452 = vmul.f32 %v1434, %v1309
    %v1453 = vmul.f32 %v1437, %v1309
    %v1454 = vadd.f32 %v1438, 1e-05
    %v1455 = vadd.f32 %v1439, 1e-05
    %v1456 = vadd.f32 %v1440, 1e-05
    %v1457 = vadd.f32 %v1441, 1e-05
    %v1458 = vadd.f32 %v1442, 1e-05
    %v1459 = vadd.f32 %v1443, 1e-05
    %v1460 = vadd.f32 %v1444, 1e-05
    %v1461 = vadd.f32 %v1445, 1e-05
    %v1462 = vadd.f32 %v1446, 1e-05
    %v1463 = vadd.f32 %v1447, 1e-05
    %v1464 = vadd.f32 %v1448, 1e-05
    %v1465 = vadd.f32 %v1449, 1e-05
    %v1466 = vadd.f32 %v1450, 1e-05
    %v1467 = vadd.f32 %v1451, 1e-05
    %v1468 = vadd.f32 %v1452, 1e-05
    %v1469 = vadd.f32 %v1453, 1e-05
    %v1470 = vrsqrt.pop %v1454
    %v1471 = vmul.f32 %v1470, %v1454
    %v1472 = vmul.f32 %v1471, %v1470
    %v1473 = vmul.f32 0.5, %v1472
    %v1474 = vsub.f32 1.5, %v1473
    %v1475 = vmul.f32 %v1470, %v1474
    %vm1476 = vweird.f32 %v1454
    %vm1477 = vweird.f32 %v1470
    %vm1478 = vmor %vm1476, %vm1477
    %v1479 = vsel %vm1478, %v1470, %v1475
    %v1480 = vrsqrt.pop %v1455
    %v1481 = vmul.f32 %v1480, %v1455
    %v1482 = vmul.f32 %v1481, %v1480
    %v1483 = vmul.f32 0.5, %v1482
    %v1484 = vsub.f32 1.5, %v1483
    %v1485 = vmul.f32 %v1480, %v1484
    %vm1486 = vweird.f32 %v1455
    %vm1487 = vweird.f32 %v1480
    %vm1488 = vmor %vm1486, %vm1487
    %v1489 = vsel %vm1488, %v1480, %v1485
    %v1490 = vrsqrt.pop %v1456
    %v1491 = vmul.f32 %v1490, %v1456
    %v1492 = vmul.f32 %v1491, %v1490
    %v1493 = vmul.f32 0.5, %v1492
    %v1494 = vsub.f32 1.5, %v1493
    %v1495 = vmul.f32 %v1490, %v1494
    %vm1496 = vweird.f32 %v1456
    %vm1497 = vweird.f32 %v1490
    %vm1498 = vmor %vm1496, %vm1497
    %v1499 = vsel %vm1498, %v1490, %v1495
    %v1500 = vrsqrt.pop %v1457
    %v1501 = vmul.f32 %v1500, %v1457
    %v1502 = vmul.f32 %v1501, %v1500
    %v1503 = vmul.f32 0.5, %v1502
    %v1504 = vsub.f32 1.5, %v1503
    %v1505 = vmul.f32 %v1500, %v1504
    %vm1506 = vweird.f32 %v1457
    %vm1507 = vweird.f32 %v1500
    %vm1508 = vmor %vm1506, %vm1507
    %v1509 = vsel %vm1508, %v1500, %v1505
    %v1510 = vrsqrt.pop %v1458
    %v1511 = vmul.f32 %v1510, %v1458
    %v1512 = vmul.f32 %v1511, %v1510
    %v1513 = vmul.f32 0.5, %v1512
    %v1514 = vsub.f32 1.5, %v1513
    %v1515 = vmul.f32 %v1510, %v1514
    %vm1516 = vweird.f32 %v1458
    %vm1517 = vweird.f32 %v1510
    %vm1518 = vmor %vm1516, %vm1517
    %v1519 = vsel %vm1518, %v1510, %v1515
    %v1520 = vrsqrt.pop %v1459
    %v1521 = vmul.f32 %v1520, %v1459
    %v1522 = vmul.f32 %v1521, %v1520
    %v1523 = vmul.f32 0.5, %v1522
    %v1524 = vsub.f32 1.5, %v1523
    %v1525 = vmul.f32 %v1520, %v1524
    %vm1526 = vweird.f32 %v1459
    %vm1527 = vweird.f32 %v1520
    %vm1528 = vmor %vm1526, %vm1527
    %v1529 = vsel %vm1528, %v1520, %v1525
    %v1530 = vrsqrt.pop %v1460
    %v1531 = vmul.f32 %v1530, %v1460
    %v1532 = vmul.f32 %v1531, %v1530
    %v1533 = vmul.f32 0.5, %v1532
    %v1534 = vsub.f32 1.5, %v1533
    %v1535 = vmul.f32 %v1530, %v1534
    %vm1536 = vweird.f32 %v1460
    %vm1537 = vweird.f32 %v1530
    %vm1538 = vmor %vm1536, %vm1537
    %v1539 = vsel %vm1538, %v1530, %v1535
    %v1540 = vrsqrt.pop %v1461
    %v1541 = vmul.f32 %v1540, %v1461
    %v1542 = vmul.f32 %v1541, %v1540
    %v1543 = vmul.f32 0.5, %v1542
    %v1544 = vsub.f32 1.5, %v1543
    %v1545 = vmul.f32 %v1540, %v1544
    %vm1546 = vweird.f32 %v1461
    %vm1547 = vweird.f32 %v1540
    %vm1548 = vmor %vm1546, %vm1547
    %v1549 = vsel %vm1548, %v1540, %v1545
    %v1550 = vrsqrt.pop %v1462
    %v1551 = vmul.f32 %v1550, %v1462
    %v1552 = vmul.f32 %v1551, %v1550
    %v1553 = vmul.f32 0.5, %v1552
    %v1554 = vsub.f32 1.5, %v1553
    %v1555 = vmul.f32 %v1550, %v1554
    %vm1556 = vweird.f32 %v1462
    %vm1557 = vweird.f32 %v1550
    %vm1558 = vmor %vm1556, %vm1557
    %v1559 = vsel %vm1558, %v1550, %v1555
    %v1560 = vrsqrt.pop %v1463
    %v1561 = vmul.f32 %v1560, %v1463
    %v1562 = vmul.f32 %v1561, %v1560
    %v1563 = vmul.f32 0.5, %v1562
    %v1564 = vsub.f32 1.5, %v1563
    %v1565 = vmul.f32 %v1560, %v1564
    %vm1566 = vweird.f32 %v1463
    %vm1567 = vweird.f32 %v1560
    %vm1568 = vmor %vm1566, %vm1567
    %v1569 = vsel %vm1568, %v1560, %v1565
    %v1570 = vrsqrt.pop %v1464
    %v1571 = vmul.f32 %v1570, %v1464
    %v1572 = vmul.f32 %v1571, %v1570
    %v1573 = vmul.f32 0.5, %v1572
    %v1574 = vsub.f32 1.5, %v1573
    %v1575 = vmul.f32 %v1570, %v1574
    %vm1576 = vweird.f32 %v1464
    %vm1577 = vweird.f32 %v1570
    %vm1578 = vmor %vm1576, %vm1577
    %v1579 = vsel %vm1578, %v1570, %v1575
    %v1580 = vrsqrt.pop %v1465
    %v1581 = vmul.f32 %v1580, %v1465
    %v1582 = vmul.f32 %v1581, %v1580
    %v1583 = vmul.f32 0.5, %v1582
    %v1584 = vsub.f32 1.5, %v1583
    %v1585 = vmul.f32 %v1580, %v1584
    %vm1586 = vweird.f32 %v1465
    %vm1587 = vweird.f32 %v1580
    %vm1588 = vmor %vm1586, %vm1587
    %v1589 = vsel %vm1588, %v1580, %v1585
    %v1590 = vrsqrt.pop %v1466
    %v1591 = vmul.f32 %v1590, %v1466
    %v1592 = vmul.f32 %v1591, %v1590
    %v1593 = vmul.f32 0.5, %v1592
    %v1594 = vsub.f32 1.5, %v1593
    %v1595 = vmul.f32 %v1590, %v1594
    %vm1596 = vweird.f32 %v1466
    %vm1597 = vweird.f32 %v1590
    %vm1598 = vmor %vm1596, %vm1597
    %v1599 = vsel %vm1598, %v1590, %v1595
    %v1600 = vrsqrt.pop %v1467
    %v1601 = vmul.f32 %v1600, %v1467
    %v1602 = vmul.f32 %v1601, %v1600
    %v1603 = vmul.f32 0.5, %v1602
    %v1604 = vsub.f32 1.5, %v1603
    %v1605 = vmul.f32 %v1600, %v1604
    %vm1606 = vweird.f32 %v1467
    %vm1607 = vweird.f32 %v1600
    %vm1608 = vmor %vm1606, %vm1607
    %v1609 = vsel %vm1608, %v1600, %v1605
    %v1610 = vrsqrt.pop %v1468
    %v1611 = vmul.f32 %v1610, %v1468
    %v1612 = vmul.f32 %v1611, %v1610
    %v1613 = vmul.f32 0.5, %v1612
    %v1614 = vsub.f32 1.5, %v1613
    %v1615 = vmul.f32 %v1610, %v1614
    %vm1616 = vweird.f32 %v1468
    %vm1617 = vweird.f32 %v1610
    %vm1618 = vmor %vm1616, %vm1617
    %v1619 = vsel %vm1618, %v1610, %v1615
    %v1620 = vrsqrt.pop %v1469
    %v1621 = vmul.f32 %v1620, %v1469
    %v1622 = vmul.f32 %v1621, %v1620
    %v1623 = vmul.f32 0.5, %v1622
    %v1624 = vsub.f32 1.5, %v1623
    %v1625 = vmul.f32 %v1620, %v1624
    %vm1626 = vweird.f32 %v1469
    %vm1627 = vweird.f32 %v1620
    %vm1628 = vmor %vm1626, %vm1627
    %v1629 = vsel %vm1628, %v1620, %v1625
    %v1630 = vmul.f32 %v1326, %v1479
    %v1631 = vmul.f32 %v1327, %v1479
    %v1632 = vmul.f32 %v1328, %v1489
    %v1633 = vmul.f32 %v1329, %v1489
    %v1634 = vmul.f32 %v1330, %v1499
    %v1635 = vmul.f32 %v1331, %v1499
    %v1636 = vmul.f32 %v1332, %v1509
    %v1637 = vmul.f32 %v1333, %v1509
    %v1638 = vmul.f32 %v1334, %v1519
    %v1639 = vmul.f32 %v1335, %v1519
    %v1640 = vmul.f32 %v1336, %v1529
    %v1641 = vmul.f32 %v1337, %v1529
    %v1642 = vmul.f32 %v1338, %v1539
    %v1643 = vmul.f32 %v1339, %v1539
    %v1644 = vmul.f32 %v1340, %v1549
    %v1645 = vmul.f32 %v1341, %v1549
    %v1646 = vmul.f32 %v1342, %v1559
    %v1647 = vmul.f32 %v1343, %v1559
    %v1648 = vmul.f32 %v1344, %v1569
    %v1649 = vmul.f32 %v1345, %v1569
    %v1650 = vmul.f32 %v1346, %v1579
    %v1651 = vmul.f32 %v1347, %v1579
    %v1652 = vmul.f32 %v1348, %v1589
    %v1653 = vmul.f32 %v1349, %v1589
    %v1654 = vmul.f32 %v1350, %v1599
    %v1655 = vmul.f32 %v1351, %v1599
    %v1656 = vmul.f32 %v1352, %v1609
    %v1657 = vmul.f32 %v1353, %v1609
    %v1658 = vmul.f32 %v1354, %v1619
    %v1659 = vmul.f32 %v1355, %v1619
    %v1660 = vmul.f32 %v1356, %v1629
    %v1661 = vmul.f32 %v1357, %v1629
    %v1662 = vld [vmem:[%s7] sm:$0x3]
    %v1664 = vperm.slane %v1662, 0
    %v1665 = vperm.slane %v1662, 1
    %v1668 = vmul.f32 %v1630, %v1664
    %v1669 = vmul.f32 %v1631, %v1665
    %v1670 = vmul.f32 %v1632, %v1664
    %v1671 = vmul.f32 %v1633, %v1665
    %v1672 = vmul.f32 %v1634, %v1664
    %v1673 = vmul.f32 %v1635, %v1665
    %v1674 = vmul.f32 %v1636, %v1664
    %v1675 = vmul.f32 %v1637, %v1665
    %v1676 = vmul.f32 %v1638, %v1664
    %v1677 = vmul.f32 %v1639, %v1665
    %v1678 = vmul.f32 %v1640, %v1664
    %v1679 = vmul.f32 %v1641, %v1665
    %v1680 = vmul.f32 %v1642, %v1664
    %v1681 = vmul.f32 %v1643, %v1665
    %v1682 = vmul.f32 %v1644, %v1664
    %v1683 = vmul.f32 %v1645, %v1665
    %v1684 = vmul.f32 %v1646, %v1664
    %v1685 = vmul.f32 %v1647, %v1665
    %v1686 = vmul.f32 %v1648, %v1664
    %v1687 = vmul.f32 %v1649, %v1665
    %v1688 = vmul.f32 %v1650, %v1664
    %v1689 = vmul.f32 %v1651, %v1665
    %v1690 = vmul.f32 %v1652, %v1664
    %v1691 = vmul.f32 %v1653, %v1665
    %v1692 = vmul.f32 %v1654, %v1664
    %v1693 = vmul.f32 %v1655, %v1665
    %v1694 = vmul.f32 %v1656, %v1664
    %v1695 = vmul.f32 %v1657, %v1665
    %v1696 = vmul.f32 %v1658, %v1664
    %v1697 = vmul.f32 %v1659, %v1665
    %v1698 = vmul.f32 %v1660, %v1664
    %v1699 = vmul.f32 %v1661, %v1665
    %v1700 = vld [vmem:[#allocation11] sm:$0x3]
    %v1702 = vperm.slane %v1700, 0
    %v1703 = vperm.slane %v1700, 1
    %v1706 = vadd.f32 %v1668, %v1702
    %v1707 = vadd.f32 %v1669, %v1703
    %v1708 = vadd.f32 %v1670, %v1702
    %v1709 = vadd.f32 %v1671, %v1703
    %v1710 = vadd.f32 %v1672, %v1702
    %v1711 = vadd.f32 %v1673, %v1703
    %v1712 = vadd.f32 %v1674, %v1702
    %v1713 = vadd.f32 %v1675, %v1703
    %v1714 = vadd.f32 %v1676, %v1702
    %v1715 = vadd.f32 %v1677, %v1703
    %v1716 = vadd.f32 %v1678, %v1702
    %v1717 = vadd.f32 %v1679, %v1703
    %v1718 = vadd.f32 %v1680, %v1702
    %v1719 = vadd.f32 %v1681, %v1703
    %v1720 = vadd.f32 %v1682, %v1702
    %v1721 = vadd.f32 %v1683, %v1703
    %v1722 = vadd.f32 %v1684, %v1702
    %v1723 = vadd.f32 %v1685, %v1703
    %v1724 = vadd.f32 %v1686, %v1702
    %v1725 = vadd.f32 %v1687, %v1703
    %v1726 = vadd.f32 %v1688, %v1702
    %v1727 = vadd.f32 %v1689, %v1703
    %v1728 = vadd.f32 %v1690, %v1702
    %v1729 = vadd.f32 %v1691, %v1703
    %v1730 = vadd.f32 %v1692, %v1702
    %v1731 = vadd.f32 %v1693, %v1703
    %v1732 = vadd.f32 %v1694, %v1702
    %v1733 = vadd.f32 %v1695, %v1703
    %v1734 = vadd.f32 %v1696, %v1702
    %v1735 = vadd.f32 %v1697, %v1703
    %v1736 = vadd.f32 %v1698, %v1702
    %v1737 = vadd.f32 %v1699, %v1703
    %v1738 = vpack.c.bf16 %v1708, %v1706
    %v1739 = vpack.c.bf16 %v1709, %v1707
    %v1740 = vpack.c.bf16 %v1712, %v1710
    %v1741 = vpack.c.bf16 %v1713, %v1711
    %v1742 = vpack.c.bf16 %v1716, %v1714
    %v1743 = vpack.c.bf16 %v1717, %v1715
    %v1744 = vpack.c.bf16 %v1720, %v1718
    %v1745 = vpack.c.bf16 %v1721, %v1719
    %v1746 = vpack.c.bf16 %v1724, %v1722
    %v1747 = vpack.c.bf16 %v1725, %v1723
    %v1748 = vpack.c.bf16 %v1728, %v1726
    %v1749 = vpack.c.bf16 %v1729, %v1727
    %v1750 = vpack.c.bf16 %v1732, %v1730
    %v1751 = vpack.c.bf16 %v1733, %v1731
    %v1752 = vpack.c.bf16 %v1736, %v1734
    %v1753 = vpack.c.bf16 %v1737, %v1735
    %v1754 = vadd.f32 %v1223, %v1224
    %1755 = vadd.xlane.f32.xlu0 %v1754
    %v1756 = vpop.xlane.xlu0 %1755
    %v1757 = vadd.f32 %v1225, %v1226
    %1758 = vadd.xlane.f32.xlu0 %v1757
    %v1759 = vpop.xlane.xlu0 %1758
    %v1760 = vadd.f32 %v1227, %v1228
    %1761 = vadd.xlane.f32.xlu0 %v1760
    %v1762 = vpop.xlane.xlu0 %1761
    %v1763 = vadd.f32 %v1229, %v1230
    %1764 = vadd.xlane.f32.xlu0 %v1763
    %v1765 = vpop.xlane.xlu0 %1764
    %v1766 = vadd.f32 %v1231, %v1232
    %1767 = vadd.xlane.f32.xlu0 %v1766
    %v1768 = vpop.xlane.xlu0 %1767
    %v1769 = vadd.f32 %v1233, %v1234
    %1770 = vadd.xlane.f32.xlu0 %v1769
    %v1771 = vpop.xlane.xlu0 %1770
    %v1772 = vadd.f32 %v1235, %v1236
    %1773 = vadd.xlane.f32.xlu0 %v1772
    %v1774 = vpop.xlane.xlu0 %1773
    %v1775 = vadd.f32 %v1237, %v1238
    %1776 = vadd.xlane.f32.xlu0 %v1775
    %v1777 = vpop.xlane.xlu0 %1776
    %v1778 = vadd.f32 %v1239, %v1240
    %1779 = vadd.xlane.f32.xlu0 %v1778
    %v1780 = vpop.xlane.xlu0 %1779
    %v1781 = vadd.f32 %v1241, %v1242
    %1782 = vadd.xlane.f32.xlu0 %v1781
    %v1783 = vpop.xlane.xlu0 %1782
    %v1784 = vadd.f32 %v1243, %v1244
    %1785 = vadd.xlane.f32.xlu0 %v1784
    %v1786 = vpop.xlane.xlu0 %1785
    %v1787 = vadd.f32 %v1245, %v1246
    %1788 = vadd.xlane.f32.xlu0 %v1787
    %v1789 = vpop.xlane.xlu0 %1788
    %v1790 = vadd.f32 %v1247, %v1248
    %1791 = vadd.xlane.f32.xlu0 %v1790
    %v1792 = vpop.xlane.xlu0 %1791
    %v1793 = vadd.f32 %v1249, %v1250
    %1794 = vadd.xlane.f32.xlu0 %v1793
    %v1795 = vpop.xlane.xlu0 %1794
    %v1796 = vadd.f32 %v1251, %v1252
    %1797 = vadd.xlane.f32.xlu0 %v1796
    %v1798 = vpop.xlane.xlu0 %1797
    %v1799 = vadd.f32 %v1253, %v1254
    %1800 = vadd.xlane.f32.xlu0 %v1799
    %v1801 = vpop.xlane.xlu0 %1800
    %v1802 = vmul.f32 %v1756, %v1309
    %v1803 = vmul.f32 %v1759, %v1309
    %v1804 = vmul.f32 %v1762, %v1309
    %v1805 = vmul.f32 %v1765, %v1309
    %v1806 = vmul.f32 %v1768, %v1309
    %v1807 = vmul.f32 %v1771, %v1309
    %v1808 = vmul.f32 %v1774, %v1309
    %v1809 = vmul.f32 %v1777, %v1309
    %v1810 = vmul.f32 %v1780, %v1309
    %v1811 = vmul.f32 %v1783, %v1309
    %v1812 = vmul.f32 %v1786, %v1309
    %v1813 = vmul.f32 %v1789, %v1309
    %v1814 = vmul.f32 %v1792, %v1309
    %v1815 = vmul.f32 %v1795, %v1309
    %v1816 = vmul.f32 %v1798, %v1309
    %v1817 = vmul.f32 %v1801, %v1309
    %v1818 = vsub.f32 %v1223, %v1802
    %v1819 = vsub.f32 %v1224, %v1802
    %v1820 = vsub.f32 %v1225, %v1803
    %v1821 = vsub.f32 %v1226, %v1803
    %v1822 = vsub.f32 %v1227, %v1804
    %v1823 = vsub.f32 %v1228, %v1804
    %v1824 = vsub.f32 %v1229, %v1805
    %v1825 = vsub.f32 %v1230, %v1805
    %v1826 = vsub.f32 %v1231, %v1806
    %v1827 = vsub.f32 %v1232, %v1806
    %v1828 = vsub.f32 %v1233, %v1807
    %v1829 = vsub.f32 %v1234, %v1807
    %v1830 = vsub.f32 %v1235, %v1808
    %v1831 = vsub.f32 %v1236, %v1808
    %v1832 = vsub.f32 %v1237, %v1809
    %v1833 = vsub.f32 %v1238, %v1809
    %v1834 = vsub.f32 %v1239, %v1810
    %v1835 = vsub.f32 %v1240, %v1810
    %v1836 = vsub.f32 %v1241, %v1811
    %v1837 = vsub.f32 %v1242, %v1811
    %v1838 = vsub.f32 %v1243, %v1812
    %v1839 = vsub.f32 %v1244, %v1812
    %v1840 = vsub.f32 %v1245, %v1813
    %v1841 = vsub.f32 %v1246, %v1813
    %v1842 = vsub.f32 %v1247, %v1814
    %v1843 = vsub.f32 %v1248, %v1814
    %v1844 = vsub.f32 %v1249, %v1815
    %v1845 = vsub.f32 %v1250, %v1815
    %v1846 = vsub.f32 %v1251, %v1816
    %v1847 = vsub.f32 %v1252, %v1816
    %v1848 = vsub.f32 %v1253, %v1817
    %v1849 = vsub.f32 %v1254, %v1817
    %v1850 = vmul.f32 %v1818, %v1818
    %v1851 = vmul.f32 %v1819, %v1819
    %v1852 = vmul.f32 %v1820, %v1820
    %v1853 = vmul.f32 %v1821, %v1821
    %v1854 = vmul.f32 %v1822, %v1822
    %v1855 = vmul.f32 %v1823, %v1823
    %v1856 = vmul.f32 %v1824, %v1824
    %v1857 = vmul.f32 %v1825, %v1825
    %v1858 = vmul.f32 %v1826, %v1826
    %v1859 = vmul.f32 %v1827, %v1827
    %v1860 = vmul.f32 %v1828, %v1828
    %v1861 = vmul.f32 %v1829, %v1829
    %v1862 = vmul.f32 %v1830, %v1830
    %v1863 = vmul.f32 %v1831, %v1831
    %v1864 = vmul.f32 %v1832, %v1832
    %v1865 = vmul.f32 %v1833, %v1833
    %v1866 = vmul.f32 %v1834, %v1834
    %v1867 = vmul.f32 %v1835, %v1835
    %v1868 = vmul.f32 %v1836, %v1836
    %v1869 = vmul.f32 %v1837, %v1837
    %v1870 = vmul.f32 %v1838, %v1838
    %v1871 = vmul.f32 %v1839, %v1839
    %v1872 = vmul.f32 %v1840, %v1840
    %v1873 = vmul.f32 %v1841, %v1841
    %v1874 = vmul.f32 %v1842, %v1842
    %v1875 = vmul.f32 %v1843, %v1843
    %v1876 = vmul.f32 %v1844, %v1844
    %v1877 = vmul.f32 %v1845, %v1845
    %v1878 = vmul.f32 %v1846, %v1846
    %v1879 = vmul.f32 %v1847, %v1847
    %v1880 = vmul.f32 %v1848, %v1848
    %v1881 = vmul.f32 %v1849, %v1849
    %v1882 = vadd.f32 %v1850, %v1851
    %1883 = vadd.xlane.f32.xlu0 %v1882
    %v1884 = vpop.xlane.xlu0 %1883
    %v1885 = vadd.f32 %v1852, %v1853
    %1886 = vadd.xlane.f32.xlu0 %v1885
    %v1887 = vpop.xlane.xlu0 %1886
    %v1888 = vadd.f32 %v1854, %v1855
    %1889 = vadd.xlane.f32.xlu0 %v1888
    %v1890 = vpop.xlane.xlu0 %1889
    %v1891 = vadd.f32 %v1856, %v1857
    %1892 = vadd.xlane.f32.xlu0 %v1891
    %v1893 = vpop.xlane.xlu0 %1892
    %v1894 = vadd.f32 %v1858, %v1859
    %1895 = vadd.xlane.f32.xlu0 %v1894
    %v1896 = vpop.xlane.xlu0 %1895
    %v1897 = vadd.f32 %v1860, %v1861
    %1898 = vadd.xlane.f32.xlu0 %v1897
    %v1899 = vpop.xlane.xlu0 %1898
    %v1900 = vadd.f32 %v1862, %v1863
    %1901 = vadd.xlane.f32.xlu0 %v1900
    %v1902 = vpop.xlane.xlu0 %1901
    %v1903 = vadd.f32 %v1864, %v1865
    %1904 = vadd.xlane.f32.xlu0 %v1903
    %v1905 = vpop.xlane.xlu0 %1904
    %v1906 = vadd.f32 %v1866, %v1867
    %1907 = vadd.xlane.f32.xlu0 %v1906
    %v1908 = vpop.xlane.xlu0 %1907
    %v1909 = vadd.f32 %v1868, %v1869
    %1910 = vadd.xlane.f32.xlu0 %v1909
    %v1911 = vpop.xlane.xlu0 %1910
    %v1912 = vadd.f32 %v1870, %v1871
    %1913 = vadd.xlane.f32.xlu0 %v1912
    %v1914 = vpop.xlane.xlu0 %1913
    %v1915 = vadd.f32 %v1872, %v1873
    %1916 = vadd.xlane.f32.xlu0 %v1915
    %v1917 = vpop.xlane.xlu0 %1916
    %v1918 = vadd.f32 %v1874, %v1875
    %1919 = vadd.xlane.f32.xlu0 %v1918
    %v1920 = vpop.xlane.xlu0 %1919
    %v1921 = vadd.f32 %v1876, %v1877
    %1922 = vadd.xlane.f32.xlu0 %v1921
    %v1923 = vpop.xlane.xlu0 %1922
    %v1924 = vadd.f32 %v1878, %v1879
    %1925 = vadd.xlane.f32.xlu0 %v1924
    %v1926 = vpop.xlane.xlu0 %1925
    %v1927 = vadd.f32 %v1880, %v1881
    %1928 = vadd.xlane.f32.xlu0 %v1927
    %v1929 = vpop.xlane.xlu0 %1928
    %v1930 = vmul.f32 %v1884, %v1309
    %v1931 = vmul.f32 %v1887, %v1309
    %v1932 = vmul.f32 %v1890, %v1309
    %v1933 = vmul.f32 %v1893, %v1309
    %v1934 = vmul.f32 %v1896, %v1309
    %v1935 = vmul.f32 %v1899, %v1309
    %v1936 = vmul.f32 %v1902, %v1309
    %v1937 = vmul.f32 %v1905, %v1309
    %v1938 = vmul.f32 %v1908, %v1309
    %v1939 = vmul.f32 %v1911, %v1309
    %v1940 = vmul.f32 %v1914, %v1309
    %v1941 = vmul.f32 %v1917, %v1309
    %v1942 = vmul.f32 %v1920, %v1309
    %v1943 = vmul.f32 %v1923, %v1309
    %v1944 = vmul.f32 %v1926, %v1309
    %v1945 = vmul.f32 %v1929, %v1309
    %v1946 = vadd.f32 %v1930, 1e-05
    %v1947 = vadd.f32 %v1931, 1e-05
    %v1948 = vadd.f32 %v1932, 1e-05
    %v1949 = vadd.f32 %v1933, 1e-05
    %v1950 = vadd.f32 %v1934, 1e-05
    %v1951 = vadd.f32 %v1935, 1e-05
    %v1952 = vadd.f32 %v1936, 1e-05
    %v1953 = vadd.f32 %v1937, 1e-05
    %v1954 = vadd.f32 %v1938, 1e-05
    %v1955 = vadd.f32 %v1939, 1e-05
    %v1956 = vadd.f32 %v1940, 1e-05
    %v1957 = vadd.f32 %v1941, 1e-05
    %v1958 = vadd.f32 %v1942, 1e-05
    %v1959 = vadd.f32 %v1943, 1e-05
    %v1960 = vadd.f32 %v1944, 1e-05
    %v1961 = vadd.f32 %v1945, 1e-05
    %v1962 = vrsqrt.pop %v1946
    %v1963 = vmul.f32 %v1962, %v1946
    %v1964 = vmul.f32 %v1963, %v1962
    %v1965 = vmul.f32 0.5, %v1964
    %v1966 = vsub.f32 1.5, %v1965
    %v1967 = vmul.f32 %v1962, %v1966
    %vm1968 = vweird.f32 %v1946
    %vm1969 = vweird.f32 %v1962
    %vm1970 = vmor %vm1968, %vm1969
    %v1971 = vsel %vm1970, %v1962, %v1967
    %v1972 = vrsqrt.pop %v1947
    %v1973 = vmul.f32 %v1972, %v1947
    %v1974 = vmul.f32 %v1973, %v1972
    %v1975 = vmul.f32 0.5, %v1974
    %v1976 = vsub.f32 1.5, %v1975
    %v1977 = vmul.f32 %v1972, %v1976
    %vm1978 = vweird.f32 %v1947
    %vm1979 = vweird.f32 %v1972
    %vm1980 = vmor %vm1978, %vm1979
    %v1981 = vsel %vm1980, %v1972, %v1977
    %v1982 = vrsqrt.pop %v1948
    %v1983 = vmul.f32 %v1982, %v1948
    %v1984 = vmul.f32 %v1983, %v1982
    %v1985 = vmul.f32 0.5, %v1984
    %v1986 = vsub.f32 1.5, %v1985
    %v1987 = vmul.f32 %v1982, %v1986
    %vm1988 = vweird.f32 %v1948
    %vm1989 = vweird.f32 %v1982
    %vm1990 = vmor %vm1988, %vm1989
    %v1991 = vsel %vm1990, %v1982, %v1987
    %v1992 = vrsqrt.pop %v1949
    %v1993 = vmul.f32 %v1992, %v1949
    %v1994 = vmul.f32 %v1993, %v1992
    %v1995 = vmul.f32 0.5, %v1994
    %v1996 = vsub.f32 1.5, %v1995
    %v1997 = vmul.f32 %v1992, %v1996
    %vm1998 = vweird.f32 %v1949
    %vm1999 = vweird.f32 %v1992
    %vm2000 = vmor %vm1998, %vm1999
    %v2001 = vsel %vm2000, %v1992, %v1997
    %v2002 = vrsqrt.pop %v1950
    %v2003 = vmul.f32 %v2002, %v1950
    %v2004 = vmul.f32 %v2003, %v2002
    %v2005 = vmul.f32 0.5, %v2004
    %v2006 = vsub.f32 1.5, %v2005
    %v2007 = vmul.f32 %v2002, %v2006
    %vm2008 = vweird.f32 %v1950
    %vm2009 = vweird.f32 %v2002
    %vm2010 = vmor %vm2008, %vm2009
    %v2011 = vsel %vm2010, %v2002, %v2007
    %v2012 = vrsqrt.pop %v1951
    %v2013 = vmul.f32 %v2012, %v1951
    %v2014 = vmul.f32 %v2013, %v2012
    %v2015 = vmul.f32 0.5, %v2014
    %v2016 = vsub.f32 1.5, %v2015
    %v2017 = vmul.f32 %v2012, %v2016
    %vm2018 = vweird.f32 %v1951
    %vm2019 = vweird.f32 %v2012
    %vm2020 = vmor %vm2018, %vm2019
    %v2021 = vsel %vm2020, %v2012, %v2017
    %v2022 = vrsqrt.pop %v1952
    %v2023 = vmul.f32 %v2022, %v1952
    %v2024 = vmul.f32 %v2023, %v2022
    %v2025 = vmul.f32 0.5, %v2024
    %v2026 = vsub.f32 1.5, %v2025
    %v2027 = vmul.f32 %v2022, %v2026
    %vm2028 = vweird.f32 %v1952
    %vm2029 = vweird.f32 %v2022
    %vm2030 = vmor %vm2028, %vm2029
    %v2031 = vsel %vm2030, %v2022, %v2027
    %v2032 = vrsqrt.pop %v1953
    %v2033 = vmul.f32 %v2032, %v1953
    %v2034 = vmul.f32 %v2033, %v2032
    %v2035 = vmul.f32 0.5, %v2034
    %v2036 = vsub.f32 1.5, %v2035
    %v2037 = vmul.f32 %v2032, %v2036
    %vm2038 = vweird.f32 %v1953
    %vm2039 = vweird.f32 %v2032
    %vm2040 = vmor %vm2038, %vm2039
    %v2041 = vsel %vm2040, %v2032, %v2037
    %v2042 = vrsqrt.pop %v1954
    %v2043 = vmul.f32 %v2042, %v1954
    %v2044 = vmul.f32 %v2043, %v2042
    %v2045 = vmul.f32 0.5, %v2044
    %v2046 = vsub.f32 1.5, %v2045
    %v2047 = vmul.f32 %v2042, %v2046
    %vm2048 = vweird.f32 %v1954
    %vm2049 = vweird.f32 %v2042
    %vm2050 = vmor %vm2048, %vm2049
    %v2051 = vsel %vm2050, %v2042, %v2047
    %v2052 = vrsqrt.pop %v1955
    %v2053 = vmul.f32 %v2052, %v1955
    %v2054 = vmul.f32 %v2053, %v2052
    %v2055 = vmul.f32 0.5, %v2054
    %v2056 = vsub.f32 1.5, %v2055
    %v2057 = vmul.f32 %v2052, %v2056
    %vm2058 = vweird.f32 %v1955
    %vm2059 = vweird.f32 %v2052
    %vm2060 = vmor %vm2058, %vm2059
    %v2061 = vsel %vm2060, %v2052, %v2057
    %v2062 = vrsqrt.pop %v1956
    %v2063 = vmul.f32 %v2062, %v1956
    %v2064 = vmul.f32 %v2063, %v2062
    %v2065 = vmul.f32 0.5, %v2064
    %v2066 = vsub.f32 1.5, %v2065
    %v2067 = vmul.f32 %v2062, %v2066
    %vm2068 = vweird.f32 %v1956
    %vm2069 = vweird.f32 %v2062
    %vm2070 = vmor %vm2068, %vm2069
    %v2071 = vsel %vm2070, %v2062, %v2067
    %v2072 = vrsqrt.pop %v1957
    %v2073 = vmul.f32 %v2072, %v1957
    %v2074 = vmul.f32 %v2073, %v2072
    %v2075 = vmul.f32 0.5, %v2074
    %v2076 = vsub.f32 1.5, %v2075
    %v2077 = vmul.f32 %v2072, %v2076
    %vm2078 = vweird.f32 %v1957
    %vm2079 = vweird.f32 %v2072
    %vm2080 = vmor %vm2078, %vm2079
    %v2081 = vsel %vm2080, %v2072, %v2077
    %v2082 = vrsqrt.pop %v1958
    %v2083 = vmul.f32 %v2082, %v1958
    %v2084 = vmul.f32 %v2083, %v2082
    %v2085 = vmul.f32 0.5, %v2084
    %v2086 = vsub.f32 1.5, %v2085
    %v2087 = vmul.f32 %v2082, %v2086
    %vm2088 = vweird.f32 %v1958
    %vm2089 = vweird.f32 %v2082
    %vm2090 = vmor %vm2088, %vm2089
    %v2091 = vsel %vm2090, %v2082, %v2087
    %v2092 = vrsqrt.pop %v1959
    %v2093 = vmul.f32 %v2092, %v1959
    %v2094 = vmul.f32 %v2093, %v2092
    %v2095 = vmul.f32 0.5, %v2094
    %v2096 = vsub.f32 1.5, %v2095
    %v2097 = vmul.f32 %v2092, %v2096
    %vm2098 = vweird.f32 %v1959
    %vm2099 = vweird.f32 %v2092
    %vm2100 = vmor %vm2098, %vm2099
    %v2101 = vsel %vm2100, %v2092, %v2097
    %v2102 = vrsqrt.pop %v1960
    %v2103 = vmul.f32 %v2102, %v1960
    %v2104 = vmul.f32 %v2103, %v2102
    %v2105 = vmul.f32 0.5, %v2104
    %v2106 = vsub.f32 1.5, %v2105
    %v2107 = vmul.f32 %v2102, %v2106
    %vm2108 = vweird.f32 %v1960
    %vm2109 = vweird.f32 %v2102
    %vm2110 = vmor %vm2108, %vm2109
    %v2111 = vsel %vm2110, %v2102, %v2107
    %v2112 = vrsqrt.pop %v1961
    %v2113 = vmul.f32 %v2112, %v1961
    %v2114 = vmul.f32 %v2113, %v2112
    %v2115 = vmul.f32 0.5, %v2114
    %v2116 = vsub.f32 1.5, %v2115
    %v2117 = vmul.f32 %v2112, %v2116
    %vm2118 = vweird.f32 %v1961
    %vm2119 = vweird.f32 %v2112
    %vm2120 = vmor %vm2118, %vm2119
    %v2121 = vsel %vm2120, %v2112, %v2117
    %v2122 = vmul.f32 %v1818, %v1971
    %v2123 = vmul.f32 %v1819, %v1971
    %v2124 = vmul.f32 %v1820, %v1981
    %v2125 = vmul.f32 %v1821, %v1981
    %v2126 = vmul.f32 %v1822, %v1991
    %v2127 = vmul.f32 %v1823, %v1991
    %v2128 = vmul.f32 %v1824, %v2001
    %v2129 = vmul.f32 %v1825, %v2001
    %v2130 = vmul.f32 %v1826, %v2011
    %v2131 = vmul.f32 %v1827, %v2011
    %v2132 = vmul.f32 %v1828, %v2021
    %v2133 = vmul.f32 %v1829, %v2021
    %v2134 = vmul.f32 %v1830, %v2031
    %v2135 = vmul.f32 %v1831, %v2031
    %v2136 = vmul.f32 %v1832, %v2041
    %v2137 = vmul.f32 %v1833, %v2041
    %v2138 = vmul.f32 %v1834, %v2051
    %v2139 = vmul.f32 %v1835, %v2051
    %v2140 = vmul.f32 %v1836, %v2061
    %v2141 = vmul.f32 %v1837, %v2061
    %v2142 = vmul.f32 %v1838, %v2071
    %v2143 = vmul.f32 %v1839, %v2071
    %v2144 = vmul.f32 %v1840, %v2081
    %v2145 = vmul.f32 %v1841, %v2081
    %v2146 = vmul.f32 %v1842, %v2091
    %v2147 = vmul.f32 %v1843, %v2091
    %v2148 = vmul.f32 %v1844, %v2101
    %v2149 = vmul.f32 %v1845, %v2101
    %v2150 = vmul.f32 %v1846, %v2111
    %v2151 = vmul.f32 %v1847, %v2111
    %v2152 = vmul.f32 %v1848, %v2121
    %v2153 = vmul.f32 %v1849, %v2121
    %v2154 = vmul.f32 %v2122, %v1664
    %v2155 = vmul.f32 %v2123, %v1665
    %v2156 = vmul.f32 %v2124, %v1664
    %v2157 = vmul.f32 %v2125, %v1665
    %v2158 = vmul.f32 %v2126, %v1664
    %v2159 = vmul.f32 %v2127, %v1665
    %v2160 = vmul.f32 %v2128, %v1664
    %v2161 = vmul.f32 %v2129, %v1665
    %v2162 = vmul.f32 %v2130, %v1664
    %v2163 = vmul.f32 %v2131, %v1665
    %v2164 = vmul.f32 %v2132, %v1664
    %v2165 = vmul.f32 %v2133, %v1665
    %v2166 = vmul.f32 %v2134, %v1664
    %v2167 = vmul.f32 %v2135, %v1665
    %v2168 = vmul.f32 %v2136, %v1664
    %v2169 = vmul.f32 %v2137, %v1665
    %v2170 = vmul.f32 %v2138, %v1664
    %v2171 = vmul.f32 %v2139, %v1665
    %v2172 = vmul.f32 %v2140, %v1664
    %v2173 = vmul.f32 %v2141, %v1665
    %v2174 = vmul.f32 %v2142, %v1664
    %v2175 = vmul.f32 %v2143, %v1665
    %v2176 = vmul.f32 %v2144, %v1664
    %v2177 = vmul.f32 %v2145, %v1665
    %v2178 = vmul.f32 %v2146, %v1664
    %v2179 = vmul.f32 %v2147, %v1665
    %v2180 = vmul.f32 %v2148, %v1664
    %v2181 = vmul.f32 %v2149, %v1665
    %v2182 = vmul.f32 %v2150, %v1664
    %v2183 = vmul.f32 %v2151, %v1665
    %v2184 = vmul.f32 %v2152, %v1664
    %v2185 = vmul.f32 %v2153, %v1665
    %v2186 = vadd.f32 %v2154, %v1702
    %v2187 = vadd.f32 %v2155, %v1703
    %v2188 = vadd.f32 %v2156, %v1702
    %v2189 = vadd.f32 %v2157, %v1703
    %v2190 = vadd.f32 %v2158, %v1702
    %v2191 = vadd.f32 %v2159, %v1703
    %v2192 = vadd.f32 %v2160, %v1702
    %v2193 = vadd.f32 %v2161, %v1703
    %v2194 = vadd.f32 %v2162, %v1702
    %v2195 = vadd.f32 %v2163, %v1703
    %v2196 = vadd.f32 %v2164, %v1702
    %v2197 = vadd.f32 %v2165, %v1703
    %v2198 = vadd.f32 %v2166, %v1702
    %v2199 = vadd.f32 %v2167, %v1703
    %v2200 = vadd.f32 %v2168, %v1702
    %v2201 = vadd.f32 %v2169, %v1703
    %v2202 = vadd.f32 %v2170, %v1702
    %v2203 = vadd.f32 %v2171, %v1703
    %v2204 = vadd.f32 %v2172, %v1702
    %v2205 = vadd.f32 %v2173, %v1703
    %v2206 = vadd.f32 %v2174, %v1702
    %v2207 = vadd.f32 %v2175, %v1703
    %v2208 = vadd.f32 %v2176, %v1702
    %v2209 = vadd.f32 %v2177, %v1703
    %v2210 = vadd.f32 %v2178, %v1702
    %v2211 = vadd.f32 %v2179, %v1703
    %v2212 = vadd.f32 %v2180, %v1702
    %v2213 = vadd.f32 %v2181, %v1703
    %v2214 = vadd.f32 %v2182, %v1702
    %v2215 = vadd.f32 %v2183, %v1703
    %v2216 = vadd.f32 %v2184, %v1702
    %v2217 = vadd.f32 %v2185, %v1703
    %v2218 = vpack.c.bf16 %v2188, %v2186
    %v2219 = vpack.c.bf16 %v2189, %v2187
    %v2220 = vpack.c.bf16 %v2192, %v2190
    %v2221 = vpack.c.bf16 %v2193, %v2191
    %v2222 = vpack.c.bf16 %v2196, %v2194
    %v2223 = vpack.c.bf16 %v2197, %v2195
    %v2224 = vpack.c.bf16 %v2200, %v2198
    %v2225 = vpack.c.bf16 %v2201, %v2199
    %v2226 = vpack.c.bf16 %v2204, %v2202
    %v2227 = vpack.c.bf16 %v2205, %v2203
    %v2228 = vpack.c.bf16 %v2208, %v2206
    %v2229 = vpack.c.bf16 %v2209, %v2207
    %v2230 = vpack.c.bf16 %v2212, %v2210
    %v2231 = vpack.c.bf16 %v2213, %v2211
    %v2232 = vpack.c.bf16 %v2216, %v2214
    %v2233 = vpack.c.bf16 %v2217, %v2215
    %v2234 = vld [vmem:[#allocation13] sm:$0xff]
    %v2235 = vld [vmem:[#allocation13 + $0x8] sm:$0xff]
    %v2236 = vld [vmem:[#allocation13 + $0x10] sm:$0xff]
    %v2237 = vld [vmem:[#allocation13 + $0x18] sm:$0xff]
    %v2238 = vld [vmem:[#allocation13 + $0x20] sm:$0xff]
    %v2239 = vld [vmem:[#allocation13 + $0x28] sm:$0xff]
    %v2240 = vld [vmem:[#allocation13 + $0x30] sm:$0xff]
    %v2241 = vld [vmem:[#allocation13 + $0x38] sm:$0xff]
    %v2242 = vld [vmem:[#allocation13 + $0x40] sm:$0xff]
    %v2243 = vld [vmem:[#allocation13 + $0x48] sm:$0xff]
    %v2244 = vld [vmem:[#allocation13 + $0x50] sm:$0xff]
    %v2245 = vld [vmem:[#allocation13 + $0x58] sm:$0xff]
    %v2246 = vld [vmem:[#allocation13 + $0x60] sm:$0xff]
    %v2247 = vld [vmem:[#allocation13 + $0x68] sm:$0xff]
    %v2248 = vld [vmem:[#allocation13 + $0x70] sm:$0xff]
    %v2249 = vld [vmem:[#allocation13 + $0x78] sm:$0xff]
    %v2250 = vld [vmem:[#allocation13 + $0x80] sm:$0xff]
    %v2251 = vld [vmem:[#allocation13 + $0x88] sm:$0xff]
    %v2252 = vld [vmem:[#allocation13 + $0x90] sm:$0xff]
    %v2253 = vld [vmem:[#allocation13 + $0x98] sm:$0xff]
    %v2254 = vld [vmem:[#allocation13 + $0xa0] sm:$0xff]
    %v2255 = vld [vmem:[#allocation13 + $0xa8] sm:$0xff]
    %v2256 = vld [vmem:[#allocation13 + $0xb0] sm:$0xff]
    %v2257 = vld [vmem:[#allocation13 + $0xb8] sm:$0xff]
    %v2258 = vld [vmem:[#allocation13 + $0xc0] sm:$0xff]
    %v2259 = vld [vmem:[#allocation13 + $0xc8] sm:$0xff]
    %v2260 = vld [vmem:[#allocation13 + $0xd0] sm:$0xff]
    %v2261 = vld [vmem:[#allocation13 + $0xd8] sm:$0xff]
    %v2262 = vld [vmem:[#allocation13 + $0xe0] sm:$0xff]
    %v2263 = vld [vmem:[#allocation13 + $0xe8] sm:$0xff]
    %v2264 = vld [vmem:[#allocation13 + $0xf0] sm:$0xff]
    %v2265 = vld [vmem:[#allocation13 + $0xf8] sm:$0xff]
    %v2266 = vld [vmem:[#allocation13 + $0x100] sm:$0xff]
    %v2267 = vld [vmem:[#allocation13 + $0x108] sm:$0xff]
    %v2268 = vld [vmem:[#allocation13 + $0x110] sm:$0xff]
    %v2269 = vld [vmem:[#allocation13 + $0x118] sm:$0xff]
    %v2270 = vld [vmem:[#allocation13 + $0x120] sm:$0xff]
    %v2271 = vld [vmem:[#allocation13 + $0x128] sm:$0xff]
    %v2272 = vld [vmem:[#allocation13 + $0x130] sm:$0xff]
    %v2273 = vld [vmem:[#allocation13 + $0x138] sm:$0xff]
    %v2274 = vld [vmem:[#allocation13 + $0x140] sm:$0xff]
    %v2275 = vld [vmem:[#allocation13 + $0x148] sm:$0xff]
    %v2276 = vld [vmem:[#allocation13 + $0x150] sm:$0xff]
    %v2277 = vld [vmem:[#allocation13 + $0x158] sm:$0xff]
    %v2278 = vld [vmem:[#allocation13 + $0x160] sm:$0xff]
    %v2279 = vld [vmem:[#allocation13 + $0x168] sm:$0xff]
    %v2280 = vld [vmem:[#allocation13 + $0x170] sm:$0xff]
    %v2281 = vld [vmem:[#allocation13 + $0x178] sm:$0xff]
    %v2282 = vld [vmem:[#allocation13 + $0x180] sm:$0xff]
    %v2283 = vld [vmem:[#allocation13 + $0x188] sm:$0xff]
    %v2284 = vld [vmem:[#allocation13 + $0x190] sm:$0xff]
    %v2285 = vld [vmem:[#allocation13 + $0x198] sm:$0xff]
    %v2286 = vld [vmem:[#allocation13 + $0x1a0] sm:$0xff]
    %v2287 = vld [vmem:[#allocation13 + $0x1a8] sm:$0xff]
    %v2288 = vld [vmem:[#allocation13 + $0x1b0] sm:$0xff]
    %v2289 = vld [vmem:[#allocation13 + $0x1b8] sm:$0xff]
    %v2290 = vld [vmem:[#allocation13 + $0x1c0] sm:$0xff]
    %v2291 = vld [vmem:[#allocation13 + $0x1c8] sm:$0xff]
    %v2292 = vld [vmem:[#allocation13 + $0x1d0] sm:$0xff]
    %v2293 = vld [vmem:[#allocation13 + $0x1d8] sm:$0xff]
    %v2294 = vld [vmem:[#allocation13 + $0x1e0] sm:$0xff]
    %v2295 = vld [vmem:[#allocation13 + $0x1e8] sm:$0xff]
    %v2296 = vld [vmem:[#allocation13 + $0x1f0] sm:$0xff]
    %v2297 = vld [vmem:[#allocation13 + $0x1f8] sm:$0xff]
    %v2362 = vunpack.c.l.b16 %v2234
    %v2363 = vunpack.c.h.b16 %v2234
    %v2364 = vunpack.c.l.b16 %v2235
    %v2365 = vunpack.c.h.b16 %v2235
    %v2366 = vunpack.c.l.b16 %v2236
    %v2367 = vunpack.c.h.b16 %v2236
    %v2368 = vunpack.c.l.b16 %v2237
    %v2369 = vunpack.c.h.b16 %v2237
    %v2370 = vunpack.c.l.b16 %v2238
    %v2371 = vunpack.c.h.b16 %v2238
    %v2372 = vunpack.c.l.b16 %v2239
    %v2373 = vunpack.c.h.b16 %v2239
    %v2374 = vunpack.c.l.b16 %v2240
    %v2375 = vunpack.c.h.b16 %v2240
    %v2376 = vunpack.c.l.b16 %v2241
    %v2377 = vunpack.c.h.b16 %v2241
    %v2378 = vunpack.c.l.b16 %v2242
    %v2379 = vunpack.c.h.b16 %v2242
    %v2380 = vunpack.c.l.b16 %v2243
    %v2381 = vunpack.c.h.b16 %v2243
    %v2382 = vunpack.c.l.b16 %v2244
    %v2383 = vunpack.c.h.b16 %v2244
    %v2384 = vunpack.c.l.b16 %v2245
    %v2385 = vunpack.c.h.b16 %v2245
    %v2386 = vunpack.c.l.b16 %v2246
    %v2387 = vunpack.c.h.b16 %v2246
    %v2388 = vunpack.c.l.b16 %v2247
    %v2389 = vunpack.c.h.b16 %v2247
    %v2390 = vunpack.c.l.b16 %v2248
    %v2391 = vunpack.c.h.b16 %v2248
    %v2392 = vunpack.c.l.b16 %v2249
    %v2393 = vunpack.c.h.b16 %v2249
    %v2394 = vunpack.c.l.b16 %v2250
    %v2395 = vunpack.c.h.b16 %v2250
    %v2396 = vunpack.c.l.b16 %v2251
    %v2397 = vunpack.c.h.b16 %v2251
    %v2398 = vunpack.c.l.b16 %v2252
    %v2399 = vunpack.c.h.b16 %v2252
    %v2400 = vunpack.c.l.b16 %v2253
    %v2401 = vunpack.c.h.b16 %v2253
    %v2402 = vunpack.c.l.b16 %v2254
    %v2403 = vunpack.c.h.b16 %v2254
    %v2404 = vunpack.c.l.b16 %v2255
    %v2405 = vunpack.c.h.b16 %v2255
    %v2406 = vunpack.c.l.b16 %v2256
    %v2407 = vunpack.c.h.b16 %v2256
    %v2408 = vunpack.c.l.b16 %v2257
    %v2409 = vunpack.c.h.b16 %v2257
    %v2410 = vunpack.c.l.b16 %v2258
    %v2411 = vunpack.c.h.b16 %v2258
    %v2412 = vunpack.c.l.b16 %v2259
    %v2413 = vunpack.c.h.b16 %v2259
    %v2414 = vunpack.c.l.b16 %v2260
    %v2415 = vunpack.c.h.b16 %v2260
    %v2416 = vunpack.c.l.b16 %v2261
    %v2417 = vunpack.c.h.b16 %v2261
    %v2418 = vunpack.c.l.b16 %v2262
    %v2419 = vunpack.c.h.b16 %v2262
    %v2420 = vunpack.c.l.b16 %v2263
    %v2421 = vunpack.c.h.b16 %v2263
    %v2422 = vunpack.c.l.b16 %v2264
    %v2423 = vunpack.c.h.b16 %v2264
    %v2424 = vunpack.c.l.b16 %v2265
    %v2425 = vunpack.c.h.b16 %v2265
    %v2426 = vunpack.c.l.b16 %v2266
    %v2427 = vunpack.c.h.b16 %v2266
    %v2428 = vunpack.c.l.b16 %v2267
    %v2429 = vunpack.c.h.b16 %v2267
    %v2430 = vunpack.c.l.b16 %v2268
    %v2431 = vunpack.c.h.b16 %v2268
    %v2432 = vunpack.c.l.b16 %v2269
    %v2433 = vunpack.c.h.b16 %v2269
    %v2434 = vunpack.c.l.b16 %v2270
    %v2435 = vunpack.c.h.b16 %v2270
    %v2436 = vunpack.c.l.b16 %v2271
    %v2437 = vunpack.c.h.b16 %v2271
    %v2438 = vunpack.c.l.b16 %v2272
    %v2439 = vunpack.c.h.b16 %v2272
    %v2440 = vunpack.c.l.b16 %v2273
    %v2441 = vunpack.c.h.b16 %v2273
    %v2442 = vunpack.c.l.b16 %v2274
    %v2443 = vunpack.c.h.b16 %v2274
    %v2444 = vunpack.c.l.b16 %v2275
    %v2445 = vunpack.c.h.b16 %v2275
    %v2446 = vunpack.c.l.b16 %v2276
    %v2447 = vunpack.c.h.b16 %v2276
    %v2448 = vunpack.c.l.b16 %v2277
    %v2449 = vunpack.c.h.b16 %v2277
    %v2450 = vunpack.c.l.b16 %v2278
    %v2451 = vunpack.c.h.b16 %v2278
    %v2452 = vunpack.c.l.b16 %v2279
    %v2453 = vunpack.c.h.b16 %v2279
    %v2454 = vunpack.c.l.b16 %v2280
    %v2455 = vunpack.c.h.b16 %v2280
    %v2456 = vunpack.c.l.b16 %v2281
    %v2457 = vunpack.c.h.b16 %v2281
    %v2458 = vunpack.c.l.b16 %v2282
    %v2459 = vunpack.c.h.b16 %v2282
    %v2460 = vunpack.c.l.b16 %v2283
    %v2461 = vunpack.c.h.b16 %v2283
    %v2462 = vunpack.c.l.b16 %v2284
    %v2463 = vunpack.c.h.b16 %v2284
    %v2464 = vunpack.c.l.b16 %v2285
    %v2465 = vunpack.c.h.b16 %v2285
    %v2466 = vunpack.c.l.b16 %v2286
    %v2467 = vunpack.c.h.b16 %v2286
    %v2468 = vunpack.c.l.b16 %v2287
    %v2469 = vunpack.c.h.b16 %v2287
    %v2470 = vunpack.c.l.b16 %v2288
    %v2471 = vunpack.c.h.b16 %v2288
    %v2472 = vunpack.c.l.b16 %v2289
    %v2473 = vunpack.c.h.b16 %v2289
    %v2474 = vunpack.c.l.b16 %v2290
    %v2475 = vunpack.c.h.b16 %v2290
    %v2476 = vunpack.c.l.b16 %v2291
    %v2477 = vunpack.c.h.b16 %v2291
    %v2478 = vunpack.c.l.b16 %v2292
    %v2479 = vunpack.c.h.b16 %v2292
    %v2480 = vunpack.c.l.b16 %v2293
    %v2481 = vunpack.c.h.b16 %v2293
    %v2482 = vunpack.c.l.b16 %v2294
    %v2483 = vunpack.c.h.b16 %v2294
    %v2484 = vunpack.c.l.b16 %v2295
    %v2485 = vunpack.c.h.b16 %v2295
    %v2486 = vunpack.c.l.b16 %v2296
    %v2487 = vunpack.c.h.b16 %v2296
    %v2488 = vunpack.c.l.b16 %v2297
    %v2489 = vunpack.c.h.b16 %v2297
    %v2490 = vpack.c.b16 %v2366, %v2362
    %v2491 = vpack.c.b16 %v2367, %v2363
    %v2492 = vpack.c.b16 %v2368, %v2364
    %v2493 = vpack.c.b16 %v2369, %v2365
    %v2494 = vpack.c.b16 %v2374, %v2370
    %v2495 = vpack.c.b16 %v2375, %v2371
    %v2496 = vpack.c.b16 %v2376, %v2372
    %v2497 = vpack.c.b16 %v2377, %v2373
    %v2498 = vpack.c.b16 %v2382, %v2378
    %v2499 = vpack.c.b16 %v2383, %v2379
    %v2500 = vpack.c.b16 %v2384, %v2380
    %v2501 = vpack.c.b16 %v2385, %v2381
    %v2502 = vpack.c.b16 %v2390, %v2386
    %v2503 = vpack.c.b16 %v2391, %v2387
    %v2504 = vpack.c.b16 %v2392, %v2388
    %v2505 = vpack.c.b16 %v2393, %v2389
    %v2506 = vpack.c.b16 %v2398, %v2394
    %v2507 = vpack.c.b16 %v2399, %v2395
    %v2508 = vpack.c.b16 %v2400, %v2396
    %v2509 = vpack.c.b16 %v2401, %v2397
    %v2510 = vpack.c.b16 %v2406, %v2402
    %v2511 = vpack.c.b16 %v2407, %v2403
    %v2512 = vpack.c.b16 %v2408, %v2404
    %v2513 = vpack.c.b16 %v2409, %v2405
    %v2514 = vpack.c.b16 %v2414, %v2410
    %v2515 = vpack.c.b16 %v2415, %v2411
    %v2516 = vpack.c.b16 %v2416, %v2412
    %v2517 = vpack.c.b16 %v2417, %v2413
    %v2518 = vpack.c.b16 %v2422, %v2418
    %v2519 = vpack.c.b16 %v2423, %v2419
    %v2520 = vpack.c.b16 %v2424, %v2420
    %v2521 = vpack.c.b16 %v2425, %v2421
    %v2522 = vpack.c.b16 %v2430, %v2426
    %v2523 = vpack.c.b16 %v2431, %v2427
    %v2524 = vpack.c.b16 %v2432, %v2428
    %v2525 = vpack.c.b16 %v2433, %v2429
    %v2526 = vpack.c.b16 %v2438, %v2434
    %v2527 = vpack.c.b16 %v2439, %v2435
    %v2528 = vpack.c.b16 %v2440, %v2436
    %v2529 = vpack.c.b16 %v2441, %v2437
    %v2530 = vpack.c.b16 %v2446, %v2442
    %v2531 = vpack.c.b16 %v2447, %v2443
    %v2532 = vpack.c.b16 %v2448, %v2444
    %v2533 = vpack.c.b16 %v2449, %v2445
    %v2534 = vpack.c.b16 %v2454, %v2450
    %v2535 = vpack.c.b16 %v2455, %v2451
    %v2536 = vpack.c.b16 %v2456, %v2452
    %v2537 = vpack.c.b16 %v2457, %v2453
    %v2538 = vpack.c.b16 %v2462, %v2458
    %v2539 = vpack.c.b16 %v2463, %v2459
    %v2540 = vpack.c.b16 %v2464, %v2460
    %v2541 = vpack.c.b16 %v2465, %v2461
    %v2542 = vpack.c.b16 %v2470, %v2466
    %v2543 = vpack.c.b16 %v2471, %v2467
    %v2544 = vpack.c.b16 %v2472, %v2468
    %v2545 = vpack.c.b16 %v2473, %v2469
    %v2546 = vpack.c.b16 %v2478, %v2474
    %v2547 = vpack.c.b16 %v2479, %v2475
    %v2548 = vpack.c.b16 %v2480, %v2476
    %v2549 = vpack.c.b16 %v2481, %v2477
    %v2550 = vpack.c.b16 %v2486, %v2482
    %v2551 = vpack.c.b16 %v2487, %v2483
    %v2552 = vpack.c.b16 %v2488, %v2484
    %v2553 = vpack.c.b16 %v2489, %v2485
    %2618 = vmatpush.bf16.msra.mxu0 %v2518
    %2619 = vmatpush.bf16.msra.mxu0 %v2514
    %2620 = vmatpush.bf16.msra.mxu0 %v2510
    %2621 = vmatpush.bf16.msra.mxu0 %v2506
    %2622 = vmatpush.bf16.msra.mxu0 %v2502
    %2623 = vmatpush.bf16.msra.mxu0 %v2498
    %2624 = vmatpush.bf16.msra.mxu0 %v2494
    %2625 = vmatpush.bf16.msra.mxu0 %v2490
    %2626 = vmatmul.bf16.gmra.mxu0 %v1738
    %v2627 = vpop.f32.mrf.mxu0
    %v2628 = vadd.f32 0.0, %v2627
    %v2629 = vpop.f32.mrf.mxu0
    %v2630 = vadd.f32 0.0, %v2629
    %2631 = vmatmul.bf16.gmra.mxu0 %v1740
    %v2632 = vpop.f32.mrf.mxu0
    %v2633 = vadd.f32 0.0, %v2632
    %v2634 = vpop.f32.mrf.mxu0
    %v2635 = vadd.f32 0.0, %v2634
    %2636 = vmatmul.bf16.gmra.mxu0 %v1742
    %v2637 = vpop.f32.mrf.mxu0
    %v2638 = vadd.f32 0.0, %v2637
    %v2639 = vpop.f32.mrf.mxu0
    %v2640 = vadd.f32 0.0, %v2639
    %2641 = vmatmul.bf16.gmra.mxu0 %v1744
    %v2642 = vpop.f32.mrf.mxu0
    %v2643 = vadd.f32 0.0, %v2642
    %v2644 = vpop.f32.mrf.mxu0
    %v2645 = vadd.f32 0.0, %v2644
    %2646 = vmatmul.bf16.gmra.mxu0 %v1746
    %v2647 = vpop.f32.mrf.mxu0
    %v2648 = vadd.f32 0.0, %v2647
    %v2649 = vpop.f32.mrf.mxu0
    %v2650 = vadd.f32 0.0, %v2649
    %2651 = vmatmul.bf16.gmra.mxu0 %v1748
    %v2652 = vpop.f32.mrf.mxu0
    %v2653 = vadd.f32 0.0, %v2652
    %v2654 = vpop.f32.mrf.mxu0
    %v2655 = vadd.f32 0.0, %v2654
    %2656 = vmatmul.bf16.gmra.mxu0 %v1750
    %v2657 = vpop.f32.mrf.mxu0
    %v2658 = vadd.f32 0.0, %v2657
    %v2659 = vpop.f32.mrf.mxu0
    %v2660 = vadd.f32 0.0, %v2659
    %2661 = vmatmul.bf16.gmra.mxu0 %v1752
    %v2662 = vpop.f32.mrf.mxu0
    %v2663 = vadd.f32 0.0, %v2662
    %v2664 = vpop.f32.mrf.mxu0
    %v2665 = vadd.f32 0.0, %v2664
    %2666 = vdwg.mxu0
    %2667 = vmatpush.bf16.msra.mxu0 %v2550
    %2668 = vmatpush.bf16.msra.mxu0 %v2546
    %2669 = vmatpush.bf16.msra.mxu0 %v2542
    %2670 = vmatpush.bf16.msra.mxu0 %v2538
    %2671 = vmatpush.bf16.msra.mxu0 %v2534
    %2672 = vmatpush.bf16.msra.mxu0 %v2530
    %2673 = vmatpush.bf16.msra.mxu0 %v2526
    %2674 = vmatpush.bf16.msra.mxu0 %v2522
    %2675 = vmatmul.bf16.gmra.mxu0 %v1739
    %v2676 = vpop.f32.mrf.mxu0
    %v2677 = vadd.f32 %v2628, %v2676
    %v2678 = vpop.f32.mrf.mxu0
    %v2679 = vadd.f32 %v2630, %v2678
    %2680 = vmatmul.bf16.gmra.mxu0 %v1741
    %v2681 = vpop.f32.mrf.mxu0
    %v2682 = vadd.f32 %v2633, %v2681
    %v2683 = vpop.f32.mrf.mxu0
    %v2684 = vadd.f32 %v2635, %v2683
    %2685 = vmatmul.bf16.gmra.mxu0 %v1743
    %v2686 = vpop.f32.mrf.mxu0
    %v2687 = vadd.f32 %v2638, %v2686
    %v2688 = vpop.f32.mrf.mxu0
    %v2689 = vadd.f32 %v2640, %v2688
    %2690 = vmatmul.bf16.gmra.mxu0 %v1745
    %v2691 = vpop.f32.mrf.mxu0
    %v2692 = vadd.f32 %v2643, %v2691
    %v2693 = vpop.f32.mrf.mxu0
    %v2694 = vadd.f32 %v2645, %v2693
    %2695 = vmatmul.bf16.gmra.mxu0 %v1747
    %v2696 = vpop.f32.mrf.mxu0
    %v2697 = vadd.f32 %v2648, %v2696
    %v2698 = vpop.f32.mrf.mxu0
    %v2699 = vadd.f32 %v2650, %v2698
    %2700 = vmatmul.bf16.gmra.mxu0 %v1749
    %v2701 = vpop.f32.mrf.mxu0
    %v2702 = vadd.f32 %v2653, %v2701
    %v2703 = vpop.f32.mrf.mxu0
    %v2704 = vadd.f32 %v2655, %v2703
    %2705 = vmatmul.bf16.gmra.mxu0 %v1751
    %v2706 = vpop.f32.mrf.mxu0
    %v2707 = vadd.f32 %v2658, %v2706
    %v2708 = vpop.f32.mrf.mxu0
    %v2709 = vadd.f32 %v2660, %v2708
    %2710 = vmatmul.bf16.gmra.mxu0 %v1753
    %v2711 = vpop.f32.mrf.mxu0
    %v2712 = vadd.f32 %v2663, %v2711
    %v2713 = vpop.f32.mrf.mxu0
    %v2714 = vadd.f32 %v2665, %v2713
    %2715 = vdwg.mxu0
    %2716 = vmatpush.bf16.msra.mxu0 %v2519
    %2717 = vmatpush.bf16.msra.mxu0 %v2515
    %2718 = vmatpush.bf16.msra.mxu0 %v2511
    %2719 = vmatpush.bf16.msra.mxu0 %v2507
    %2720 = vmatpush.bf16.msra.mxu0 %v2503
    %2721 = vmatpush.bf16.msra.mxu0 %v2499
    %2722 = vmatpush.bf16.msra.mxu0 %v2495
    %2723 = vmatpush.bf16.msra.mxu0 %v2491
    %2724 = vmatmul.bf16.gmra.mxu0 %v1738
    %v2725 = vpop.f32.mrf.mxu0
    %v2726 = vadd.f32 0.0, %v2725
    %v2727 = vpop.f32.mrf.mxu0
    %v2728 = vadd.f32 0.0, %v2727
    %2729 = vmatmul.bf16.gmra.mxu0 %v1740
    %v2730 = vpop.f32.mrf.mxu0
    %v2731 = vadd.f32 0.0, %v2730
    %v2732 = vpop.f32.mrf.mxu0
    %v2733 = vadd.f32 0.0, %v2732
    %2734 = vmatmul.bf16.gmra.mxu0 %v1742
    %v2735 = vpop.f32.mrf.mxu0
    %v2736 = vadd.f32 0.0, %v2735
    %v2737 = vpop.f32.mrf.mxu0
    %v2738 = vadd.f32 0.0, %v2737
    %2739 = vmatmul.bf16.gmra.mxu0 %v1744
    %v2740 = vpop.f32.mrf.mxu0
    %v2741 = vadd.f32 0.0, %v2740
    %v2742 = vpop.f32.mrf.mxu0
    %v2743 = vadd.f32 0.0, %v2742
    %2744 = vmatmul.bf16.gmra.mxu0 %v1746
    %v2745 = vpop.f32.mrf.mxu0
    %v2746 = vadd.f32 0.0, %v2745
    %v2747 = vpop.f32.mrf.mxu0
    %v2748 = vadd.f32 0.0, %v2747
    %2749 = vmatmul.bf16.gmra.mxu0 %v1748
    %v2750 = vpop.f32.mrf.mxu0
    %v2751 = vadd.f32 0.0, %v2750
    %v2752 = vpop.f32.mrf.mxu0
    %v2753 = vadd.f32 0.0, %v2752
    %2754 = vmatmul.bf16.gmra.mxu0 %v1750
    %v2755 = vpop.f32.mrf.mxu0
    %v2756 = vadd.f32 0.0, %v2755
    %v2757 = vpop.f32.mrf.mxu0
    %v2758 = vadd.f32 0.0, %v2757
    %2759 = vmatmul.bf16.gmra.mxu0 %v1752
    %v2760 = vpop.f32.mrf.mxu0
    %v2761 = vadd.f32 0.0, %v2760
    %v2762 = vpop.f32.mrf.mxu0
    %v2763 = vadd.f32 0.0, %v2762
    %2764 = vdwg.mxu0
    %2765 = vmatpush.bf16.msra.mxu0 %v2551
    %2766 = vmatpush.bf16.msra.mxu0 %v2547
    %2767 = vmatpush.bf16.msra.mxu0 %v2543
    %2768 = vmatpush.bf16.msra.mxu0 %v2539
    %2769 = vmatpush.bf16.msra.mxu0 %v2535
    %2770 = vmatpush.bf16.msra.mxu0 %v2531
    %2771 = vmatpush.bf16.msra.mxu0 %v2527
    %2772 = vmatpush.bf16.msra.mxu0 %v2523
    %2773 = vmatmul.bf16.gmra.mxu0 %v1739
    %v2774 = vpop.f32.mrf.mxu0
    %v2775 = vadd.f32 %v2726, %v2774
    %v2776 = vpop.f32.mrf.mxu0
    %v2777 = vadd.f32 %v2728, %v2776
    %2778 = vmatmul.bf16.gmra.mxu0 %v1741
    %v2779 = vpop.f32.mrf.mxu0
    %v2780 = vadd.f32 %v2731, %v2779
    %v2781 = vpop.f32.mrf.mxu0
    %v2782 = vadd.f32 %v2733, %v2781
    %2783 = vmatmul.bf16.gmra.mxu0 %v1743
    %v2784 = vpop.f32.mrf.mxu0
    %v2785 = vadd.f32 %v2736, %v2784
    %v2786 = vpop.f32.mrf.mxu0
    %v2787 = vadd.f32 %v2738, %v2786
    %2788 = vmatmul.bf16.gmra.mxu0 %v1745
    %v2789 = vpop.f32.mrf.mxu0
    %v2790 = vadd.f32 %v2741, %v2789
    %v2791 = vpop.f32.mrf.mxu0
    %v2792 = vadd.f32 %v2743, %v2791
    %2793 = vmatmul.bf16.gmra.mxu0 %v1747
    %v2794 = vpop.f32.mrf.mxu0
    %v2795 = vadd.f32 %v2746, %v2794
    %v2796 = vpop.f32.mrf.mxu0
    %v2797 = vadd.f32 %v2748, %v2796
    %2798 = vmatmul.bf16.gmra.mxu0 %v1749
    %v2799 = vpop.f32.mrf.mxu0
    %v2800 = vadd.f32 %v2751, %v2799
    %v2801 = vpop.f32.mrf.mxu0
    %v2802 = vadd.f32 %v2753, %v2801
    %2803 = vmatmul.bf16.gmra.mxu0 %v1751
    %v2804 = vpop.f32.mrf.mxu0
    %v2805 = vadd.f32 %v2756, %v2804
    %v2806 = vpop.f32.mrf.mxu0
    %v2807 = vadd.f32 %v2758, %v2806
    %2808 = vmatmul.bf16.gmra.mxu0 %v1753
    %v2809 = vpop.f32.mrf.mxu0
    %v2810 = vadd.f32 %v2761, %v2809
    %v2811 = vpop.f32.mrf.mxu0
    %v2812 = vadd.f32 %v2763, %v2811
    %2813 = vdwg.mxu0
    %2814 = vmatpush.bf16.msra.mxu0 %v2520
    %2815 = vmatpush.bf16.msra.mxu0 %v2516
    %2816 = vmatpush.bf16.msra.mxu0 %v2512
    %2817 = vmatpush.bf16.msra.mxu0 %v2508
    %2818 = vmatpush.bf16.msra.mxu0 %v2504
    %2819 = vmatpush.bf16.msra.mxu0 %v2500
    %2820 = vmatpush.bf16.msra.mxu0 %v2496
    %2821 = vmatpush.bf16.msra.mxu0 %v2492
    %2822 = vmatmul.bf16.gmra.mxu0 %v1738
    %v2823 = vpop.f32.mrf.mxu0
    %v2824 = vadd.f32 0.0, %v2823
    %v2825 = vpop.f32.mrf.mxu0
    %v2826 = vadd.f32 0.0, %v2825
    %2827 = vmatmul.bf16.gmra.mxu0 %v1740
    %v2828 = vpop.f32.mrf.mxu0
    %v2829 = vadd.f32 0.0, %v2828
    %v2830 = vpop.f32.mrf.mxu0
    %v2831 = vadd.f32 0.0, %v2830
    %2832 = vmatmul.bf16.gmra.mxu0 %v1742
    %v2833 = vpop.f32.mrf.mxu0
    %v2834 = vadd.f32 0.0, %v2833
    %v2835 = vpop.f32.mrf.mxu0
    %v2836 = vadd.f32 0.0, %v2835
    %2837 = vmatmul.bf16.gmra.mxu0 %v1744
    %v2838 = vpop.f32.mrf.mxu0
    %v2839 = vadd.f32 0.0, %v2838
    %v2840 = vpop.f32.mrf.mxu0
    %v2841 = vadd.f32 0.0, %v2840
    %2842 = vmatmul.bf16.gmra.mxu0 %v1746
    %v2843 = vpop.f32.mrf.mxu0
    %v2844 = vadd.f32 0.0, %v2843
    %v2845 = vpop.f32.mrf.mxu0
    %v2846 = vadd.f32 0.0, %v2845
    %2847 = vmatmul.bf16.gmra.mxu0 %v1748
    %v2848 = vpop.f32.mrf.mxu0
    %v2849 = vadd.f32 0.0, %v2848
    %v2850 = vpop.f32.mrf.mxu0
    %v2851 = vadd.f32 0.0, %v2850
    %2852 = vmatmul.bf16.gmra.mxu0 %v1750
    %v2853 = vpop.f32.mrf.mxu0
    %v2854 = vadd.f32 0.0, %v2853
    %v2855 = vpop.f32.mrf.mxu0
    %v2856 = vadd.f32 0.0, %v2855
    %2857 = vmatmul.bf16.gmra.mxu0 %v1752
    %v2858 = vpop.f32.mrf.mxu0
    %v2859 = vadd.f32 0.0, %v2858
    %v2860 = vpop.f32.mrf.mxu0
    %v2861 = vadd.f32 0.0, %v2860
    %2862 = vdwg.mxu0
    %2863 = vmatpush.bf16.msra.mxu0 %v2552
    %2864 = vmatpush.bf16.msra.mxu0 %v2548
    %2865 = vmatpush.bf16.msra.mxu0 %v2544
    %2866 = vmatpush.bf16.msra.mxu0 %v2540
    %2867 = vmatpush.bf16.msra.mxu0 %v2536
    %2868 = vmatpush.bf16.msra.mxu0 %v2532
    %2869 = vmatpush.bf16.msra.mxu0 %v2528
    %2870 = vmatpush.bf16.msra.mxu0 %v2524
    %2871 = vmatmul.bf16.gmra.mxu0 %v1739
    %v2872 = vpop.f32.mrf.mxu0
    %v2873 = vadd.f32 %v2824, %v2872
    %v2874 = vpop.f32.mrf.mxu0
    %v2875 = vadd.f32 %v2826, %v2874
    %2876 = vmatmul.bf16.gmra.mxu0 %v1741
    %v2877 = vpop.f32.mrf.mxu0
    %v2878 = vadd.f32 %v2829, %v2877
    %v2879 = vpop.f32.mrf.mxu0
    %v2880 = vadd.f32 %v2831, %v2879
    %2881 = vmatmul.bf16.gmra.mxu0 %v1743
    %v2882 = vpop.f32.mrf.mxu0
    %v2883 = vadd.f32 %v2834, %v2882
    %v2884 = vpop.f32.mrf.mxu0
    %v2885 = vadd.f32 %v2836, %v2884
    %2886 = vmatmul.bf16.gmra.mxu0 %v1745
    %v2887 = vpop.f32.mrf.mxu0
    %v2888 = vadd.f32 %v2839, %v2887
    %v2889 = vpop.f32.mrf.mxu0
    %v2890 = vadd.f32 %v2841, %v2889
    %2891 = vmatmul.bf16.gmra.mxu0 %v1747
    %v2892 = vpop.f32.mrf.mxu0
    %v2893 = vadd.f32 %v2844, %v2892
    %v2894 = vpop.f32.mrf.mxu0
    %v2895 = vadd.f32 %v2846, %v2894
    %2896 = vmatmul.bf16.gmra.mxu0 %v1749
    %v2897 = vpop.f32.mrf.mxu0
    %v2898 = vadd.f32 %v2849, %v2897
    %v2899 = vpop.f32.mrf.mxu0
    %v2900 = vadd.f32 %v2851, %v2899
    %2901 = vmatmul.bf16.gmra.mxu0 %v1751
    %v2902 = vpop.f32.mrf.mxu0
    %v2903 = vadd.f32 %v2854, %v2902
    %v2904 = vpop.f32.mrf.mxu0
    %v2905 = vadd.f32 %v2856, %v2904
    %2906 = vmatmul.bf16.gmra.mxu0 %v1753
    %v2907 = vpop.f32.mrf.mxu0
    %v2908 = vadd.f32 %v2859, %v2907
    %v2909 = vpop.f32.mrf.mxu0
    %v2910 = vadd.f32 %v2861, %v2909
    %2911 = vdwg.mxu0
    %2912 = vmatpush.bf16.msra.mxu0 %v2521
    %2913 = vmatpush.bf16.msra.mxu0 %v2517
    %2914 = vmatpush.bf16.msra.mxu0 %v2513
    %2915 = vmatpush.bf16.msra.mxu0 %v2509
    %2916 = vmatpush.bf16.msra.mxu0 %v2505
    %2917 = vmatpush.bf16.msra.mxu0 %v2501
    %2918 = vmatpush.bf16.msra.mxu0 %v2497
    %2919 = vmatpush.bf16.msra.mxu0 %v2493
    %2920 = vmatmul.bf16.gmra.mxu0 %v1738
    %v2921 = vpop.f32.mrf.mxu0
    %v2922 = vadd.f32 0.0, %v2921
    %v2923 = vpop.f32.mrf.mxu0
    %v2924 = vadd.f32 0.0, %v2923
    %2925 = vmatmul.bf16.gmra.mxu0 %v1740
    %v2926 = vpop.f32.mrf.mxu0
    %v2927 = vadd.f32 0.0, %v2926
    %v2928 = vpop.f32.mrf.mxu0
    %v2929 = vadd.f32 0.0, %v2928
    %2930 = vmatmul.bf16.gmra.mxu0 %v1742
    %v2931 = vpop.f32.mrf.mxu0
    %v2932 = vadd.f32 0.0, %v2931
    %v2933 = vpop.f32.mrf.mxu0
    %v2934 = vadd.f32 0.0, %v2933
    %2935 = vmatmul.bf16.gmra.mxu0 %v1744
    %v2936 = vpop.f32.mrf.mxu0
    %v2937 = vadd.f32 0.0, %v2936
    %v2938 = vpop.f32.mrf.mxu0
    %v2939 = vadd.f32 0.0, %v2938
    %2940 = vmatmul.bf16.gmra.mxu0 %v1746
    %v2941 = vpop.f32.mrf.mxu0
    %v2942 = vadd.f32 0.0, %v2941
    %v2943 = vpop.f32.mrf.mxu0
    %v2944 = vadd.f32 0.0, %v2943
    %2945 = vmatmul.bf16.gmra.mxu0 %v1748
    %v2946 = vpop.f32.mrf.mxu0
    %v2947 = vadd.f32 0.0, %v2946
    %v2948 = vpop.f32.mrf.mxu0
    %v2949 = vadd.f32 0.0, %v2948
    %2950 = vmatmul.bf16.gmra.mxu0 %v1750
    %v2951 = vpop.f32.mrf.mxu0
    %v2952 = vadd.f32 0.0, %v2951
    %v2953 = vpop.f32.mrf.mxu0
    %v2954 = vadd.f32 0.0, %v2953
    %2955 = vmatmul.bf16.gmra.mxu0 %v1752
    %v2956 = vpop.f32.mrf.mxu0
    %v2957 = vadd.f32 0.0, %v2956
    %v2958 = vpop.f32.mrf.mxu0
    %v2959 = vadd.f32 0.0, %v2958
    %2960 = vdwg.mxu0
    %2961 = vmatpush.bf16.msra.mxu0 %v2553
    %2962 = vmatpush.bf16.msra.mxu0 %v2549
    %2963 = vmatpush.bf16.msra.mxu0 %v2545
    %2964 = vmatpush.bf16.msra.mxu0 %v2541
    %2965 = vmatpush.bf16.msra.mxu0 %v2537
    %2966 = vmatpush.bf16.msra.mxu0 %v2533
    %2967 = vmatpush.bf16.msra.mxu0 %v2529
    %2968 = vmatpush.bf16.msra.mxu0 %v2525
    %2969 = vmatmul.bf16.gmra.mxu0 %v1739
    %v2970 = vpop.f32.mrf.mxu0
    %v2971 = vadd.f32 %v2922, %v2970
    %v2972 = vpop.f32.mrf.mxu0
    %v2973 = vadd.f32 %v2924, %v2972
    %2974 = vmatmul.bf16.gmra.mxu0 %v1741
    %v2975 = vpop.f32.mrf.mxu0
    %v2976 = vadd.f32 %v2927, %v2975
    %v2977 = vpop.f32.mrf.mxu0
    %v2978 = vadd.f32 %v2929, %v2977
    %2979 = vmatmul.bf16.gmra.mxu0 %v1743
    %v2980 = vpop.f32.mrf.mxu0
    %v2981 = vadd.f32 %v2932, %v2980
    %v2982 = vpop.f32.mrf.mxu0
    %v2983 = vadd.f32 %v2934, %v2982
    %2984 = vmatmul.bf16.gmra.mxu0 %v1745
    %v2985 = vpop.f32.mrf.mxu0
    %v2986 = vadd.f32 %v2937, %v2985
    %v2987 = vpop.f32.mrf.mxu0
    %v2988 = vadd.f32 %v2939, %v2987
    %2989 = vmatmul.bf16.gmra.mxu0 %v1747
    %v2990 = vpop.f32.mrf.mxu0
    %v2991 = vadd.f32 %v2942, %v2990
    %v2992 = vpop.f32.mrf.mxu0
    %v2993 = vadd.f32 %v2944, %v2992
    %2994 = vmatmul.bf16.gmra.mxu0 %v1749
    %v2995 = vpop.f32.mrf.mxu0
    %v2996 = vadd.f32 %v2947, %v2995
    %v2997 = vpop.f32.mrf.mxu0
    %v2998 = vadd.f32 %v2949, %v2997
    %2999 = vmatmul.bf16.gmra.mxu0 %v1751
    %v3000 = vpop.f32.mrf.mxu0
    %v3001 = vadd.f32 %v2952, %v3000
    %v3002 = vpop.f32.mrf.mxu0
    %v3003 = vadd.f32 %v2954, %v3002
    %3004 = vmatmul.bf16.gmra.mxu0 %v1753
    %v3005 = vpop.f32.mrf.mxu0
    %v3006 = vadd.f32 %v2957, %v3005
    %v3007 = vpop.f32.mrf.mxu0
    %v3008 = vadd.f32 %v2959, %v3007
    %3009 = vdwg.mxu0
    %v3010 = vld [vmem:[#allocation14] sm:$0xff]
    %v3011 = vld [vmem:[#allocation14 + $0x8] sm:$0xff]
    %v3012 = vld [vmem:[#allocation14 + $0x10] sm:$0xff]
    %v3013 = vld [vmem:[#allocation14 + $0x18] sm:$0xff]
    %v3014 = vld [vmem:[#allocation14 + $0x20] sm:$0xff]
    %v3015 = vld [vmem:[#allocation14 + $0x28] sm:$0xff]
    %v3016 = vld [vmem:[#allocation14 + $0x30] sm:$0xff]
    %v3017 = vld [vmem:[#allocation14 + $0x38] sm:$0xff]
    %v3018 = vld [vmem:[#allocation14 + $0x40] sm:$0xff]
    %v3019 = vld [vmem:[#allocation14 + $0x48] sm:$0xff]
    %v3020 = vld [vmem:[#allocation14 + $0x50] sm:$0xff]
    %v3021 = vld [vmem:[#allocation14 + $0x58] sm:$0xff]
    %v3022 = vld [vmem:[#allocation14 + $0x60] sm:$0xff]
    %v3023 = vld [vmem:[#allocation14 + $0x68] sm:$0xff]
    %v3024 = vld [vmem:[#allocation14 + $0x70] sm:$0xff]
    %v3025 = vld [vmem:[#allocation14 + $0x78] sm:$0xff]
    %v3026 = vld [vmem:[#allocation14 + $0x80] sm:$0xff]
    %v3027 = vld [vmem:[#allocation14 + $0x88] sm:$0xff]
    %v3028 = vld [vmem:[#allocation14 + $0x90] sm:$0xff]
    %v3029 = vld [vmem:[#allocation14 + $0x98] sm:$0xff]
    %v3030 = vld [vmem:[#allocation14 + $0xa0] sm:$0xff]
    %v3031 = vld [vmem:[#allocation14 + $0xa8] sm:$0xff]
    %v3032 = vld [vmem:[#allocation14 + $0xb0] sm:$0xff]
    %v3033 = vld [vmem:[#allocation14 + $0xb8] sm:$0xff]
    %v3034 = vld [vmem:[#allocation14 + $0xc0] sm:$0xff]
    %v3035 = vld [vmem:[#allocation14 + $0xc8] sm:$0xff]
    %v3036 = vld [vmem:[#allocation14 + $0xd0] sm:$0xff]
    %v3037 = vld [vmem:[#allocation14 + $0xd8] sm:$0xff]
    %v3038 = vld [vmem:[#allocation14 + $0xe0] sm:$0xff]
    %v3039 = vld [vmem:[#allocation14 + $0xe8] sm:$0xff]
    %v3040 = vld [vmem:[#allocation14 + $0xf0] sm:$0xff]
    %v3041 = vld [vmem:[#allocation14 + $0xf8] sm:$0xff]
    %v3074 = vunpack.c.l.b16 %v3010
    %v3075 = vunpack.c.h.b16 %v3010
    %v3076 = vunpack.c.l.b16 %v3011
    %v3077 = vunpack.c.h.b16 %v3011
    %v3078 = vunpack.c.l.b16 %v3012
    %v3079 = vunpack.c.h.b16 %v3012
    %v3080 = vunpack.c.l.b16 %v3013
    %v3081 = vunpack.c.h.b16 %v3013
    %v3082 = vunpack.c.l.b16 %v3014
    %v3083 = vunpack.c.h.b16 %v3014
    %v3084 = vunpack.c.l.b16 %v3015
    %v3085 = vunpack.c.h.b16 %v3015
    %v3086 = vunpack.c.l.b16 %v3016
    %v3087 = vunpack.c.h.b16 %v3016
    %v3088 = vunpack.c.l.b16 %v3017
    %v3089 = vunpack.c.h.b16 %v3017
    %v3090 = vunpack.c.l.b16 %v3018
    %v3091 = vunpack.c.h.b16 %v3018
    %v3092 = vunpack.c.l.b16 %v3019
    %v3093 = vunpack.c.h.b16 %v3019
    %v3094 = vunpack.c.l.b16 %v3020
    %v3095 = vunpack.c.h.b16 %v3020
    %v3096 = vunpack.c.l.b16 %v3021
    %v3097 = vunpack.c.h.b16 %v3021
    %v3098 = vunpack.c.l.b16 %v3022
    %v3099 = vunpack.c.h.b16 %v3022
    %v3100 = vunpack.c.l.b16 %v3023
    %v3101 = vunpack.c.h.b16 %v3023
    %v3102 = vunpack.c.l.b16 %v3024
    %v3103 = vunpack.c.h.b16 %v3024
    %v3104 = vunpack.c.l.b16 %v3025
    %v3105 = vunpack.c.h.b16 %v3025
    %v3106 = vunpack.c.l.b16 %v3026
    %v3107 = vunpack.c.h.b16 %v3026
    %v3108 = vunpack.c.l.b16 %v3027
    %v3109 = vunpack.c.h.b16 %v3027
    %v3110 = vunpack.c.l.b16 %v3028
    %v3111 = vunpack.c.h.b16 %v3028
    %v3112 = vunpack.c.l.b16 %v3029
    %v3113 = vunpack.c.h.b16 %v3029
    %v3114 = vunpack.c.l.b16 %v3030
    %v3115 = vunpack.c.h.b16 %v3030
    %v3116 = vunpack.c.l.b16 %v3031
    %v3117 = vunpack.c.h.b16 %v3031
    %v3118 = vunpack.c.l.b16 %v3032
    %v3119 = vunpack.c.h.b16 %v3032
    %v3120 = vunpack.c.l.b16 %v3033
    %v3121 = vunpack.c.h.b16 %v3033
    %v3122 = vunpack.c.l.b16 %v3034
    %v3123 = vunpack.c.h.b16 %v3034
    %v3124 = vunpack.c.l.b16 %v3035
    %v3125 = vunpack.c.h.b16 %v3035
    %v3126 = vunpack.c.l.b16 %v3036
    %v3127 = vunpack.c.h.b16 %v3036
    %v3128 = vunpack.c.l.b16 %v3037
    %v3129 = vunpack.c.h.b16 %v3037
    %v3130 = vunpack.c.l.b16 %v3038
    %v3131 = vunpack.c.h.b16 %v3038
    %v3132 = vunpack.c.l.b16 %v3039
    %v3133 = vunpack.c.h.b16 %v3039
    %v3134 = vunpack.c.l.b16 %v3040
    %v3135 = vunpack.c.h.b16 %v3040
    %v3136 = vunpack.c.l.b16 %v3041
    %v3137 = vunpack.c.h.b16 %v3041
    %v3138 = vpack.c.b16 %v3076, %v3074
    %v3139 = vpack.c.b16 %v3077, %v3075
    %v3140 = vpack.c.b16 %v3080, %v3078
    %v3141 = vpack.c.b16 %v3081, %v3079
    %v3142 = vpack.c.b16 %v3084, %v3082
    %v3143 = vpack.c.b16 %v3085, %v3083
    %v3144 = vpack.c.b16 %v3088, %v3086
    %v3145 = vpack.c.b16 %v3089, %v3087
    %v3146 = vpack.c.b16 %v3092, %v3090
    %v3147 = vpack.c.b16 %v3093, %v3091
    %v3148 = vpack.c.b16 %v3096, %v3094
    %v3149 = vpack.c.b16 %v3097, %v3095
    %v3150 = vpack.c.b16 %v3100, %v3098
    %v3151 = vpack.c.b16 %v3101, %v3099
    %v3152 = vpack.c.b16 %v3104, %v3102
    %v3153 = vpack.c.b16 %v3105, %v3103
    %v3154 = vpack.c.b16 %v3108, %v3106
    %v3155 = vpack.c.b16 %v3109, %v3107
    %v3156 = vpack.c.b16 %v3112, %v3110
    %v3157 = vpack.c.b16 %v3113, %v3111
    %v3158 = vpack.c.b16 %v3116, %v3114
    %v3159 = vpack.c.b16 %v3117, %v3115
    %v3160 = vpack.c.b16 %v3120, %v3118
    %v3161 = vpack.c.b16 %v3121, %v3119
    %v3162 = vpack.c.b16 %v3124, %v3122
    %v3163 = vpack.c.b16 %v3125, %v3123
    %v3164 = vpack.c.b16 %v3128, %v3126
    %v3165 = vpack.c.b16 %v3129, %v3127
    %v3166 = vpack.c.b16 %v3132, %v3130
    %v3167 = vpack.c.b16 %v3133, %v3131
    %v3168 = vpack.c.b16 %v3136, %v3134
    %v3169 = vpack.c.b16 %v3137, %v3135
    %3202 = vmatpush.bf16.msra.mxu0 %v3152
    %3203 = vmatpush.bf16.msra.mxu0 %v3150
    %3204 = vmatpush.bf16.msra.mxu0 %v3148
    %3205 = vmatpush.bf16.msra.mxu0 %v3146
    %3206 = vmatpush.bf16.msra.mxu0 %v3144
    %3207 = vmatpush.bf16.msra.mxu0 %v3142
    %3208 = vmatpush.bf16.msra.mxu0 %v3140
    %3209 = vmatpush.bf16.msra.mxu0 %v3138
    %3210 = vmatmul.bf16.gmra.mxu0 %v2218
    %v3211 = vpop.f32.mrf.mxu0
    %v3212 = vadd.f32 0.0, %v3211
    %v3213 = vpop.f32.mrf.mxu0
    %v3214 = vadd.f32 0.0, %v3213
    %3215 = vmatmul.bf16.gmra.mxu0 %v2220
    %v3216 = vpop.f32.mrf.mxu0
    %v3217 = vadd.f32 0.0, %v3216
    %v3218 = vpop.f32.mrf.mxu0
    %v3219 = vadd.f32 0.0, %v3218
    %3220 = vmatmul.bf16.gmra.mxu0 %v2222
    %v3221 = vpop.f32.mrf.mxu0
    %v3222 = vadd.f32 0.0, %v3221
    %v3223 = vpop.f32.mrf.mxu0
    %v3224 = vadd.f32 0.0, %v3223
    %3225 = vmatmul.bf16.gmra.mxu0 %v2224
    %v3226 = vpop.f32.mrf.mxu0
    %v3227 = vadd.f32 0.0, %v3226
    %v3228 = vpop.f32.mrf.mxu0
    %v3229 = vadd.f32 0.0, %v3228
    %3230 = vmatmul.bf16.gmra.mxu0 %v2226
    %v3231 = vpop.f32.mrf.mxu0
    %v3232 = vadd.f32 0.0, %v3231
    %v3233 = vpop.f32.mrf.mxu0
    %v3234 = vadd.f32 0.0, %v3233
    %3235 = vmatmul.bf16.gmra.mxu0 %v2228
    %v3236 = vpop.f32.mrf.mxu0
    %v3237 = vadd.f32 0.0, %v3236
    %v3238 = vpop.f32.mrf.mxu0
    %v3239 = vadd.f32 0.0, %v3238
    %3240 = vmatmul.bf16.gmra.mxu0 %v2230
    %v3241 = vpop.f32.mrf.mxu0
    %v3242 = vadd.f32 0.0, %v3241
    %v3243 = vpop.f32.mrf.mxu0
    %v3244 = vadd.f32 0.0, %v3243
    %3245 = vmatmul.bf16.gmra.mxu0 %v2232
    %v3246 = vpop.f32.mrf.mxu0
    %v3247 = vadd.f32 0.0, %v3246
    %v3248 = vpop.f32.mrf.mxu0
    %v3249 = vadd.f32 0.0, %v3248
    %3250 = vdwg.mxu0
    %3251 = vmatpush.bf16.msra.mxu0 %v3168
    %3252 = vmatpush.bf16.msra.mxu0 %v3166
    %3253 = vmatpush.bf16.msra.mxu0 %v3164
    %3254 = vmatpush.bf16.msra.mxu0 %v3162
    %3255 = vmatpush.bf16.msra.mxu0 %v3160
    %3256 = vmatpush.bf16.msra.mxu0 %v3158
    %3257 = vmatpush.bf16.msra.mxu0 %v3156
    %3258 = vmatpush.bf16.msra.mxu0 %v3154
    %3259 = vmatmul.bf16.gmra.mxu0 %v2219
    %v3260 = vpop.f32.mrf.mxu0
    %v3261 = vadd.f32 %v3212, %v3260
    %v3262 = vpop.f32.mrf.mxu0
    %v3263 = vadd.f32 %v3214, %v3262
    %3264 = vmatmul.bf16.gmra.mxu0 %v2221
    %v3265 = vpop.f32.mrf.mxu0
    %v3266 = vadd.f32 %v3217, %v3265
    %v3267 = vpop.f32.mrf.mxu0
    %v3268 = vadd.f32 %v3219, %v3267
    %3269 = vmatmul.bf16.gmra.mxu0 %v2223
    %v3270 = vpop.f32.mrf.mxu0
    %v3271 = vadd.f32 %v3222, %v3270
    %v3272 = vpop.f32.mrf.mxu0
    %v3273 = vadd.f32 %v3224, %v3272
    %3274 = vmatmul.bf16.gmra.mxu0 %v2225
    %v3275 = vpop.f32.mrf.mxu0
    %v3276 = vadd.f32 %v3227, %v3275
    %v3277 = vpop.f32.mrf.mxu0
    %v3278 = vadd.f32 %v3229, %v3277
    %3279 = vmatmul.bf16.gmra.mxu0 %v2227
    %v3280 = vpop.f32.mrf.mxu0
    %v3281 = vadd.f32 %v3232, %v3280
    %v3282 = vpop.f32.mrf.mxu0
    %v3283 = vadd.f32 %v3234, %v3282
    %3284 = vmatmul.bf16.gmra.mxu0 %v2229
    %v3285 = vpop.f32.mrf.mxu0
    %v3286 = vadd.f32 %v3237, %v3285
    %v3287 = vpop.f32.mrf.mxu0
    %v3288 = vadd.f32 %v3239, %v3287
    %3289 = vmatmul.bf16.gmra.mxu0 %v2231
    %v3290 = vpop.f32.mrf.mxu0
    %v3291 = vadd.f32 %v3242, %v3290
    %v3292 = vpop.f32.mrf.mxu0
    %v3293 = vadd.f32 %v3244, %v3292
    %3294 = vmatmul.bf16.gmra.mxu0 %v2233
    %v3295 = vpop.f32.mrf.mxu0
    %v3296 = vadd.f32 %v3247, %v3295
    %v3297 = vpop.f32.mrf.mxu0
    %v3298 = vadd.f32 %v3249, %v3297
    %3299 = vdwg.mxu0
    %3300 = vmatpush.bf16.msra.mxu0 %v3153
    %3301 = vmatpush.bf16.msra.mxu0 %v3151
    %3302 = vmatpush.bf16.msra.mxu0 %v3149
    %3303 = vmatpush.bf16.msra.mxu0 %v3147
    %3304 = vmatpush.bf16.msra.mxu0 %v3145
    %3305 = vmatpush.bf16.msra.mxu0 %v3143
    %3306 = vmatpush.bf16.msra.mxu0 %v3141
    %3307 = vmatpush.bf16.msra.mxu0 %v3139
    %3308 = vmatmul.bf16.gmra.mxu0 %v2218
    %v3309 = vpop.f32.mrf.mxu0
    %v3310 = vadd.f32 0.0, %v3309
    %v3311 = vpop.f32.mrf.mxu0
    %v3312 = vadd.f32 0.0, %v3311
    %3313 = vmatmul.bf16.gmra.mxu0 %v2220
    %v3314 = vpop.f32.mrf.mxu0
    %v3315 = vadd.f32 0.0, %v3314
    %v3316 = vpop.f32.mrf.mxu0
    %v3317 = vadd.f32 0.0, %v3316
    %3318 = vmatmul.bf16.gmra.mxu0 %v2222
    %v3319 = vpop.f32.mrf.mxu0
    %v3320 = vadd.f32 0.0, %v3319
    %v3321 = vpop.f32.mrf.mxu0
    %v3322 = vadd.f32 0.0, %v3321
    %3323 = vmatmul.bf16.gmra.mxu0 %v2224
    %v3324 = vpop.f32.mrf.mxu0
    %v3325 = vadd.f32 0.0, %v3324
    %v3326 = vpop.f32.mrf.mxu0
    %v3327 = vadd.f32 0.0, %v3326
    %3328 = vmatmul.bf16.gmra.mxu0 %v2226
    %v3329 = vpop.f32.mrf.mxu0
    %v3330 = vadd.f32 0.0, %v3329
    %v3331 = vpop.f32.mrf.mxu0
    %v3332 = vadd.f32 0.0, %v3331
    %3333 = vmatmul.bf16.gmra.mxu0 %v2228
    %v3334 = vpop.f32.mrf.mxu0
    %v3335 = vadd.f32 0.0, %v3334
    %v3336 = vpop.f32.mrf.mxu0
    %v3337 = vadd.f32 0.0, %v3336
    %3338 = vmatmul.bf16.gmra.mxu0 %v2230
    %v3339 = vpop.f32.mrf.mxu0
    %v3340 = vadd.f32 0.0, %v3339
    %v3341 = vpop.f32.mrf.mxu0
    %v3342 = vadd.f32 0.0, %v3341
    %3343 = vmatmul.bf16.gmra.mxu0 %v2232
    %v3344 = vpop.f32.mrf.mxu0
    %v3345 = vadd.f32 0.0, %v3344
    %v3346 = vpop.f32.mrf.mxu0
    %v3347 = vadd.f32 0.0, %v3346
    %3348 = vdwg.mxu0
    %3349 = vmatpush.bf16.msra.mxu0 %v3169
    %3350 = vmatpush.bf16.msra.mxu0 %v3167
    %3351 = vmatpush.bf16.msra.mxu0 %v3165
    %3352 = vmatpush.bf16.msra.mxu0 %v3163
    %3353 = vmatpush.bf16.msra.mxu0 %v3161
    %3354 = vmatpush.bf16.msra.mxu0 %v3159
    %3355 = vmatpush.bf16.msra.mxu0 %v3157
    %3356 = vmatpush.bf16.msra.mxu0 %v3155
    %3357 = vmatmul.bf16.gmra.mxu0 %v2219
    %v3358 = vpop.f32.mrf.mxu0
    %v3359 = vadd.f32 %v3310, %v3358
    %v3360 = vpop.f32.mrf.mxu0
    %v3361 = vadd.f32 %v3312, %v3360
    %3362 = vmatmul.bf16.gmra.mxu0 %v2221
    %v3363 = vpop.f32.mrf.mxu0
    %v3364 = vadd.f32 %v3315, %v3363
    %v3365 = vpop.f32.mrf.mxu0
    %v3366 = vadd.f32 %v3317, %v3365
    %3367 = vmatmul.bf16.gmra.mxu0 %v2223
    %v3368 = vpop.f32.mrf.mxu0
    %v3369 = vadd.f32 %v3320, %v3368
    %v3370 = vpop.f32.mrf.mxu0
    %v3371 = vadd.f32 %v3322, %v3370
    %3372 = vmatmul.bf16.gmra.mxu0 %v2225
    %v3373 = vpop.f32.mrf.mxu0
    %v3374 = vadd.f32 %v3325, %v3373
    %v3375 = vpop.f32.mrf.mxu0
    %v3376 = vadd.f32 %v3327, %v3375
    %3377 = vmatmul.bf16.gmra.mxu0 %v2227
    %v3378 = vpop.f32.mrf.mxu0
    %v3379 = vadd.f32 %v3330, %v3378
    %v3380 = vpop.f32.mrf.mxu0
    %v3381 = vadd.f32 %v3332, %v3380
    %3382 = vmatmul.bf16.gmra.mxu0 %v2229
    %v3383 = vpop.f32.mrf.mxu0
    %v3384 = vadd.f32 %v3335, %v3383
    %v3385 = vpop.f32.mrf.mxu0
    %v3386 = vadd.f32 %v3337, %v3385
    %3387 = vmatmul.bf16.gmra.mxu0 %v2231
    %v3388 = vpop.f32.mrf.mxu0
    %v3389 = vadd.f32 %v3340, %v3388
    %v3390 = vpop.f32.mrf.mxu0
    %v3391 = vadd.f32 %v3342, %v3390
    %3392 = vmatmul.bf16.gmra.mxu0 %v2233
    %v3393 = vpop.f32.mrf.mxu0
    %v3394 = vadd.f32 %v3345, %v3393
    %v3395 = vpop.f32.mrf.mxu0
    %v3396 = vadd.f32 %v3347, %v3395
    %3397 = vdwg.mxu0
    %v3398 = vpack.c.bf16 %v2679, %v2677
    %v3399 = vpack.c.bf16 %v2684, %v2682
    %v3400 = vpack.c.bf16 %v2689, %v2687
    %v3401 = vpack.c.bf16 %v2694, %v2692
    %v3402 = vpack.c.bf16 %v2875, %v2873
    %v3403 = vpack.c.bf16 %v2880, %v2878
    %v3404 = vpack.c.bf16 %v2885, %v2883
    %v3405 = vpack.c.bf16 %v2890, %v2888
    %v3406 = vpack.c.bf16 %v3263, %v3261
    %v3407 = vpack.c.bf16 %v3268, %v3266
    %v3408 = vpack.c.bf16 %v3273, %v3271
    %v3409 = vpack.c.bf16 %v3278, %v3276
    %vm3410 = vcmask 523264
    %v3412 = vsel %vm3410, %v3398, 0
    %v3415 = vsel %vm3410, %v3399, 0
    %v3418 = vsel %vm3410, %v3400, 0
    %v3421 = vsel %vm3410, %v3401, 0
    %v3424 = vsel %vm3410, %v3406, 0
    %v3427 = vsel %vm3410, %v3407, 0
    %v3430 = vsel %vm3410, %v3408, 0
    %v3433 = vsel %vm3410, %v3409, 0
    %3435 = vmatpush.bf16.xpose.msra.mxu0 0
    %3436 = vmatpush.bf16.xpose.msra.mxu0 0
    %3437 = vmatpush.bf16.xpose.msra.mxu0 0
    %3438 = vmatpush.bf16.xpose.msra.mxu0 0
    %3439 = vmatpush.bf16.xpose.msra.mxu0 %v3433
    %3440 = vmatpush.bf16.xpose.msra.mxu0 %v3430
    %3441 = vmatpush.bf16.xpose.msra.mxu0 %v3427
    %3442 = vmatpush.bf16.xpose.msra.mxu0 %v3424
    %3443 = vmatmul.bf16.gmra.mxu0 %v3412
    %v3444 = vpop.f32.mrf.mxu0
    %v3445 = vadd.f32 0.0, %v3444
    %v3446 = vpop.f32.mrf.mxu0
    %v3447 = vadd.f32 0.0, %v3446
    %3448 = vmatmul.bf16.gmra.mxu0 %v3415
    %v3449 = vpop.f32.mrf.mxu0
    %v3450 = vadd.f32 0.0, %v3449
    %v3451 = vpop.f32.mrf.mxu0
    %v3452 = vadd.f32 0.0, %v3451
    %3453 = vmatmul.bf16.gmra.mxu0 %v3418
    %v3454 = vpop.f32.mrf.mxu0
    %v3455 = vadd.f32 0.0, %v3454
    %v3456 = vpop.f32.mrf.mxu0
    %v3457 = vadd.f32 0.0, %v3456
    %3458 = vmatmul.bf16.gmra.mxu0 %v3421
    %v3459 = vpop.f32.mrf.mxu0
    %v3460 = vadd.f32 0.0, %v3459
    %v3461 = vpop.f32.mrf.mxu0
    %v3462 = vadd.f32 0.0, %v3461
    %3463 = vdwg.mxu0
    %v3464 = vsel %vm3410, %v3445, -inf
    %3465 = vmax.xlane.f32.xlu0 %v3464
    %v3466 = vpop.xlane.xlu0 %3465
    %v3467 = vsel %vm3410, %v3447, -inf
    %3468 = vmax.xlane.f32.xlu0 %v3467
    %v3469 = vpop.xlane.xlu0 %3468
    %v3470 = vsel %vm3410, %v3450, -inf
    %3471 = vmax.xlane.f32.xlu0 %v3470
    %v3472 = vpop.xlane.xlu0 %3471
    %v3473 = vsel %vm3410, %v3452, -inf
    %3474 = vmax.xlane.f32.xlu0 %v3473
    %v3475 = vpop.xlane.xlu0 %3474
    %v3476 = vsel %vm3410, %v3455, -inf
    %3477 = vmax.xlane.f32.xlu0 %v3476
    %v3478 = vpop.xlane.xlu0 %3477
    %v3479 = vsel %vm3410, %v3457, -inf
    %3480 = vmax.xlane.f32.xlu0 %v3479
    %v3481 = vpop.xlane.xlu0 %3480
    %v3482 = vsel %vm3410, %v3460, -inf
    %3483 = vmax.xlane.f32.xlu0 %v3482
    %v3484 = vpop.xlane.xlu0 %3483
    %v3485 = vsel %vm3410, %v3462, -inf
    %3486 = vmax.xlane.f32.xlu0 %v3485
    %v3487 = vpop.xlane.xlu0 %3486
    %v3488 = vsub.f32 %v3445, %v3466
    %v3489 = vsub.f32 %v3447, %v3469
    %v3490 = vsub.f32 %v3450, %v3472
    %v3491 = vsub.f32 %v3452, %v3475
    %v3492 = vsub.f32 %v3455, %v3478
    %v3493 = vsub.f32 %v3457, %v3481
    %v3494 = vsub.f32 %v3460, %v3484
    %v3495 = vsub.f32 %v3462, %v3487
    %v3496 = vmul.f32 %v3488, 1.442695
    %v3497 = vpow.pop %v3496
    %v3498 = vmul.f32 %v3489, 1.442695
    %v3499 = vpow.pop %v3498
    %v3500 = vmul.f32 %v3490, 1.442695
    %v3501 = vpow.pop %v3500
    %v3502 = vmul.f32 %v3491, 1.442695
    %v3503 = vpow.pop %v3502
    %v3504 = vmul.f32 %v3492, 1.442695
    %v3505 = vpow.pop %v3504
    %v3506 = vmul.f32 %v3493, 1.442695
    %v3507 = vpow.pop %v3506
    %v3508 = vmul.f32 %v3494, 1.442695
    %v3509 = vpow.pop %v3508
    %v3510 = vmul.f32 %v3495, 1.442695
    %v3511 = vpow.pop %v3510
    %v3512 = vsel %vm3410, %v3497, 0.0
    %3513 = vadd.xlane.f32.xlu0 %v3512
    %v3514 = vpop.xlane.xlu0 %3513
    %v3515 = vsel %vm3410, %v3499, 0.0
    %3516 = vadd.xlane.f32.xlu0 %v3515
    %v3517 = vpop.xlane.xlu0 %3516
    %v3518 = vsel %vm3410, %v3501, 0.0
    %3519 = vadd.xlane.f32.xlu0 %v3518
    %v3520 = vpop.xlane.xlu0 %3519
    %v3521 = vsel %vm3410, %v3503, 0.0
    %3522 = vadd.xlane.f32.xlu0 %v3521
    %v3523 = vpop.xlane.xlu0 %3522
    %v3524 = vsel %vm3410, %v3505, 0.0
    %3525 = vadd.xlane.f32.xlu0 %v3524
    %v3526 = vpop.xlane.xlu0 %3525
    %v3527 = vsel %vm3410, %v3507, 0.0
    %3528 = vadd.xlane.f32.xlu0 %v3527
    %v3529 = vpop.xlane.xlu0 %3528
    %v3530 = vsel %vm3410, %v3509, 0.0
    %3531 = vadd.xlane.f32.xlu0 %v3530
    %v3532 = vpop.xlane.xlu0 %3531
    %v3533 = vsel %vm3410, %v3511, 0.0
    %3534 = vadd.xlane.f32.xlu0 %v3533
    %v3535 = vpop.xlane.xlu0 %3534
    %v3536 = vrcp.pop %v3514
    %v3537 = vrcp.pop %v3517
    %v3538 = vrcp.pop %v3520
    %v3539 = vrcp.pop %v3523
    %v3540 = vrcp.pop %v3526
    %v3541 = vrcp.pop %v3529
    %v3542 = vrcp.pop %v3532
    %v3543 = vrcp.pop %v3535
    %v3544 = vmul.f32 %v3497, %v3536
    %v3545 = vmul.f32 %v3499, %v3537
    %v3546 = vmul.f32 %v3501, %v3538
    %v3547 = vmul.f32 %v3503, %v3539
    %v3548 = vmul.f32 %v3505, %v3540
    %v3549 = vmul.f32 %v3507, %v3541
    %v3550 = vmul.f32 %v3509, %v3542
    %v3551 = vmul.f32 %v3511, %v3543
    %v3552 = vpack.c.bf16 %v3545, %v3544
    %v3553 = vpack.c.bf16 %v3547, %v3546
    %v3554 = vpack.c.bf16 %v3549, %v3548
    %v3555 = vpack.c.bf16 %v3551, %v3550
    %v3557 = vsel %vm3410, %v3552, 0
    %v3560 = vsel %vm3410, %v3553, 0
    %v3563 = vsel %vm3410, %v3554, 0
    %v3566 = vsel %vm3410, %v3555, 0
    %3568 = vmatpush.bf16.msra.mxu0 0
    %3569 = vmatpush.bf16.msra.mxu0 0
    %3570 = vmatpush.bf16.msra.mxu0 0
    %3571 = vmatpush.bf16.msra.mxu0 0
    %3572 = vmatpush.bf16.msra.mxu0 %v3405
    %3573 = vmatpush.bf16.msra.mxu0 %v3404
    %3574 = vmatpush.bf16.msra.mxu0 %v3403
    %3575 = vmatpush.bf16.msra.mxu0 %v3402
    %3576 = vmatmul.bf16.gmra.mxu0 %v3557
    %v3577 = vpop.f32.mrf.mxu0
    %v3578 = vadd.f32 0.0, %v3577
    %v3579 = vpop.f32.mrf.mxu0
    %v3580 = vadd.f32 0.0, %v3579
    %3581 = vmatmul.bf16.gmra.mxu0 %v3560
    %v3582 = vpop.f32.mrf.mxu0
    %v3583 = vadd.f32 0.0, %v3582
    %v3584 = vpop.f32.mrf.mxu0
    %v3585 = vadd.f32 0.0, %v3584
    %3586 = vmatmul.bf16.gmra.mxu0 %v3563
    %v3587 = vpop.f32.mrf.mxu0
    %v3588 = vadd.f32 0.0, %v3587
    %v3589 = vpop.f32.mrf.mxu0
    %v3590 = vadd.f32 0.0, %v3589
    %3591 = vmatmul.bf16.gmra.mxu0 %v3566
    %v3592 = vpop.f32.mrf.mxu0
    %v3593 = vadd.f32 0.0, %v3592
    %v3594 = vpop.f32.mrf.mxu0
    %v3595 = vadd.f32 0.0, %v3594
    %3596 = vdwg.mxu0
    %v3597 = vpack.c.bf16 %v3578, %v3578
    %v3598 = vpack.c.bf16 %v3580, %v3580
    %v3599 = vpack.c.bf16 %v3583, %v3583
    %v3600 = vpack.c.bf16 %v3585, %v3585
    %v3601 = vpack.c.bf16 %v3588, %v3588
    %v3602 = vpack.c.bf16 %v3590, %v3590
    %v3603 = vpack.c.bf16 %v3593, %v3593
    %v3604 = vpack.c.bf16 %v3595, %v3595
    %vm3605 = vcmask 519168
    %3606 = vst.msk [vmem:[#allocation16] sm:$0xf] %vm3605, %v3597
    %3607 = vst.msk [vmem:[#allocation16 + $0x8] sm:$0xf] %vm3605, %v3598
    %3608 = vst.msk [vmem:[#allocation16 + $0x10] sm:$0xf] %vm3605, %v3599
    %3609 = vst.msk [vmem:[#allocation16 + $0x18] sm:$0xf] %vm3605, %v3600
    %3610 = vst.msk [vmem:[#allocation16 + $0x20] sm:$0xf] %vm3605, %v3601
    %3611 = vst.msk [vmem:[#allocation16 + $0x28] sm:$0xf] %vm3605, %v3602
    %3612 = vst.msk [vmem:[#allocation16 + $0x30] sm:$0xf] %vm3605, %v3603
    %3613 = vst.msk [vmem:[#allocation16 + $0x38] sm:$0xf] %vm3605, %v3604
    %3618 = vrot.lane.b32.xlu0 %v3398, 64
    %v3619 = vpop.permute.xlu0 %3618
    %3620 = vrot.lane.b32.xlu0 %v3399, 64
    %v3621 = vpop.permute.xlu0 %3620
    %3622 = vrot.lane.b32.xlu0 %v3400, 64
    %v3623 = vpop.permute.xlu0 %3622
    %3624 = vrot.lane.b32.xlu0 %v3401, 64
    %v3625 = vpop.permute.xlu0 %3624
    %3630 = vrot.lane.b32.xlu0 %v3406, 64
    %v3631 = vpop.permute.xlu0 %3630
    %3632 = vrot.lane.b32.xlu0 %v3407, 64
    %v3633 = vpop.permute.xlu0 %3632
    %3634 = vrot.lane.b32.xlu0 %v3408, 64
    %v3635 = vpop.permute.xlu0 %3634
    %3636 = vrot.lane.b32.xlu0 %v3409, 64
    %v3637 = vpop.permute.xlu0 %3636
    %v3639 = vsel %vm3410, %v3619, 0
    %v3642 = vsel %vm3410, %v3621, 0
    %v3645 = vsel %vm3410, %v3623, 0
    %v3648 = vsel %vm3410, %v3625, 0
    %v3651 = vsel %vm3410, %v3631, 0
    %v3654 = vsel %vm3410, %v3633, 0
    %v3657 = vsel %vm3410, %v3635, 0
    %v3660 = vsel %vm3410, %v3637, 0
    %3662 = vmatpush.bf16.xpose.msra.mxu0 0
    %3663 = vmatpush.bf16.xpose.msra.mxu0 0
    %3664 = vmatpush.bf16.xpose.msra.mxu0 0
    %3665 = vmatpush.bf16.xpose.msra.mxu0 0
    %3666 = vmatpush.bf16.xpose.msra.mxu0 %v3660
    %3667 = vmatpush.bf16.xpose.msra.mxu0 %v3657
    %3668 = vmatpush.bf16.xpose.msra.mxu0 %v3654
    %3669 = vmatpush.bf16.xpose.msra.mxu0 %v3651
    %3670 = vmatmul.bf16.gmra.mxu0 %v3639
    %v3671 = vpop.f32.mrf.mxu0
    %v3672 = vadd.f32 0.0, %v3671
    %v3673 = vpop.f32.mrf.mxu0
    %v3674 = vadd.f32 0.0, %v3673
    %3675 = vmatmul.bf16.gmra.mxu0 %v3642
    %v3676 = vpop.f32.mrf.mxu0
    %v3677 = vadd.f32 0.0, %v3676
    %v3678 = vpop.f32.mrf.mxu0
    %v3679 = vadd.f32 0.0, %v3678
    %3680 = vmatmul.bf16.gmra.mxu0 %v3645
    %v3681 = vpop.f32.mrf.mxu0
    %v3682 = vadd.f32 0.0, %v3681
    %v3683 = vpop.f32.mrf.mxu0
    %v3684 = vadd.f32 0.0, %v3683
    %3685 = vmatmul.bf16.gmra.mxu0 %v3648
    %v3686 = vpop.f32.mrf.mxu0
    %v3687 = vadd.f32 0.0, %v3686
    %v3688 = vpop.f32.mrf.mxu0
    %v3689 = vadd.f32 0.0, %v3688
    %3690 = vdwg.mxu0
    %v3691 = vsel %vm3410, %v3672, -inf
    %3692 = vmax.xlane.f32.xlu0 %v3691
    %v3693 = vpop.xlane.xlu0 %3692
    %v3694 = vsel %vm3410, %v3674, -inf
    %3695 = vmax.xlane.f32.xlu0 %v3694
    %v3696 = vpop.xlane.xlu0 %3695
    %v3697 = vsel %vm3410, %v3677, -inf
    %3698 = vmax.xlane.f32.xlu0 %v3697
    %v3699 = vpop.xlane.xlu0 %3698
    %v3700 = vsel %vm3410, %v3679, -inf
    %3701 = vmax.xlane.f32.xlu0 %v3700
    %v3702 = vpop.xlane.xlu0 %3701
    %v3703 = vsel %vm3410, %v3682, -inf
    %3704 = vmax.xlane.f32.xlu0 %v3703
    %v3705 = vpop.xlane.xlu0 %3704
    %v3706 = vsel %vm3410, %v3684, -inf
    %3707 = vmax.xlane.f32.xlu0 %v3706
    %v3708 = vpop.xlane.xlu0 %3707
    %v3709 = vsel %vm3410, %v3687, -inf
    %3710 = vmax.xlane.f32.xlu0 %v3709
    %v3711 = vpop.xlane.xlu0 %3710
    %v3712 = vsel %vm3410, %v3689, -inf
    %3713 = vmax.xlane.f32.xlu0 %v3712
    %v3714 = vpop.xlane.xlu0 %3713
    %v3715 = vsub.f32 %v3672, %v3693
    %v3716 = vsub.f32 %v3674, %v3696
    %v3717 = vsub.f32 %v3677, %v3699
    %v3718 = vsub.f32 %v3679, %v3702
    %v3719 = vsub.f32 %v3682, %v3705
    %v3720 = vsub.f32 %v3684, %v3708
    %v3721 = vsub.f32 %v3687, %v3711
    %v3722 = vsub.f32 %v3689, %v3714
    %v3723 = vmul.f32 %v3715, 1.442695
    %v3724 = vpow.pop %v3723
    %v3725 = vmul.f32 %v3716, 1.442695
    %v3726 = vpow.pop %v3725
    %v3727 = vmul.f32 %v3717, 1.442695
    %v3728 = vpow.pop %v3727
    %v3729 = vmul.f32 %v3718, 1.442695
    %v3730 = vpow.pop %v3729
    %v3731 = vmul.f32 %v3719, 1.442695
    %v3732 = vpow.pop %v3731
    %v3733 = vmul.f32 %v3720, 1.442695
    %v3734 = vpow.pop %v3733
    %v3735 = vmul.f32 %v3721, 1.442695
    %v3736 = vpow.pop %v3735
    %v3737 = vmul.f32 %v3722, 1.442695
    %v3738 = vpow.pop %v3737
    %v3739 = vsel %vm3410, %v3724, 0.0
    %3740 = vadd.xlane.f32.xlu0 %v3739
    %v3741 = vpop.xlane.xlu0 %3740
    %v3742 = vsel %vm3410, %v3726, 0.0
    %3743 = vadd.xlane.f32.xlu0 %v3742
    %v3744 = vpop.xlane.xlu0 %3743
    %v3745 = vsel %vm3410, %v3728, 0.0
    %3746 = vadd.xlane.f32.xlu0 %v3745
    %v3747 = vpop.xlane.xlu0 %3746
    %v3748 = vsel %vm3410, %v3730, 0.0
    %3749 = vadd.xlane.f32.xlu0 %v3748
    %v3750 = vpop.xlane.xlu0 %3749
    %v3751 = vsel %vm3410, %v3732, 0.0
    %3752 = vadd.xlane.f32.xlu0 %v3751
    %v3753 = vpop.xlane.xlu0 %3752
    %v3754 = vsel %vm3410, %v3734, 0.0
    %3755 = vadd.xlane.f32.xlu0 %v3754
    %v3756 = vpop.xlane.xlu0 %3755
    %v3757 = vsel %vm3410, %v3736, 0.0
    %3758 = vadd.xlane.f32.xlu0 %v3757
    %v3759 = vpop.xlane.xlu0 %3758
    %v3760 = vsel %vm3410, %v3738, 0.0
    %3761 = vadd.xlane.f32.xlu0 %v3760
    %v3762 = vpop.xlane.xlu0 %3761
    %v3763 = vrcp.pop %v3741
    %v3764 = vrcp.pop %v3744
    %v3765 = vrcp.pop %v3747
    %v3766 = vrcp.pop %v3750
    %v3767 = vrcp.pop %v3753
    %v3768 = vrcp.pop %v3756
    %v3769 = vrcp.pop %v3759
    %v3770 = vrcp.pop %v3762
    %v3771 = vmul.f32 %v3724, %v3763
    %v3772 = vmul.f32 %v3726, %v3764
    %v3773 = vmul.f32 %v3728, %v3765
    %v3774 = vmul.f32 %v3730, %v3766
    %v3775 = vmul.f32 %v3732, %v3767
    %v3776 = vmul.f32 %v3734, %v3768
    %v3777 = vmul.f32 %v3736, %v3769
    %v3778 = vmul.f32 %v3738, %v3770
    %v3779 = vpack.c.bf16 %v3772, %v3771
    %v3780 = vpack.c.bf16 %v3774, %v3773
    %v3781 = vpack.c.bf16 %v3776, %v3775
    %v3782 = vpack.c.bf16 %v3778, %v3777
    %3787 = vrot.lane.b32.xlu0 %v3402, 64
    %v3788 = vpop.permute.xlu0 %3787
    %3789 = vrot.lane.b32.xlu0 %v3403, 64
    %v3790 = vpop.permute.xlu0 %3789
    %3791 = vrot.lane.b32.xlu0 %v3404, 64
    %v3792 = vpop.permute.xlu0 %3791
    %3793 = vrot.lane.b32.xlu0 %v3405, 64
    %v3794 = vpop.permute.xlu0 %3793
    %v3800 = vsel %vm3410, %v3779, 0
    %v3803 = vsel %vm3410, %v3780, 0
    %v3806 = vsel %vm3410, %v3781, 0
    %v3809 = vsel %vm3410, %v3782, 0
    %3811 = vmatpush.bf16.msra.mxu0 0
    %3812 = vmatpush.bf16.msra.mxu0 0
    %3813 = vmatpush.bf16.msra.mxu0 0
    %3814 = vmatpush.bf16.msra.mxu0 0
    %3815 = vmatpush.bf16.msra.mxu0 %v3794
    %3816 = vmatpush.bf16.msra.mxu0 %v3792
    %3817 = vmatpush.bf16.msra.mxu0 %v3790
    %3818 = vmatpush.bf16.msra.mxu0 %v3788
    %3819 = vmatmul.bf16.gmra.mxu0 %v3800
    %v3820 = vpop.f32.mrf.mxu0
    %v3821 = vadd.f32 0.0, %v3820
    %v3822 = vpop.f32.mrf.mxu0
    %v3823 = vadd.f32 0.0, %v3822
    %3824 = vmatmul.bf16.gmra.mxu0 %v3803
    %v3825 = vpop.f32.mrf.mxu0
    %v3826 = vadd.f32 0.0, %v3825
    %v3827 = vpop.f32.mrf.mxu0
    %v3828 = vadd.f32 0.0, %v3827
    %3829 = vmatmul.bf16.gmra.mxu0 %v3806
    %v3830 = vpop.f32.mrf.mxu0
    %v3831 = vadd.f32 0.0, %v3830
    %v3832 = vpop.f32.mrf.mxu0
    %v3833 = vadd.f32 0.0, %v3832
    %3834 = vmatmul.bf16.gmra.mxu0 %v3809
    %v3835 = vpop.f32.mrf.mxu0
    %v3836 = vadd.f32 0.0, %v3835
    %v3837 = vpop.f32.mrf.mxu0
    %v3838 = vadd.f32 0.0, %v3837
    %3839 = vdwg.mxu0
    %v3840 = vpack.c.bf16 %v3821, %v3821
    %v3841 = vpack.c.bf16 %v3823, %v3823
    %v3842 = vpack.c.bf16 %v3826, %v3826
    %v3843 = vpack.c.bf16 %v3828, %v3828
    %v3844 = vpack.c.bf16 %v3831, %v3831
    %v3845 = vpack.c.bf16 %v3833, %v3833
    %v3846 = vpack.c.bf16 %v3836, %v3836
    %v3847 = vpack.c.bf16 %v3838, %v3838
    %3856 = vrot.lane.b32.xlu0 %v3840, 64
    %v3857 = vpop.permute.xlu0 %3856
    %3858 = vrot.lane.b32.xlu0 %v3841, 64
    %v3859 = vpop.permute.xlu0 %3858
    %3860 = vrot.lane.b32.xlu0 %v3842, 64
    %v3861 = vpop.permute.xlu0 %3860
    %3862 = vrot.lane.b32.xlu0 %v3843, 64
    %v3863 = vpop.permute.xlu0 %3862
    %3864 = vrot.lane.b32.xlu0 %v3844, 64
    %v3865 = vpop.permute.xlu0 %3864
    %3866 = vrot.lane.b32.xlu0 %v3845, 64
    %v3867 = vpop.permute.xlu0 %3866
    %3868 = vrot.lane.b32.xlu0 %v3846, 64
    %v3869 = vpop.permute.xlu0 %3868
    %3870 = vrot.lane.b32.xlu0 %v3847, 64
    %v3871 = vpop.permute.xlu0 %3870
    %vm3880 = vcmask 1043968
    %3881 = vst.msk [vmem:[#allocation16] sm:$0xf] %vm3880, %v3857
    %3882 = vst.msk [vmem:[#allocation16 + $0x8] sm:$0xf] %vm3880, %v3859
    %3883 = vst.msk [vmem:[#allocation16 + $0x10] sm:$0xf] %vm3880, %v3861
    %3884 = vst.msk [vmem:[#allocation16 + $0x18] sm:$0xf] %vm3880, %v3863
    %3885 = vst.msk [vmem:[#allocation16 + $0x20] sm:$0xf] %vm3880, %v3865
    %3886 = vst.msk [vmem:[#allocation16 + $0x28] sm:$0xf] %vm3880, %v3867
    %3887 = vst.msk [vmem:[#allocation16 + $0x30] sm:$0xf] %vm3880, %v3869
    %3888 = vst.msk [vmem:[#allocation16 + $0x38] sm:$0xf] %vm3880, %v3871
    %v3889 = vpack.c.bf16 %v2777, %v2775
    %v3890 = vpack.c.bf16 %v2782, %v2780
    %v3891 = vpack.c.bf16 %v2787, %v2785
    %v3892 = vpack.c.bf16 %v2792, %v2790
    %v3893 = vpack.c.bf16 %v2973, %v2971
    %v3894 = vpack.c.bf16 %v2978, %v2976
    %v3895 = vpack.c.bf16 %v2983, %v2981
    %v3896 = vpack.c.bf16 %v2988, %v2986
    %v3897 = vpack.c.bf16 %v3361, %v3359
    %v3898 = vpack.c.bf16 %v3366, %v3364
    %v3899 = vpack.c.bf16 %v3371, %v3369
    %v3900 = vpack.c.bf16 %v3376, %v3374
    %v3902 = vsel %vm3410, %v3889, 0
    %v3905 = vsel %vm3410, %v3890, 0
    %v3908 = vsel %vm3410, %v3891, 0
    %v3911 = vsel %vm3410, %v3892, 0
    %v3914 = vsel %vm3410, %v3897, 0
    %v3917 = vsel %vm3410, %v3898, 0
    %v3920 = vsel %vm3410, %v3899, 0
    %v3923 = vsel %vm3410, %v3900, 0
    %3925 = vmatpush.bf16.xpose.msra.mxu0 0
    %3926 = vmatpush.bf16.xpose.msra.mxu0 0
    %3927 = vmatpush.bf16.xpose.msra.mxu0 0
    %3928 = vmatpush.bf16.xpose.msra.mxu0 0
    %3929 = vmatpush.bf16.xpose.msra.mxu0 %v3923
    %3930 = vmatpush.bf16.xpose.msra.mxu0 %v3920
    %3931 = vmatpush.bf16.xpose.msra.mxu0 %v3917
    %3932 = vmatpush.bf16.xpose.msra.mxu0 %v3914
    %3933 = vmatmul.bf16.gmra.mxu0 %v3902
    %v3934 = vpop.f32.mrf.mxu0
    %v3935 = vadd.f32 0.0, %v3934
    %v3936 = vpop.f32.mrf.mxu0
    %v3937 = vadd.f32 0.0, %v3936
    %3938 = vmatmul.bf16.gmra.mxu0 %v3905
    %v3939 = vpop.f32.mrf.mxu0
    %v3940 = vadd.f32 0.0, %v3939
    %v3941 = vpop.f32.mrf.mxu0
    %v3942 = vadd.f32 0.0, %v3941
    %3943 = vmatmul.bf16.gmra.mxu0 %v3908
    %v3944 = vpop.f32.mrf.mxu0
    %v3945 = vadd.f32 0.0, %v3944
    %v3946 = vpop.f32.mrf.mxu0
    %v3947 = vadd.f32 0.0, %v3946
    %3948 = vmatmul.bf16.gmra.mxu0 %v3911
    %v3949 = vpop.f32.mrf.mxu0
    %v3950 = vadd.f32 0.0, %v3949
    %v3951 = vpop.f32.mrf.mxu0
    %v3952 = vadd.f32 0.0, %v3951
    %3953 = vdwg.mxu0
    %v3954 = vsel %vm3410, %v3935, -inf
    %3955 = vmax.xlane.f32.xlu0 %v3954
    %v3956 = vpop.xlane.xlu0 %3955
    %v3957 = vsel %vm3410, %v3937, -inf
    %3958 = vmax.xlane.f32.xlu0 %v3957
    %v3959 = vpop.xlane.xlu0 %3958
    %v3960 = vsel %vm3410, %v3940, -inf
    %3961 = vmax.xlane.f32.xlu0 %v3960
    %v3962 = vpop.xlane.xlu0 %3961
    %v3963 = vsel %vm3410, %v3942, -inf
    %3964 = vmax.xlane.f32.xlu0 %v3963
    %v3965 = vpop.xlane.xlu0 %3964
    %v3966 = vsel %vm3410, %v3945, -inf
    %3967 = vmax.xlane.f32.xlu0 %v3966
    %v3968 = vpop.xlane.xlu0 %3967
    %v3969 = vsel %vm3410, %v3947, -inf
    %3970 = vmax.xlane.f32.xlu0 %v3969
    %v3971 = vpop.xlane.xlu0 %3970
    %v3972 = vsel %vm3410, %v3950, -inf
    %3973 = vmax.xlane.f32.xlu0 %v3972
    %v3974 = vpop.xlane.xlu0 %3973
    %v3975 = vsel %vm3410, %v3952, -inf
    %3976 = vmax.xlane.f32.xlu0 %v3975
    %v3977 = vpop.xlane.xlu0 %3976
    %v3978 = vsub.f32 %v3935, %v3956
    %v3979 = vsub.f32 %v3937, %v3959
    %v3980 = vsub.f32 %v3940, %v3962
    %v3981 = vsub.f32 %v3942, %v3965
    %v3982 = vsub.f32 %v3945, %v3968
    %v3983 = vsub.f32 %v3947, %v3971
    %v3984 = vsub.f32 %v3950, %v3974
    %v3985 = vsub.f32 %v3952, %v3977
    %v3986 = vmul.f32 %v3978, 1.442695
    %v3987 = vpow.pop %v3986
    %v3988 = vmul.f32 %v3979, 1.442695
    %v3989 = vpow.pop %v3988
    %v3990 = vmul.f32 %v3980, 1.442695
    %v3991 = vpow.pop %v3990
    %v3992 = vmul.f32 %v3981, 1.442695
    %v3993 = vpow.pop %v3992
    %v3994 = vmul.f32 %v3982, 1.442695
    %v3995 = vpow.pop %v3994
    %v3996 = vmul.f32 %v3983, 1.442695
    %v3997 = vpow.pop %v3996
    %v3998 = vmul.f32 %v3984, 1.442695
    %v3999 = vpow.pop %v3998
    %v4000 = vmul.f32 %v3985, 1.442695
    %v4001 = vpow.pop %v4000
    %v4002 = vsel %vm3410, %v3987, 0.0
    %4003 = vadd.xlane.f32.xlu0 %v4002
    %v4004 = vpop.xlane.xlu0 %4003
    %v4005 = vsel %vm3410, %v3989, 0.0
    %4006 = vadd.xlane.f32.xlu0 %v4005
    %v4007 = vpop.xlane.xlu0 %4006
    %v4008 = vsel %vm3410, %v3991, 0.0
    %4009 = vadd.xlane.f32.xlu0 %v4008
    %v4010 = vpop.xlane.xlu0 %4009
    %v4011 = vsel %vm3410, %v3993, 0.0
    %4012 = vadd.xlane.f32.xlu0 %v4011
    %v4013 = vpop.xlane.xlu0 %4012
    %v4014 = vsel %vm3410, %v3995, 0.0
    %4015 = vadd.xlane.f32.xlu0 %v4014
    %v4016 = vpop.xlane.xlu0 %4015
    %v4017 = vsel %vm3410, %v3997, 0.0
    %4018 = vadd.xlane.f32.xlu0 %v4017
    %v4019 = vpop.xlane.xlu0 %4018
    %v4020 = vsel %vm3410, %v3999, 0.0
    %4021 = vadd.xlane.f32.xlu0 %v4020
    %v4022 = vpop.xlane.xlu0 %4021
    %v4023 = vsel %vm3410, %v4001, 0.0
    %4024 = vadd.xlane.f32.xlu0 %v4023
    %v4025 = vpop.xlane.xlu0 %4024
    %v4026 = vrcp.pop %v4004
    %v4027 = vrcp.pop %v4007
    %v4028 = vrcp.pop %v4010
    %v4029 = vrcp.pop %v4013
    %v4030 = vrcp.pop %v4016
    %v4031 = vrcp.pop %v4019
    %v4032 = vrcp.pop %v4022
    %v4033 = vrcp.pop %v4025
    %v4034 = vmul.f32 %v3987, %v4026
    %v4035 = vmul.f32 %v3989, %v4027
    %v4036 = vmul.f32 %v3991, %v4028
    %v4037 = vmul.f32 %v3993, %v4029
    %v4038 = vmul.f32 %v3995, %v4030
    %v4039 = vmul.f32 %v3997, %v4031
    %v4040 = vmul.f32 %v3999, %v4032
    %v4041 = vmul.f32 %v4001, %v4033
    %v4042 = vpack.c.bf16 %v4035, %v4034
    %v4043 = vpack.c.bf16 %v4037, %v4036
    %v4044 = vpack.c.bf16 %v4039, %v4038
    %v4045 = vpack.c.bf16 %v4041, %v4040
    %v4047 = vsel %vm3410, %v4042, 0
    %v4050 = vsel %vm3410, %v4043, 0
    %v4053 = vsel %vm3410, %v4044, 0
    %v4056 = vsel %vm3410, %v4045, 0
    %4058 = vmatpush.bf16.msra.mxu0 0
    %4059 = vmatpush.bf16.msra.mxu0 0
    %4060 = vmatpush.bf16.msra.mxu0 0
    %4061 = vmatpush.bf16.msra.mxu0 0
    %4062 = vmatpush.bf16.msra.mxu0 %v3896
    %4063 = vmatpush.bf16.msra.mxu0 %v3895
    %4064 = vmatpush.bf16.msra.mxu0 %v3894
    %4065 = vmatpush.bf16.msra.mxu0 %v3893
    %4066 = vmatmul.bf16.gmra.mxu0 %v4047
    %v4067 = vpop.f32.mrf.mxu0
    %v4068 = vadd.f32 0.0, %v4067
    %v4069 = vpop.f32.mrf.mxu0
    %v4070 = vadd.f32 0.0, %v4069
    %4071 = vmatmul.bf16.gmra.mxu0 %v4050
    %v4072 = vpop.f32.mrf.mxu0
    %v4073 = vadd.f32 0.0, %v4072
    %v4074 = vpop.f32.mrf.mxu0
    %v4075 = vadd.f32 0.0, %v4074
    %4076 = vmatmul.bf16.gmra.mxu0 %v4053
    %v4077 = vpop.f32.mrf.mxu0
    %v4078 = vadd.f32 0.0, %v4077
    %v4079 = vpop.f32.mrf.mxu0
    %v4080 = vadd.f32 0.0, %v4079
    %4081 = vmatmul.bf16.gmra.mxu0 %v4056
    %v4082 = vpop.f32.mrf.mxu0
    %v4083 = vadd.f32 0.0, %v4082
    %v4084 = vpop.f32.mrf.mxu0
    %v4085 = vadd.f32 0.0, %v4084
    %4086 = vdwg.mxu0
    %v4087 = vpack.c.bf16 %v4068, %v4068
    %v4088 = vpack.c.bf16 %v4070, %v4070
    %v4089 = vpack.c.bf16 %v4073, %v4073
    %v4090 = vpack.c.bf16 %v4075, %v4075
    %v4091 = vpack.c.bf16 %v4078, %v4078
    %v4092 = vpack.c.bf16 %v4080, %v4080
    %v4093 = vpack.c.bf16 %v4083, %v4083
    %v4094 = vpack.c.bf16 %v4085, %v4085
    %4095 = vst.msk [vmem:[#allocation16 + $0x4] sm:$0xf] %vm3605, %v4087
    %4096 = vst.msk [vmem:[#allocation16 + $0xc] sm:$0xf] %vm3605, %v4088
    %4097 = vst.msk [vmem:[#allocation16 + $0x14] sm:$0xf] %vm3605, %v4089
    %4098 = vst.msk [vmem:[#allocation16 + $0x1c] sm:$0xf] %vm3605, %v4090
    %4099 = vst.msk [vmem:[#allocation16 + $0x24] sm:$0xf] %vm3605, %v4091
    %4100 = vst.msk [vmem:[#allocation16 + $0x2c] sm:$0xf] %vm3605, %v4092
    %4101 = vst.msk [vmem:[#allocation16 + $0x34] sm:$0xf] %vm3605, %v4093
    %4102 = vst.msk [vmem:[#allocation16 + $0x3c] sm:$0xf] %vm3605, %v4094
    %4107 = vrot.lane.b32.xlu0 %v3889, 64
    %v4108 = vpop.permute.xlu0 %4107
    %4109 = vrot.lane.b32.xlu0 %v3890, 64
    %v4110 = vpop.permute.xlu0 %4109
    %4111 = vrot.lane.b32.xlu0 %v3891, 64
    %v4112 = vpop.permute.xlu0 %4111
    %4113 = vrot.lane.b32.xlu0 %v3892, 64
    %v4114 = vpop.permute.xlu0 %4113
    %4119 = vrot.lane.b32.xlu0 %v3897, 64
    %v4120 = vpop.permute.xlu0 %4119
    %4121 = vrot.lane.b32.xlu0 %v3898, 64
    %v4122 = vpop.permute.xlu0 %4121
    %4123 = vrot.lane.b32.xlu0 %v3899, 64
    %v4124 = vpop.permute.xlu0 %4123
    %4125 = vrot.lane.b32.xlu0 %v3900, 64
    %v4126 = vpop.permute.xlu0 %4125
    %v4128 = vsel %vm3410, %v4108, 0
    %v4131 = vsel %vm3410, %v4110, 0
    %v4134 = vsel %vm3410, %v4112, 0
    %v4137 = vsel %vm3410, %v4114, 0
    %v4140 = vsel %vm3410, %v4120, 0
    %v4143 = vsel %vm3410, %v4122, 0
    %v4146 = vsel %vm3410, %v4124, 0
    %v4149 = vsel %vm3410, %v4126, 0
    %4151 = vmatpush.bf16.xpose.msra.mxu0 0
    %4152 = vmatpush.bf16.xpose.msra.mxu0 0
    %4153 = vmatpush.bf16.xpose.msra.mxu0 0
    %4154 = vmatpush.bf16.xpose.msra.mxu0 0
    %4155 = vmatpush.bf16.xpose.msra.mxu0 %v4149
    %4156 = vmatpush.bf16.xpose.msra.mxu0 %v4146
    %4157 = vmatpush.bf16.xpose.msra.mxu0 %v4143
    %4158 = vmatpush.bf16.xpose.msra.mxu0 %v4140
    %4159 = vmatmul.bf16.gmra.mxu0 %v4128
    %v4160 = vpop.f32.mrf.mxu0
    %v4161 = vadd.f32 0.0, %v4160
    %v4162 = vpop.f32.mrf.mxu0
    %v4163 = vadd.f32 0.0, %v4162
    %4164 = vmatmul.bf16.gmra.mxu0 %v4131
    %v4165 = vpop.f32.mrf.mxu0
    %v4166 = vadd.f32 0.0, %v4165
    %v4167 = vpop.f32.mrf.mxu0
    %v4168 = vadd.f32 0.0, %v4167
    %4169 = vmatmul.bf16.gmra.mxu0 %v4134
    %v4170 = vpop.f32.mrf.mxu0
    %v4171 = vadd.f32 0.0, %v4170
    %v4172 = vpop.f32.mrf.mxu0
    %v4173 = vadd.f32 0.0, %v4172
    %4174 = vmatmul.bf16.gmra.mxu0 %v4137
    %v4175 = vpop.f32.mrf.mxu0
    %v4176 = vadd.f32 0.0, %v4175
    %v4177 = vpop.f32.mrf.mxu0
    %v4178 = vadd.f32 0.0, %v4177
    %4179 = vdwg.mxu0
    %v4180 = vsel %vm3410, %v4161, -inf
    %4181 = vmax.xlane.f32.xlu0 %v4180
    %v4182 = vpop.xlane.xlu0 %4181
    %v4183 = vsel %vm3410, %v4163, -inf
    %4184 = vmax.xlane.f32.xlu0 %v4183
    %v4185 = vpop.xlane.xlu0 %4184
    %v4186 = vsel %vm3410, %v4166, -inf
    %4187 = vmax.xlane.f32.xlu0 %v4186
    %v4188 = vpop.xlane.xlu0 %4187
    %v4189 = vsel %vm3410, %v4168, -inf
    %4190 = vmax.xlane.f32.xlu0 %v4189
    %v4191 = vpop.xlane.xlu0 %4190
    %v4192 = vsel %vm3410, %v4171, -inf
    %4193 = vmax.xlane.f32.xlu0 %v4192
    %v4194 = vpop.xlane.xlu0 %4193
    %v4195 = vsel %vm3410, %v4173, -inf
    %4196 = vmax.xlane.f32.xlu0 %v4195
    %v4197 = vpop.xlane.xlu0 %4196
    %v4198 = vsel %vm3410, %v4176, -inf
    %4199 = vmax.xlane.f32.xlu0 %v4198
    %v4200 = vpop.xlane.xlu0 %4199
    %v4201 = vsel %vm3410, %v4178, -inf
    %4202 = vmax.xlane.f32.xlu0 %v4201
    %v4203 = vpop.xlane.xlu0 %4202
    %v4204 = vsub.f32 %v4161, %v4182
    %v4205 = vsub.f32 %v4163, %v4185
    %v4206 = vsub.f32 %v4166, %v4188
    %v4207 = vsub.f32 %v4168, %v4191
    %v4208 = vsub.f32 %v4171, %v4194
    %v4209 = vsub.f32 %v4173, %v4197
    %v4210 = vsub.f32 %v4176, %v4200
    %v4211 = vsub.f32 %v4178, %v4203
    %v4212 = vmul.f32 %v4204, 1.442695
    %v4213 = vpow.pop %v4212
    %v4214 = vmul.f32 %v4205, 1.442695
    %v4215 = vpow.pop %v4214
    %v4216 = vmul.f32 %v4206, 1.442695
    %v4217 = vpow.pop %v4216
    %v4218 = vmul.f32 %v4207, 1.442695
    %v4219 = vpow.pop %v4218
    %v4220 = vmul.f32 %v4208, 1.442695
    %v4221 = vpow.pop %v4220
    %v4222 = vmul.f32 %v4209, 1.442695
    %v4223 = vpow.pop %v4222
    %v4224 = vmul.f32 %v4210, 1.442695
    %v4225 = vpow.pop %v4224
    %v4226 = vmul.f32 %v4211, 1.442695
    %v4227 = vpow.pop %v4226
    %v4228 = vsel %vm3410, %v4213, 0.0
    %4229 = vadd.xlane.f32.xlu0 %v4228
    %v4230 = vpop.xlane.xlu0 %4229
    %v4231 = vsel %vm3410, %v4215, 0.0
    %4232 = vadd.xlane.f32.xlu0 %v4231
    %v4233 = vpop.xlane.xlu0 %4232
    %v4234 = vsel %vm3410, %v4217, 0.0
    %4235 = vadd.xlane.f32.xlu0 %v4234
    %v4236 = vpop.xlane.xlu0 %4235
    %v4237 = vsel %vm3410, %v4219, 0.0
    %4238 = vadd.xlane.f32.xlu0 %v4237
    %v4239 = vpop.xlane.xlu0 %4238
    %v4240 = vsel %vm3410, %v4221, 0.0
    %4241 = vadd.xlane.f32.xlu0 %v4240
    %v4242 = vpop.xlane.xlu0 %4241
    %v4243 = vsel %vm3410, %v4223, 0.0
    %4244 = vadd.xlane.f32.xlu0 %v4243
    %v4245 = vpop.xlane.xlu0 %4244
    %v4246 = vsel %vm3410, %v4225, 0.0
    %4247 = vadd.xlane.f32.xlu0 %v4246
    %v4248 = vpop.xlane.xlu0 %4247
    %v4249 = vsel %vm3410, %v4227, 0.0
    %4250 = vadd.xlane.f32.xlu0 %v4249
    %v4251 = vpop.xlane.xlu0 %4250
    %v4252 = vrcp.pop %v4230
    %v4253 = vrcp.pop %v4233
    %v4254 = vrcp.pop %v4236
    %v4255 = vrcp.pop %v4239
    %v4256 = vrcp.pop %v4242
    %v4257 = vrcp.pop %v4245
    %v4258 = vrcp.pop %v4248
    %v4259 = vrcp.pop %v4251
    %v4260 = vmul.f32 %v4213, %v4252
    %v4261 = vmul.f32 %v4215, %v4253
    %v4262 = vmul.f32 %v4217, %v4254
    %v4263 = vmul.f32 %v4219, %v4255
    %v4264 = vmul.f32 %v4221, %v4256
    %v4265 = vmul.f32 %v4223, %v4257
    %v4266 = vmul.f32 %v4225, %v4258
    %v4267 = vmul.f32 %v4227, %v4259
    %v4268 = vpack.c.bf16 %v4261, %v4260
    %v4269 = vpack.c.bf16 %v4263, %v4262
    %v4270 = vpack.c.bf16 %v4265, %v4264
    %v4271 = vpack.c.bf16 %v4267, %v4266
    %4276 = vrot.lane.b32.xlu0 %v3893, 64
    %v4277 = vpop.permute.xlu0 %4276
    %4278 = vrot.lane.b32.xlu0 %v3894, 64
    %v4279 = vpop.permute.xlu0 %4278
    %4280 = vrot.lane.b32.xlu0 %v3895, 64
    %v4281 = vpop.permute.xlu0 %4280
    %4282 = vrot.lane.b32.xlu0 %v3896, 64
    %v4283 = vpop.permute.xlu0 %4282
    %v4289 = vsel %vm3410, %v4268, 0
    %v4292 = vsel %vm3410, %v4269, 0
    %v4295 = vsel %vm3410, %v4270, 0
    %v4298 = vsel %vm3410, %v4271, 0
    %4300 = vmatpush.bf16.msra.mxu0 0
    %4301 = vmatpush.bf16.msra.mxu0 0
    %4302 = vmatpush.bf16.msra.mxu0 0
    %4303 = vmatpush.bf16.msra.mxu0 0
    %4304 = vmatpush.bf16.msra.mxu0 %v4283
    %4305 = vmatpush.bf16.msra.mxu0 %v4281
    %4306 = vmatpush.bf16.msra.mxu0 %v4279
    %4307 = vmatpush.bf16.msra.mxu0 %v4277
    %4308 = vmatmul.bf16.gmra.mxu0 %v4289
    %v4309 = vpop.f32.mrf.mxu0
    %v4310 = vadd.f32 0.0, %v4309
    %v4311 = vpop.f32.mrf.mxu0
    %v4312 = vadd.f32 0.0, %v4311
    %4313 = vmatmul.bf16.gmra.mxu0 %v4292
    %v4314 = vpop.f32.mrf.mxu0
    %v4315 = vadd.f32 0.0, %v4314
    %v4316 = vpop.f32.mrf.mxu0
    %v4317 = vadd.f32 0.0, %v4316
    %4318 = vmatmul.bf16.gmra.mxu0 %v4295
    %v4319 = vpop.f32.mrf.mxu0
    %v4320 = vadd.f32 0.0, %v4319
    %v4321 = vpop.f32.mrf.mxu0
    %v4322 = vadd.f32 0.0, %v4321
    %4323 = vmatmul.bf16.gmra.mxu0 %v4298
    %v4324 = vpop.f32.mrf.mxu0
    %v4325 = vadd.f32 0.0, %v4324
    %v4326 = vpop.f32.mrf.mxu0
    %v4327 = vadd.f32 0.0, %v4326
    %4328 = vdwg.mxu0
    %v4329 = vpack.c.bf16 %v4310, %v4310
    %v4330 = vpack.c.bf16 %v4312, %v4312
    %v4331 = vpack.c.bf16 %v4315, %v4315
    %v4332 = vpack.c.bf16 %v4317, %v4317
    %v4333 = vpack.c.bf16 %v4320, %v4320
    %v4334 = vpack.c.bf16 %v4322, %v4322
    %v4335 = vpack.c.bf16 %v4325, %v4325
    %v4336 = vpack.c.bf16 %v4327, %v4327
    %4345 = vrot.lane.b32.xlu0 %v4329, 64
    %v4346 = vpop.permute.xlu0 %4345
    %4347 = vrot.lane.b32.xlu0 %v4330, 64
    %v4348 = vpop.permute.xlu0 %4347
    %4349 = vrot.lane.b32.xlu0 %v4331, 64
    %v4350 = vpop.permute.xlu0 %4349
    %4351 = vrot.lane.b32.xlu0 %v4332, 64
    %v4352 = vpop.permute.xlu0 %4351
    %4353 = vrot.lane.b32.xlu0 %v4333, 64
    %v4354 = vpop.permute.xlu0 %4353
    %4355 = vrot.lane.b32.xlu0 %v4334, 64
    %v4356 = vpop.permute.xlu0 %4355
    %4357 = vrot.lane.b32.xlu0 %v4335, 64
    %v4358 = vpop.permute.xlu0 %4357
    %4359 = vrot.lane.b32.xlu0 %v4336, 64
    %v4360 = vpop.permute.xlu0 %4359
    %4369 = vst.msk [vmem:[#allocation16 + $0x4] sm:$0xf] %vm3880, %v4346
    %4370 = vst.msk [vmem:[#allocation16 + $0xc] sm:$0xf] %vm3880, %v4348
    %4371 = vst.msk [vmem:[#allocation16 + $0x14] sm:$0xf] %vm3880, %v4350
    %4372 = vst.msk [vmem:[#allocation16 + $0x1c] sm:$0xf] %vm3880, %v4352
    %4373 = vst.msk [vmem:[#allocation16 + $0x24] sm:$0xf] %vm3880, %v4354
    %4374 = vst.msk [vmem:[#allocation16 + $0x2c] sm:$0xf] %vm3880, %v4356
    %4375 = vst.msk [vmem:[#allocation16 + $0x34] sm:$0xf] %vm3880, %v4358
    %4376 = vst.msk [vmem:[#allocation16 + $0x3c] sm:$0xf] %vm3880, %v4360
    %v4377 = vpack.c.bf16 %v2699, %v2697
    %v4378 = vpack.c.bf16 %v2704, %v2702
    %v4379 = vpack.c.bf16 %v2709, %v2707
    %v4380 = vpack.c.bf16 %v2714, %v2712
    %v4381 = vpack.c.bf16 %v2895, %v2893
    %v4382 = vpack.c.bf16 %v2900, %v2898
    %v4383 = vpack.c.bf16 %v2905, %v2903
    %v4384 = vpack.c.bf16 %v2910, %v2908
    %v4385 = vpack.c.bf16 %v3283, %v3281
    %v4386 = vpack.c.bf16 %v3288, %v3286
    %v4387 = vpack.c.bf16 %v3293, %v3291
    %v4388 = vpack.c.bf16 %v3298, %v3296
    %v4390 = vsel %vm3410, %v4377, 0
    %v4393 = vsel %vm3410, %v4378, 0
    %v4396 = vsel %vm3410, %v4379, 0
    %v4399 = vsel %vm3410, %v4380, 0
    %v4402 = vsel %vm3410, %v4385, 0
    %v4405 = vsel %vm3410, %v4386, 0
    %v4408 = vsel %vm3410, %v4387, 0
    %v4411 = vsel %vm3410, %v4388, 0
    %4413 = vmatpush.bf16.xpose.msra.mxu0 0
    %4414 = vmatpush.bf16.xpose.msra.mxu0 0
    %4415 = vmatpush.bf16.xpose.msra.mxu0 0
    %4416 = vmatpush.bf16.xpose.msra.mxu0 0
    %4417 = vmatpush.bf16.xpose.msra.mxu0 %v4411
    %4418 = vmatpush.bf16.xpose.msra.mxu0 %v4408
    %4419 = vmatpush.bf16.xpose.msra.mxu0 %v4405
    %4420 = vmatpush.bf16.xpose.msra.mxu0 %v4402
    %4421 = vmatmul.bf16.gmra.mxu0 %v4390
    %v4422 = vpop.f32.mrf.mxu0
    %v4423 = vadd.f32 0.0, %v4422
    %v4424 = vpop.f32.mrf.mxu0
    %v4425 = vadd.f32 0.0, %v4424
    %4426 = vmatmul.bf16.gmra.mxu0 %v4393
    %v4427 = vpop.f32.mrf.mxu0
    %v4428 = vadd.f32 0.0, %v4427
    %v4429 = vpop.f32.mrf.mxu0
    %v4430 = vadd.f32 0.0, %v4429
    %4431 = vmatmul.bf16.gmra.mxu0 %v4396
    %v4432 = vpop.f32.mrf.mxu0
    %v4433 = vadd.f32 0.0, %v4432
    %v4434 = vpop.f32.mrf.mxu0
    %v4435 = vadd.f32 0.0, %v4434
    %4436 = vmatmul.bf16.gmra.mxu0 %v4399
    %v4437 = vpop.f32.mrf.mxu0
    %v4438 = vadd.f32 0.0, %v4437
    %v4439 = vpop.f32.mrf.mxu0
    %v4440 = vadd.f32 0.0, %v4439
    %4441 = vdwg.mxu0
    %v4442 = vsel %vm3410, %v4423, -inf
    %4443 = vmax.xlane.f32.xlu0 %v4442
    %v4444 = vpop.xlane.xlu0 %4443
    %v4445 = vsel %vm3410, %v4425, -inf
    %4446 = vmax.xlane.f32.xlu0 %v4445
    %v4447 = vpop.xlane.xlu0 %4446
    %v4448 = vsel %vm3410, %v4428, -inf
    %4449 = vmax.xlane.f32.xlu0 %v4448
    %v4450 = vpop.xlane.xlu0 %4449
    %v4451 = vsel %vm3410, %v4430, -inf
    %4452 = vmax.xlane.f32.xlu0 %v4451
    %v4453 = vpop.xlane.xlu0 %4452
    %v4454 = vsel %vm3410, %v4433, -inf
    %4455 = vmax.xlane.f32.xlu0 %v4454
    %v4456 = vpop.xlane.xlu0 %4455
    %v4457 = vsel %vm3410, %v4435, -inf
    %4458 = vmax.xlane.f32.xlu0 %v4457
    %v4459 = vpop.xlane.xlu0 %4458
    %v4460 = vsel %vm3410, %v4438, -inf
    %4461 = vmax.xlane.f32.xlu0 %v4460
    %v4462 = vpop.xlane.xlu0 %4461
    %v4463 = vsel %vm3410, %v4440, -inf
    %4464 = vmax.xlane.f32.xlu0 %v4463
    %v4465 = vpop.xlane.xlu0 %4464
    %v4466 = vsub.f32 %v4423, %v4444
    %v4467 = vsub.f32 %v4425, %v4447
    %v4468 = vsub.f32 %v4428, %v4450
    %v4469 = vsub.f32 %v4430, %v4453
    %v4470 = vsub.f32 %v4433, %v4456
    %v4471 = vsub.f32 %v4435, %v4459
    %v4472 = vsub.f32 %v4438, %v4462
    %v4473 = vsub.f32 %v4440, %v4465
    %v4474 = vmul.f32 %v4466, 1.442695
    %v4475 = vpow.pop %v4474
    %v4476 = vmul.f32 %v4467, 1.442695
    %v4477 = vpow.pop %v4476
    %v4478 = vmul.f32 %v4468, 1.442695
    %v4479 = vpow.pop %v4478
    %v4480 = vmul.f32 %v4469, 1.442695
    %v4481 = vpow.pop %v4480
    %v4482 = vmul.f32 %v4470, 1.442695
    %v4483 = vpow.pop %v4482
    %v4484 = vmul.f32 %v4471, 1.442695
    %v4485 = vpow.pop %v4484
    %v4486 = vmul.f32 %v4472, 1.442695
    %v4487 = vpow.pop %v4486
    %v4488 = vmul.f32 %v4473, 1.442695
    %v4489 = vpow.pop %v4488
    %v4490 = vsel %vm3410, %v4475, 0.0
    %4491 = vadd.xlane.f32.xlu0 %v4490
    %v4492 = vpop.xlane.xlu0 %4491
    %v4493 = vsel %vm3410, %v4477, 0.0
    %4494 = vadd.xlane.f32.xlu0 %v4493
    %v4495 = vpop.xlane.xlu0 %4494
    %v4496 = vsel %vm3410, %v4479, 0.0
    %4497 = vadd.xlane.f32.xlu0 %v4496
    %v4498 = vpop.xlane.xlu0 %4497
    %v4499 = vsel %vm3410, %v4481, 0.0
    %4500 = vadd.xlane.f32.xlu0 %v4499
    %v4501 = vpop.xlane.xlu0 %4500
    %v4502 = vsel %vm3410, %v4483, 0.0
    %4503 = vadd.xlane.f32.xlu0 %v4502
    %v4504 = vpop.xlane.xlu0 %4503
    %v4505 = vsel %vm3410, %v4485, 0.0
    %4506 = vadd.xlane.f32.xlu0 %v4505
    %v4507 = vpop.xlane.xlu0 %4506
    %v4508 = vsel %vm3410, %v4487, 0.0
    %4509 = vadd.xlane.f32.xlu0 %v4508
    %v4510 = vpop.xlane.xlu0 %4509
    %v4511 = vsel %vm3410, %v4489, 0.0
    %4512 = vadd.xlane.f32.xlu0 %v4511
    %v4513 = vpop.xlane.xlu0 %4512
    %v4514 = vrcp.pop %v4492
    %v4515 = vrcp.pop %v4495
    %v4516 = vrcp.pop %v4498
    %v4517 = vrcp.pop %v4501
    %v4518 = vrcp.pop %v4504
    %v4519 = vrcp.pop %v4507
    %v4520 = vrcp.pop %v4510
    %v4521 = vrcp.pop %v4513
    %v4522 = vmul.f32 %v4475, %v4514
    %v4523 = vmul.f32 %v4477, %v4515
    %v4524 = vmul.f32 %v4479, %v4516
    %v4525 = vmul.f32 %v4481, %v4517
    %v4526 = vmul.f32 %v4483, %v4518
    %v4527 = vmul.f32 %v4485, %v4519
    %v4528 = vmul.f32 %v4487, %v4520
    %v4529 = vmul.f32 %v4489, %v4521
    %v4530 = vpack.c.bf16 %v4523, %v4522
    %v4531 = vpack.c.bf16 %v4525, %v4524
    %v4532 = vpack.c.bf16 %v4527, %v4526
    %v4533 = vpack.c.bf16 %v4529, %v4528
    %v4535 = vsel %vm3410, %v4530, 0
    %v4538 = vsel %vm3410, %v4531, 0
    %v4541 = vsel %vm3410, %v4532, 0
    %v4544 = vsel %vm3410, %v4533, 0
    %4546 = vmatpush.bf16.msra.mxu0 0
    %4547 = vmatpush.bf16.msra.mxu0 0
    %4548 = vmatpush.bf16.msra.mxu0 0
    %4549 = vmatpush.bf16.msra.mxu0 0
    %4550 = vmatpush.bf16.msra.mxu0 %v4384
    %4551 = vmatpush.bf16.msra.mxu0 %v4383
    %4552 = vmatpush.bf16.msra.mxu0 %v4382
    %4553 = vmatpush.bf16.msra.mxu0 %v4381
    %4554 = vmatmul.bf16.gmra.mxu0 %v4535
    %v4555 = vpop.f32.mrf.mxu0
    %v4556 = vadd.f32 0.0, %v4555
    %v4557 = vpop.f32.mrf.mxu0
    %v4558 = vadd.f32 0.0, %v4557
    %4559 = vmatmul.bf16.gmra.mxu0 %v4538
    %v4560 = vpop.f32.mrf.mxu0
    %v4561 = vadd.f32 0.0, %v4560
    %v4562 = vpop.f32.mrf.mxu0
    %v4563 = vadd.f32 0.0, %v4562
    %4564 = vmatmul.bf16.gmra.mxu0 %v4541
    %v4565 = vpop.f32.mrf.mxu0
    %v4566 = vadd.f32 0.0, %v4565
    %v4567 = vpop.f32.mrf.mxu0
    %v4568 = vadd.f32 0.0, %v4567
    %4569 = vmatmul.bf16.gmra.mxu0 %v4544
    %v4570 = vpop.f32.mrf.mxu0
    %v4571 = vadd.f32 0.0, %v4570
    %v4572 = vpop.f32.mrf.mxu0
    %v4573 = vadd.f32 0.0, %v4572
    %4574 = vdwg.mxu0
    %v4575 = vpack.c.bf16 %v4556, %v4556
    %v4576 = vpack.c.bf16 %v4558, %v4558
    %v4577 = vpack.c.bf16 %v4561, %v4561
    %v4578 = vpack.c.bf16 %v4563, %v4563
    %v4579 = vpack.c.bf16 %v4566, %v4566
    %v4580 = vpack.c.bf16 %v4568, %v4568
    %v4581 = vpack.c.bf16 %v4571, %v4571
    %v4582 = vpack.c.bf16 %v4573, %v4573
    %4583 = vst.msk [vmem:[#allocation16 + $0x40] sm:$0xf] %vm3605, %v4575
    %4584 = vst.msk [vmem:[#allocation16 + $0x48] sm:$0xf] %vm3605, %v4576
    %4585 = vst.msk [vmem:[#allocation16 + $0x50] sm:$0xf] %vm3605, %v4577
    %4586 = vst.msk [vmem:[#allocation16 + $0x58] sm:$0xf] %vm3605, %v4578
    %4587 = vst.msk [vmem:[#allocation16 + $0x60] sm:$0xf] %vm3605, %v4579
    %4588 = vst.msk [vmem:[#allocation16 + $0x68] sm:$0xf] %vm3605, %v4580
    %4589 = vst.msk [vmem:[#allocation16 + $0x70] sm:$0xf] %vm3605, %v4581
    %4590 = vst.msk [vmem:[#allocation16 + $0x78] sm:$0xf] %vm3605, %v4582
    %4595 = vrot.lane.b32.xlu0 %v4377, 64
    %v4596 = vpop.permute.xlu0 %4595
    %4597 = vrot.lane.b32.xlu0 %v4378, 64
    %v4598 = vpop.permute.xlu0 %4597
    %4599 = vrot.lane.b32.xlu0 %v4379, 64
    %v4600 = vpop.permute.xlu0 %4599
    %4601 = vrot.lane.b32.xlu0 %v4380, 64
    %v4602 = vpop.permute.xlu0 %4601
    %4607 = vrot.lane.b32.xlu0 %v4385, 64
    %v4608 = vpop.permute.xlu0 %4607
    %4609 = vrot.lane.b32.xlu0 %v4386, 64
    %v4610 = vpop.permute.xlu0 %4609
    %4611 = vrot.lane.b32.xlu0 %v4387, 64
    %v4612 = vpop.permute.xlu0 %4611
    %4613 = vrot.lane.b32.xlu0 %v4388, 64
    %v4614 = vpop.permute.xlu0 %4613
    %v4616 = vsel %vm3410, %v4596, 0
    %v4619 = vsel %vm3410, %v4598, 0
    %v4622 = vsel %vm3410, %v4600, 0
    %v4625 = vsel %vm3410, %v4602, 0
    %v4628 = vsel %vm3410, %v4608, 0
    %v4631 = vsel %vm3410, %v4610, 0
    %v4634 = vsel %vm3410, %v4612, 0
    %v4637 = vsel %vm3410, %v4614, 0
    %4639 = vmatpush.bf16.xpose.msra.mxu0 0
    %4640 = vmatpush.bf16.xpose.msra.mxu0 0
    %4641 = vmatpush.bf16.xpose.msra.mxu0 0
    %4642 = vmatpush.bf16.xpose.msra.mxu0 0
    %4643 = vmatpush.bf16.xpose.msra.mxu0 %v4637
    %4644 = vmatpush.bf16.xpose.msra.mxu0 %v4634
    %4645 = vmatpush.bf16.xpose.msra.mxu0 %v4631
    %4646 = vmatpush.bf16.xpose.msra.mxu0 %v4628
    %4647 = vmatmul.bf16.gmra.mxu0 %v4616
    %v4648 = vpop.f32.mrf.mxu0
    %v4649 = vadd.f32 0.0, %v4648
    %v4650 = vpop.f32.mrf.mxu0
    %v4651 = vadd.f32 0.0, %v4650
    %4652 = vmatmul.bf16.gmra.mxu0 %v4619
    %v4653 = vpop.f32.mrf.mxu0
    %v4654 = vadd.f32 0.0, %v4653
    %v4655 = vpop.f32.mrf.mxu0
    %v4656 = vadd.f32 0.0, %v4655
    %4657 = vmatmul.bf16.gmra.mxu0 %v4622
    %v4658 = vpop.f32.mrf.mxu0
    %v4659 = vadd.f32 0.0, %v4658
    %v4660 = vpop.f32.mrf.mxu0
    %v4661 = vadd.f32 0.0, %v4660
    %4662 = vmatmul.bf16.gmra.mxu0 %v4625
    %v4663 = vpop.f32.mrf.mxu0
    %v4664 = vadd.f32 0.0, %v4663
    %v4665 = vpop.f32.mrf.mxu0
    %v4666 = vadd.f32 0.0, %v4665
    %4667 = vdwg.mxu0
    %v4668 = vsel %vm3410, %v4649, -inf
    %4669 = vmax.xlane.f32.xlu0 %v4668
    %v4670 = vpop.xlane.xlu0 %4669
    %v4671 = vsel %vm3410, %v4651, -inf
    %4672 = vmax.xlane.f32.xlu0 %v4671
    %v4673 = vpop.xlane.xlu0 %4672
    %v4674 = vsel %vm3410, %v4654, -inf
    %4675 = vmax.xlane.f32.xlu0 %v4674
    %v4676 = vpop.xlane.xlu0 %4675
    %v4677 = vsel %vm3410, %v4656, -inf
    %4678 = vmax.xlane.f32.xlu0 %v4677
    %v4679 = vpop.xlane.xlu0 %4678
    %v4680 = vsel %vm3410, %v4659, -inf
    %4681 = vmax.xlane.f32.xlu0 %v4680
    %v4682 = vpop.xlane.xlu0 %4681
    %v4683 = vsel %vm3410, %v4661, -inf
    %4684 = vmax.xlane.f32.xlu0 %v4683
    %v4685 = vpop.xlane.xlu0 %4684
    %v4686 = vsel %vm3410, %v4664, -inf
    %4687 = vmax.xlane.f32.xlu0 %v4686
    %v4688 = vpop.xlane.xlu0 %4687
    %v4689 = vsel %vm3410, %v4666, -inf
    %4690 = vmax.xlane.f32.xlu0 %v4689
    %v4691 = vpop.xlane.xlu0 %4690
    %v4692 = vsub.f32 %v4649, %v4670
    %v4693 = vsub.f32 %v4651, %v4673
    %v4694 = vsub.f32 %v4654, %v4676
    %v4695 = vsub.f32 %v4656, %v4679
    %v4696 = vsub.f32 %v4659, %v4682
    %v4697 = vsub.f32 %v4661, %v4685
    %v4698 = vsub.f32 %v4664, %v4688
    %v4699 = vsub.f32 %v4666, %v4691
    %v4700 = vmul.f32 %v4692, 1.442695
    %v4701 = vpow.pop %v4700
    %v4702 = vmul.f32 %v4693, 1.442695
    %v4703 = vpow.pop %v4702
    %v4704 = vmul.f32 %v4694, 1.442695
    %v4705 = vpow.pop %v4704
    %v4706 = vmul.f32 %v4695, 1.442695
    %v4707 = vpow.pop %v4706
    %v4708 = vmul.f32 %v4696, 1.442695
    %v4709 = vpow.pop %v4708
    %v4710 = vmul.f32 %v4697, 1.442695
    %v4711 = vpow.pop %v4710
    %v4712 = vmul.f32 %v4698, 1.442695
    %v4713 = vpow.pop %v4712
    %v4714 = vmul.f32 %v4699, 1.442695
    %v4715 = vpow.pop %v4714
    %v4716 = vsel %vm3410, %v4701, 0.0
    %4717 = vadd.xlane.f32.xlu0 %v4716
    %v4718 = vpop.xlane.xlu0 %4717
    %v4719 = vsel %vm3410, %v4703, 0.0
    %4720 = vadd.xlane.f32.xlu0 %v4719
    %v4721 = vpop.xlane.xlu0 %4720
    %v4722 = vsel %vm3410, %v4705, 0.0
    %4723 = vadd.xlane.f32.xlu0 %v4722
    %v4724 = vpop.xlane.xlu0 %4723
    %v4725 = vsel %vm3410, %v4707, 0.0
    %4726 = vadd.xlane.f32.xlu0 %v4725
    %v4727 = vpop.xlane.xlu0 %4726
    %v4728 = vsel %vm3410, %v4709, 0.0
    %4729 = vadd.xlane.f32.xlu0 %v4728
    %v4730 = vpop.xlane.xlu0 %4729
    %v4731 = vsel %vm3410, %v4711, 0.0
    %4732 = vadd.xlane.f32.xlu0 %v4731
    %v4733 = vpop.xlane.xlu0 %4732
    %v4734 = vsel %vm3410, %v4713, 0.0
    %4735 = vadd.xlane.f32.xlu0 %v4734
    %v4736 = vpop.xlane.xlu0 %4735
    %v4737 = vsel %vm3410, %v4715, 0.0
    %4738 = vadd.xlane.f32.xlu0 %v4737
    %v4739 = vpop.xlane.xlu0 %4738
    %v4740 = vrcp.pop %v4718
    %v4741 = vrcp.pop %v4721
    %v4742 = vrcp.pop %v4724
    %v4743 = vrcp.pop %v4727
    %v4744 = vrcp.pop %v4730
    %v4745 = vrcp.pop %v4733
    %v4746 = vrcp.pop %v4736
    %v4747 = vrcp.pop %v4739
    %v4748 = vmul.f32 %v4701, %v4740
    %v4749 = vmul.f32 %v4703, %v4741
    %v4750 = vmul.f32 %v4705, %v4742
    %v4751 = vmul.f32 %v4707, %v4743
    %v4752 = vmul.f32 %v4709, %v4744
    %v4753 = vmul.f32 %v4711, %v4745
    %v4754 = vmul.f32 %v4713, %v4746
    %v4755 = vmul.f32 %v4715, %v4747
    %v4756 = vpack.c.bf16 %v4749, %v4748
    %v4757 = vpack.c.bf16 %v4751, %v4750
    %v4758 = vpack.c.bf16 %v4753, %v4752
    %v4759 = vpack.c.bf16 %v4755, %v4754
    %4764 = vrot.lane.b32.xlu0 %v4381, 64
    %v4765 = vpop.permute.xlu0 %4764
    %4766 = vrot.lane.b32.xlu0 %v4382, 64
    %v4767 = vpop.permute.xlu0 %4766
    %4768 = vrot.lane.b32.xlu0 %v4383, 64
    %v4769 = vpop.permute.xlu0 %4768
    %4770 = vrot.lane.b32.xlu0 %v4384, 64
    %v4771 = vpop.permute.xlu0 %4770
    %v4777 = vsel %vm3410, %v4756, 0
    %v4780 = vsel %vm3410, %v4757, 0
    %v4783 = vsel %vm3410, %v4758, 0
    %v4786 = vsel %vm3410, %v4759, 0
    %4788 = vmatpush.bf16.msra.mxu0 0
    %4789 = vmatpush.bf16.msra.mxu0 0
    %4790 = vmatpush.bf16.msra.mxu0 0
    %4791 = vmatpush.bf16.msra.mxu0 0
    %4792 = vmatpush.bf16.msra.mxu0 %v4771
    %4793 = vmatpush.bf16.msra.mxu0 %v4769
    %4794 = vmatpush.bf16.msra.mxu0 %v4767
    %4795 = vmatpush.bf16.msra.mxu0 %v4765
    %4796 = vmatmul.bf16.gmra.mxu0 %v4777
    %v4797 = vpop.f32.mrf.mxu0
    %v4798 = vadd.f32 0.0, %v4797
    %v4799 = vpop.f32.mrf.mxu0
    %v4800 = vadd.f32 0.0, %v4799
    %4801 = vmatmul.bf16.gmra.mxu0 %v4780
    %v4802 = vpop.f32.mrf.mxu0
    %v4803 = vadd.f32 0.0, %v4802
    %v4804 = vpop.f32.mrf.mxu0
    %v4805 = vadd.f32 0.0, %v4804
    %4806 = vmatmul.bf16.gmra.mxu0 %v4783
    %v4807 = vpop.f32.mrf.mxu0
    %v4808 = vadd.f32 0.0, %v4807
    %v4809 = vpop.f32.mrf.mxu0
    %v4810 = vadd.f32 0.0, %v4809
    %4811 = vmatmul.bf16.gmra.mxu0 %v4786
    %v4812 = vpop.f32.mrf.mxu0
    %v4813 = vadd.f32 0.0, %v4812
    %v4814 = vpop.f32.mrf.mxu0
    %v4815 = vadd.f32 0.0, %v4814
    %4816 = vdwg.mxu0
    %v4817 = vpack.c.bf16 %v4798, %v4798
    %v4818 = vpack.c.bf16 %v4800, %v4800
    %v4819 = vpack.c.bf16 %v4803, %v4803
    %v4820 = vpack.c.bf16 %v4805, %v4805
    %v4821 = vpack.c.bf16 %v4808, %v4808
    %v4822 = vpack.c.bf16 %v4810, %v4810
    %v4823 = vpack.c.bf16 %v4813, %v4813
    %v4824 = vpack.c.bf16 %v4815, %v4815
    %4833 = vrot.lane.b32.xlu0 %v4817, 64
    %v4834 = vpop.permute.xlu0 %4833
    %4835 = vrot.lane.b32.xlu0 %v4818, 64
    %v4836 = vpop.permute.xlu0 %4835
    %4837 = vrot.lane.b32.xlu0 %v4819, 64
    %v4838 = vpop.permute.xlu0 %4837
    %4839 = vrot.lane.b32.xlu0 %v4820, 64
    %v4840 = vpop.permute.xlu0 %4839
    %4841 = vrot.lane.b32.xlu0 %v4821, 64
    %v4842 = vpop.permute.xlu0 %4841
    %4843 = vrot.lane.b32.xlu0 %v4822, 64
    %v4844 = vpop.permute.xlu0 %4843
    %4845 = vrot.lane.b32.xlu0 %v4823, 64
    %v4846 = vpop.permute.xlu0 %4845
    %4847 = vrot.lane.b32.xlu0 %v4824, 64
    %v4848 = vpop.permute.xlu0 %4847
    %4857 = vst.msk [vmem:[#allocation16 + $0x40] sm:$0xf] %vm3880, %v4834
    %4858 = vst.msk [vmem:[#allocation16 + $0x48] sm:$0xf] %vm3880, %v4836
    %4859 = vst.msk [vmem:[#allocation16 + $0x50] sm:$0xf] %vm3880, %v4838
    %4860 = vst.msk [vmem:[#allocation16 + $0x58] sm:$0xf] %vm3880, %v4840
    %4861 = vst.msk [vmem:[#allocation16 + $0x60] sm:$0xf] %vm3880, %v4842
    %4862 = vst.msk [vmem:[#allocation16 + $0x68] sm:$0xf] %vm3880, %v4844
    %4863 = vst.msk [vmem:[#allocation16 + $0x70] sm:$0xf] %vm3880, %v4846
    %4864 = vst.msk [vmem:[#allocation16 + $0x78] sm:$0xf] %vm3880, %v4848
    %v4865 = vpack.c.bf16 %v2797, %v2795
    %v4866 = vpack.c.bf16 %v2802, %v2800
    %v4867 = vpack.c.bf16 %v2807, %v2805
    %v4868 = vpack.c.bf16 %v2812, %v2810
    %v4869 = vpack.c.bf16 %v2993, %v2991
    %v4870 = vpack.c.bf16 %v2998, %v2996
    %v4871 = vpack.c.bf16 %v3003, %v3001
    %v4872 = vpack.c.bf16 %v3008, %v3006
    %v4873 = vpack.c.bf16 %v3381, %v3379
    %v4874 = vpack.c.bf16 %v3386, %v3384
    %v4875 = vpack.c.bf16 %v3391, %v3389
    %v4876 = vpack.c.bf16 %v3396, %v3394
    %v4878 = vsel %vm3410, %v4865, 0
    %v4881 = vsel %vm3410, %v4866, 0
    %v4884 = vsel %vm3410, %v4867, 0
    %v4887 = vsel %vm3410, %v4868, 0
    %v4890 = vsel %vm3410, %v4873, 0
    %v4893 = vsel %vm3410, %v4874, 0
    %v4896 = vsel %vm3410, %v4875, 0
    %v4899 = vsel %vm3410, %v4876, 0
    %4901 = vmatpush.bf16.xpose.msra.mxu0 0
    %4902 = vmatpush.bf16.xpose.msra.mxu0 0
    %4903 = vmatpush.bf16.xpose.msra.mxu0 0
    %4904 = vmatpush.bf16.xpose.msra.mxu0 0
    %4905 = vmatpush.bf16.xpose.msra.mxu0 %v4899
    %4906 = vmatpush.bf16.xpose.msra.mxu0 %v4896
    %4907 = vmatpush.bf16.xpose.msra.mxu0 %v4893
    %4908 = vmatpush.bf16.xpose.msra.mxu0 %v4890
    %4909 = vmatmul.bf16.gmra.mxu0 %v4878
    %v4910 = vpop.f32.mrf.mxu0
    %v4911 = vadd.f32 0.0, %v4910
    %v4912 = vpop.f32.mrf.mxu0
    %v4913 = vadd.f32 0.0, %v4912
    %4914 = vmatmul.bf16.gmra.mxu0 %v4881
    %v4915 = vpop.f32.mrf.mxu0
    %v4916 = vadd.f32 0.0, %v4915
    %v4917 = vpop.f32.mrf.mxu0
    %v4918 = vadd.f32 0.0, %v4917
    %4919 = vmatmul.bf16.gmra.mxu0 %v4884
    %v4920 = vpop.f32.mrf.mxu0
    %v4921 = vadd.f32 0.0, %v4920
    %v4922 = vpop.f32.mrf.mxu0
    %v4923 = vadd.f32 0.0, %v4922
    %4924 = vmatmul.bf16.gmra.mxu0 %v4887
    %v4925 = vpop.f32.mrf.mxu0
    %v4926 = vadd.f32 0.0, %v4925
    %v4927 = vpop.f32.mrf.mxu0
    %v4928 = vadd.f32 0.0, %v4927
    %4929 = vdwg.mxu0
    %v4930 = vsel %vm3410, %v4911, -inf
    %4931 = vmax.xlane.f32.xlu0 %v4930
    %v4932 = vpop.xlane.xlu0 %4931
    %v4933 = vsel %vm3410, %v4913, -inf
    %4934 = vmax.xlane.f32.xlu0 %v4933
    %v4935 = vpop.xlane.xlu0 %4934
    %v4936 = vsel %vm3410, %v4916, -inf
    %4937 = vmax.xlane.f32.xlu0 %v4936
    %v4938 = vpop.xlane.xlu0 %4937
    %v4939 = vsel %vm3410, %v4918, -inf
    %4940 = vmax.xlane.f32.xlu0 %v4939
    %v4941 = vpop.xlane.xlu0 %4940
    %v4942 = vsel %vm3410, %v4921, -inf
    %4943 = vmax.xlane.f32.xlu0 %v4942
    %v4944 = vpop.xlane.xlu0 %4943
    %v4945 = vsel %vm3410, %v4923, -inf
    %4946 = vmax.xlane.f32.xlu0 %v4945
    %v4947 = vpop.xlane.xlu0 %4946
    %v4948 = vsel %vm3410, %v4926, -inf
    %4949 = vmax.xlane.f32.xlu0 %v4948
    %v4950 = vpop.xlane.xlu0 %4949
    %v4951 = vsel %vm3410, %v4928, -inf
    %4952 = vmax.xlane.f32.xlu0 %v4951
    %v4953 = vpop.xlane.xlu0 %4952
    %v4954 = vsub.f32 %v4911, %v4932
    %v4955 = vsub.f32 %v4913, %v4935
    %v4956 = vsub.f32 %v4916, %v4938
    %v4957 = vsub.f32 %v4918, %v4941
    %v4958 = vsub.f32 %v4921, %v4944
    %v4959 = vsub.f32 %v4923, %v4947
    %v4960 = vsub.f32 %v4926, %v4950
    %v4961 = vsub.f32 %v4928, %v4953
    %v4962 = vmul.f32 %v4954, 1.442695
    %v4963 = vpow.pop %v4962
    %v4964 = vmul.f32 %v4955, 1.442695
    %v4965 = vpow.pop %v4964
    %v4966 = vmul.f32 %v4956, 1.442695
    %v4967 = vpow.pop %v4966
    %v4968 = vmul.f32 %v4957, 1.442695
    %v4969 = vpow.pop %v4968
    %v4970 = vmul.f32 %v4958, 1.442695
    %v4971 = vpow.pop %v4970
    %v4972 = vmul.f32 %v4959, 1.442695
    %v4973 = vpow.pop %v4972
    %v4974 = vmul.f32 %v4960, 1.442695
    %v4975 = vpow.pop %v4974
    %v4976 = vmul.f32 %v4961, 1.442695
    %v4977 = vpow.pop %v4976
    %v4978 = vsel %vm3410, %v4963, 0.0
    %4979 = vadd.xlane.f32.xlu0 %v4978
    %v4980 = vpop.xlane.xlu0 %4979
    %v4981 = vsel %vm3410, %v4965, 0.0
    %4982 = vadd.xlane.f32.xlu0 %v4981
    %v4983 = vpop.xlane.xlu0 %4982
    %v4984 = vsel %vm3410, %v4967, 0.0
    %4985 = vadd.xlane.f32.xlu0 %v4984
    %v4986 = vpop.xlane.xlu0 %4985
    %v4987 = vsel %vm3410, %v4969, 0.0
    %4988 = vadd.xlane.f32.xlu0 %v4987
    %v4989 = vpop.xlane.xlu0 %4988
    %v4990 = vsel %vm3410, %v4971, 0.0
    %4991 = vadd.xlane.f32.xlu0 %v4990
    %v4992 = vpop.xlane.xlu0 %4991
    %v4993 = vsel %vm3410, %v4973, 0.0
    %4994 = vadd.xlane.f32.xlu0 %v4993
    %v4995 = vpop.xlane.xlu0 %4994
    %v4996 = vsel %vm3410, %v4975, 0.0
    %4997 = vadd.xlane.f32.xlu0 %v4996
    %v4998 = vpop.xlane.xlu0 %4997
    %v4999 = vsel %vm3410, %v4977, 0.0
    %5000 = vadd.xlane.f32.xlu0 %v4999
    %v5001 = vpop.xlane.xlu0 %5000
    %v5002 = vrcp.pop %v4980
    %v5003 = vrcp.pop %v4983
    %v5004 = vrcp.pop %v4986
    %v5005 = vrcp.pop %v4989
    %v5006 = vrcp.pop %v4992
    %v5007 = vrcp.pop %v4995
    %v5008 = vrcp.pop %v4998
    %v5009 = vrcp.pop %v5001
    %v5010 = vmul.f32 %v4963, %v5002
    %v5011 = vmul.f32 %v4965, %v5003
    %v5012 = vmul.f32 %v4967, %v5004
    %v5013 = vmul.f32 %v4969, %v5005
    %v5014 = vmul.f32 %v4971, %v5006
    %v5015 = vmul.f32 %v4973, %v5007
    %v5016 = vmul.f32 %v4975, %v5008
    %v5017 = vmul.f32 %v4977, %v5009
    %v5018 = vpack.c.bf16 %v5011, %v5010
    %v5019 = vpack.c.bf16 %v5013, %v5012
    %v5020 = vpack.c.bf16 %v5015, %v5014
    %v5021 = vpack.c.bf16 %v5017, %v5016
    %v5023 = vsel %vm3410, %v5018, 0
    %v5026 = vsel %vm3410, %v5019, 0
    %v5029 = vsel %vm3410, %v5020, 0
    %v5032 = vsel %vm3410, %v5021, 0
    %5034 = vmatpush.bf16.msra.mxu0 0
    %5035 = vmatpush.bf16.msra.mxu0 0
    %5036 = vmatpush.bf16.msra.mxu0 0
    %5037 = vmatpush.bf16.msra.mxu0 0
    %5038 = vmatpush.bf16.msra.mxu0 %v4872
    %5039 = vmatpush.bf16.msra.mxu0 %v4871
    %5040 = vmatpush.bf16.msra.mxu0 %v4870
    %5041 = vmatpush.bf16.msra.mxu0 %v4869
    %5042 = vmatmul.bf16.gmra.mxu0 %v5023
    %v5043 = vpop.f32.mrf.mxu0
    %v5044 = vadd.f32 0.0, %v5043
    %v5045 = vpop.f32.mrf.mxu0
    %v5046 = vadd.f32 0.0, %v5045
    %5047 = vmatmul.bf16.gmra.mxu0 %v5026
    %v5048 = vpop.f32.mrf.mxu0
    %v5049 = vadd.f32 0.0, %v5048
    %v5050 = vpop.f32.mrf.mxu0
    %v5051 = vadd.f32 0.0, %v5050
    %5052 = vmatmul.bf16.gmra.mxu0 %v5029
    %v5053 = vpop.f32.mrf.mxu0
    %v5054 = vadd.f32 0.0, %v5053
    %v5055 = vpop.f32.mrf.mxu0
    %v5056 = vadd.f32 0.0, %v5055
    %5057 = vmatmul.bf16.gmra.mxu0 %v5032
    %v5058 = vpop.f32.mrf.mxu0
    %v5059 = vadd.f32 0.0, %v5058
    %v5060 = vpop.f32.mrf.mxu0
    %v5061 = vadd.f32 0.0, %v5060
    %5062 = vdwg.mxu0
    %v5063 = vpack.c.bf16 %v5044, %v5044
    %v5064 = vpack.c.bf16 %v5046, %v5046
    %v5065 = vpack.c.bf16 %v5049, %v5049
    %v5066 = vpack.c.bf16 %v5051, %v5051
    %v5067 = vpack.c.bf16 %v5054, %v5054
    %v5068 = vpack.c.bf16 %v5056, %v5056
    %v5069 = vpack.c.bf16 %v5059, %v5059
    %v5070 = vpack.c.bf16 %v5061, %v5061
    %5071 = vst.msk [vmem:[#allocation16 + $0x44] sm:$0xf] %vm3605, %v5063
    %5072 = vst.msk [vmem:[#allocation16 + $0x4c] sm:$0xf] %vm3605, %v5064
    %5073 = vst.msk [vmem:[#allocation16 + $0x54] sm:$0xf] %vm3605, %v5065
    %5074 = vst.msk [vmem:[#allocation16 + $0x5c] sm:$0xf] %vm3605, %v5066
    %5075 = vst.msk [vmem:[#allocation16 + $0x64] sm:$0xf] %vm3605, %v5067
    %5076 = vst.msk [vmem:[#allocation16 + $0x6c] sm:$0xf] %vm3605, %v5068
    %5077 = vst.msk [vmem:[#allocation16 + $0x74] sm:$0xf] %vm3605, %v5069
    %5078 = vst.msk [vmem:[#allocation16 + $0x7c] sm:$0xf] %vm3605, %v5070
    %5083 = vrot.lane.b32.xlu0 %v4865, 64
    %v5084 = vpop.permute.xlu0 %5083
    %5085 = vrot.lane.b32.xlu0 %v4866, 64
    %v5086 = vpop.permute.xlu0 %5085
    %5087 = vrot.lane.b32.xlu0 %v4867, 64
    %v5088 = vpop.permute.xlu0 %5087
    %5089 = vrot.lane.b32.xlu0 %v4868, 64
    %v5090 = vpop.permute.xlu0 %5089
    %5095 = vrot.lane.b32.xlu0 %v4873, 64
    %v5096 = vpop.permute.xlu0 %5095
    %5097 = vrot.lane.b32.xlu0 %v4874, 64
    %v5098 = vpop.permute.xlu0 %5097
    %5099 = vrot.lane.b32.xlu0 %v4875, 64
    %v5100 = vpop.permute.xlu0 %5099
    %5101 = vrot.lane.b32.xlu0 %v4876, 64
    %v5102 = vpop.permute.xlu0 %5101
    %v5104 = vsel %vm3410, %v5084, 0
    %v5107 = vsel %vm3410, %v5086, 0
    %v5110 = vsel %vm3410, %v5088, 0
    %v5113 = vsel %vm3410, %v5090, 0
    %v5116 = vsel %vm3410, %v5096, 0
    %v5119 = vsel %vm3410, %v5098, 0
    %v5122 = vsel %vm3410, %v5100, 0
    %v5125 = vsel %vm3410, %v5102, 0
    %5127 = vmatpush.bf16.xpose.msra.mxu0 0
    %5128 = vmatpush.bf16.xpose.msra.mxu0 0
    %5129 = vmatpush.bf16.xpose.msra.mxu0 0
    %5130 = vmatpush.bf16.xpose.msra.mxu0 0
    %5131 = vmatpush.bf16.xpose.msra.mxu0 %v5125
    %5132 = vmatpush.bf16.xpose.msra.mxu0 %v5122
    %5133 = vmatpush.bf16.xpose.msra.mxu0 %v5119
    %5134 = vmatpush.bf16.xpose.msra.mxu0 %v5116
    %5135 = vmatmul.bf16.gmra.mxu0 %v5104
    %v5136 = vpop.f32.mrf.mxu0
    %v5137 = vadd.f32 0.0, %v5136
    %v5138 = vpop.f32.mrf.mxu0
    %v5139 = vadd.f32 0.0, %v5138
    %5140 = vmatmul.bf16.gmra.mxu0 %v5107
    %v5141 = vpop.f32.mrf.mxu0
    %v5142 = vadd.f32 0.0, %v5141
    %v5143 = vpop.f32.mrf.mxu0
    %v5144 = vadd.f32 0.0, %v5143
    %5145 = vmatmul.bf16.gmra.mxu0 %v5110
    %v5146 = vpop.f32.mrf.mxu0
    %v5147 = vadd.f32 0.0, %v5146
    %v5148 = vpop.f32.mrf.mxu0
    %v5149 = vadd.f32 0.0, %v5148
    %5150 = vmatmul.bf16.gmra.mxu0 %v5113
    %v5151 = vpop.f32.mrf.mxu0
    %v5152 = vadd.f32 0.0, %v5151
    %v5153 = vpop.f32.mrf.mxu0
    %v5154 = vadd.f32 0.0, %v5153
    %5155 = vdwg.mxu0
    %v5156 = vsel %vm3410, %v5137, -inf
    %5157 = vmax.xlane.f32.xlu0 %v5156
    %v5158 = vpop.xlane.xlu0 %5157
    %v5159 = vsel %vm3410, %v5139, -inf
    %5160 = vmax.xlane.f32.xlu0 %v5159
    %v5161 = vpop.xlane.xlu0 %5160
    %v5162 = vsel %vm3410, %v5142, -inf
    %5163 = vmax.xlane.f32.xlu0 %v5162
    %v5164 = vpop.xlane.xlu0 %5163
    %v5165 = vsel %vm3410, %v5144, -inf
    %5166 = vmax.xlane.f32.xlu0 %v5165
    %v5167 = vpop.xlane.xlu0 %5166
    %v5168 = vsel %vm3410, %v5147, -inf
    %5169 = vmax.xlane.f32.xlu0 %v5168
    %v5170 = vpop.xlane.xlu0 %5169
    %v5171 = vsel %vm3410, %v5149, -inf
    %5172 = vmax.xlane.f32.xlu0 %v5171
    %v5173 = vpop.xlane.xlu0 %5172
    %v5174 = vsel %vm3410, %v5152, -inf
    %5175 = vmax.xlane.f32.xlu0 %v5174
    %v5176 = vpop.xlane.xlu0 %5175
    %v5177 = vsel %vm3410, %v5154, -inf
    %5178 = vmax.xlane.f32.xlu0 %v5177
    %v5179 = vpop.xlane.xlu0 %5178
    %v5180 = vsub.f32 %v5137, %v5158
    %v5181 = vsub.f32 %v5139, %v5161
    %v5182 = vsub.f32 %v5142, %v5164
    %v5183 = vsub.f32 %v5144, %v5167
    %v5184 = vsub.f32 %v5147, %v5170
    %v5185 = vsub.f32 %v5149, %v5173
    %v5186 = vsub.f32 %v5152, %v5176
    %v5187 = vsub.f32 %v5154, %v5179
    %v5188 = vmul.f32 %v5180, 1.442695
    %v5189 = vpow.pop %v5188
    %v5190 = vmul.f32 %v5181, 1.442695
    %v5191 = vpow.pop %v5190
    %v5192 = vmul.f32 %v5182, 1.442695
    %v5193 = vpow.pop %v5192
    %v5194 = vmul.f32 %v5183, 1.442695
    %v5195 = vpow.pop %v5194
    %v5196 = vmul.f32 %v5184, 1.442695
    %v5197 = vpow.pop %v5196
    %v5198 = vmul.f32 %v5185, 1.442695
    %v5199 = vpow.pop %v5198
    %v5200 = vmul.f32 %v5186, 1.442695
    %v5201 = vpow.pop %v5200
    %v5202 = vmul.f32 %v5187, 1.442695
    %v5203 = vpow.pop %v5202
    %v5204 = vsel %vm3410, %v5189, 0.0
    %5205 = vadd.xlane.f32.xlu0 %v5204
    %v5206 = vpop.xlane.xlu0 %5205
    %v5207 = vsel %vm3410, %v5191, 0.0
    %5208 = vadd.xlane.f32.xlu0 %v5207
    %v5209 = vpop.xlane.xlu0 %5208
    %v5210 = vsel %vm3410, %v5193, 0.0
    %5211 = vadd.xlane.f32.xlu0 %v5210
    %v5212 = vpop.xlane.xlu0 %5211
    %v5213 = vsel %vm3410, %v5195, 0.0
    %5214 = vadd.xlane.f32.xlu0 %v5213
    %v5215 = vpop.xlane.xlu0 %5214
    %v5216 = vsel %vm3410, %v5197, 0.0
    %5217 = vadd.xlane.f32.xlu0 %v5216
    %v5218 = vpop.xlane.xlu0 %5217
    %v5219 = vsel %vm3410, %v5199, 0.0
    %5220 = vadd.xlane.f32.xlu0 %v5219
    %v5221 = vpop.xlane.xlu0 %5220
    %v5222 = vsel %vm3410, %v5201, 0.0
    %5223 = vadd.xlane.f32.xlu0 %v5222
    %v5224 = vpop.xlane.xlu0 %5223
    %v5225 = vsel %vm3410, %v5203, 0.0
    %5226 = vadd.xlane.f32.xlu0 %v5225
    %v5227 = vpop.xlane.xlu0 %5226
    %v5228 = vrcp.pop %v5206
    %v5229 = vrcp.pop %v5209
    %v5230 = vrcp.pop %v5212
    %v5231 = vrcp.pop %v5215
    %v5232 = vrcp.pop %v5218
    %v5233 = vrcp.pop %v5221
    %v5234 = vrcp.pop %v5224
    %v5235 = vrcp.pop %v5227
    %v5236 = vmul.f32 %v5189, %v5228
    %v5237 = vmul.f32 %v5191, %v5229
    %v5238 = vmul.f32 %v5193, %v5230
    %v5239 = vmul.f32 %v5195, %v5231
    %v5240 = vmul.f32 %v5197, %v5232
    %v5241 = vmul.f32 %v5199, %v5233
    %v5242 = vmul.f32 %v5201, %v5234
    %v5243 = vmul.f32 %v5203, %v5235
    %v5244 = vpack.c.bf16 %v5237, %v5236
    %v5245 = vpack.c.bf16 %v5239, %v5238
    %v5246 = vpack.c.bf16 %v5241, %v5240
    %v5247 = vpack.c.bf16 %v5243, %v5242
    %5252 = vrot.lane.b32.xlu0 %v4869, 64
    %v5253 = vpop.permute.xlu0 %5252
    %5254 = vrot.lane.b32.xlu0 %v4870, 64
    %v5255 = vpop.permute.xlu0 %5254
    %5256 = vrot.lane.b32.xlu0 %v4871, 64
    %v5257 = vpop.permute.xlu0 %5256
    %5258 = vrot.lane.b32.xlu0 %v4872, 64
    %v5259 = vpop.permute.xlu0 %5258
    %v5265 = vsel %vm3410, %v5244, 0
    %v5268 = vsel %vm3410, %v5245, 0
    %v5271 = vsel %vm3410, %v5246, 0
    %v5274 = vsel %vm3410, %v5247, 0
    %5276 = vmatpush.bf16.msra.mxu0 0
    %5277 = vmatpush.bf16.msra.mxu0 0
    %5278 = vmatpush.bf16.msra.mxu0 0
    %5279 = vmatpush.bf16.msra.mxu0 0
    %5280 = vmatpush.bf16.msra.mxu0 %v5259
    %5281 = vmatpush.bf16.msra.mxu0 %v5257
    %5282 = vmatpush.bf16.msra.mxu0 %v5255
    %5283 = vmatpush.bf16.msra.mxu0 %v5253
    %5284 = vmatmul.bf16.gmra.mxu0 %v5265
    %v5285 = vpop.f32.mrf.mxu0
    %v5286 = vadd.f32 0.0, %v5285
    %v5287 = vpop.f32.mrf.mxu0
    %v5288 = vadd.f32 0.0, %v5287
    %5289 = vmatmul.bf16.gmra.mxu0 %v5268
    %v5290 = vpop.f32.mrf.mxu0
    %v5291 = vadd.f32 0.0, %v5290
    %v5292 = vpop.f32.mrf.mxu0
    %v5293 = vadd.f32 0.0, %v5292
    %5294 = vmatmul.bf16.gmra.mxu0 %v5271
    %v5295 = vpop.f32.mrf.mxu0
    %v5296 = vadd.f32 0.0, %v5295
    %v5297 = vpop.f32.mrf.mxu0
    %v5298 = vadd.f32 0.0, %v5297
    %5299 = vmatmul.bf16.gmra.mxu0 %v5274
    %v5300 = vpop.f32.mrf.mxu0
    %v5301 = vadd.f32 0.0, %v5300
    %v5302 = vpop.f32.mrf.mxu0
    %v5303 = vadd.f32 0.0, %v5302
    %5304 = vdwg.mxu0
    %v5305 = vpack.c.bf16 %v5286, %v5286
    %v5306 = vpack.c.bf16 %v5288, %v5288
    %v5307 = vpack.c.bf16 %v5291, %v5291
    %v5308 = vpack.c.bf16 %v5293, %v5293
    %v5309 = vpack.c.bf16 %v5296, %v5296
    %v5310 = vpack.c.bf16 %v5298, %v5298
    %v5311 = vpack.c.bf16 %v5301, %v5301
    %v5312 = vpack.c.bf16 %v5303, %v5303
    %5321 = vrot.lane.b32.xlu0 %v5305, 64
    %v5322 = vpop.permute.xlu0 %5321
    %5323 = vrot.lane.b32.xlu0 %v5306, 64
    %v5324 = vpop.permute.xlu0 %5323
    %5325 = vrot.lane.b32.xlu0 %v5307, 64
    %v5326 = vpop.permute.xlu0 %5325
    %5327 = vrot.lane.b32.xlu0 %v5308, 64
    %v5328 = vpop.permute.xlu0 %5327
    %5329 = vrot.lane.b32.xlu0 %v5309, 64
    %v5330 = vpop.permute.xlu0 %5329
    %5331 = vrot.lane.b32.xlu0 %v5310, 64
    %v5332 = vpop.permute.xlu0 %5331
    %5333 = vrot.lane.b32.xlu0 %v5311, 64
    %v5334 = vpop.permute.xlu0 %5333
    %5335 = vrot.lane.b32.xlu0 %v5312, 64
    %v5336 = vpop.permute.xlu0 %5335
    %5345 = vst.msk [vmem:[#allocation16 + $0x44] sm:$0xf] %vm3880, %v5322
    %5346 = vst.msk [vmem:[#allocation16 + $0x4c] sm:$0xf] %vm3880, %v5324
    %5347 = vst.msk [vmem:[#allocation16 + $0x54] sm:$0xf] %vm3880, %v5326
    %5348 = vst.msk [vmem:[#allocation16 + $0x5c] sm:$0xf] %vm3880, %v5328
    %5349 = vst.msk [vmem:[#allocation16 + $0x64] sm:$0xf] %vm3880, %v5330
    %5350 = vst.msk [vmem:[#allocation16 + $0x6c] sm:$0xf] %vm3880, %v5332
    %5351 = vst.msk [vmem:[#allocation16 + $0x74] sm:$0xf] %vm3880, %v5334
    %5352 = vst.msk [vmem:[#allocation16 + $0x7c] sm:$0xf] %vm3880, %v5336
    // Predicated region
    $region78: #{tpu_custom_call.1} parent=1 // pred_check
      _
    $region79: #{tpu_custom_call.1} parent=1 // pred_check_branch
      %5354 = sbr.rel (0) target = $region81
    $region80: #{tpu_custom_call.1} parent=1 // pred_region
      %5356 = vsyncadd [#allocation4], 0
      %s5357 = sshll.u32 [#allocation16], 4
      %s5358 = int_to_ptr.vmem [resolvable:$true] %s5357
      %s5359 = sshll.u32 %s11, 4
      %s5360 = int_to_ptr.hbm [resolvable:$true] %s5359
      %5365 = dma.vmem_to_hbm [thread:$0]  %s5358, 2048, %s5360, [#allocation4], 128, 128, 8
    $region81: #{tpu_custom_call.1} parent=1 // pred_fallthru
      _
    // Predicated region
    $region82: #{tpu_custom_call.1} parent=1 // pred_check
      _
    $region83: #{tpu_custom_call.1} parent=1 // pred_check_branch
      %5367 = sbr.rel (0) target = $region85
    $region84: #{tpu_custom_call.1} parent=1 // pred_region
      %5369 = dma.done [#allocation4], 2048
    $region85: #{tpu_custom_call.1} parent=1 // pred_fallthru
      _
    %5370 = vsyncpa [#allocation3], 1
    %5371 = vsyncpa [#allocation6], 1
    %5372 = vsyncpa [#allocation9], 1
    %5373 = vsyncpa [#allocation12], 1
    %5374 = vsyncpa [#allocation15], 1
    %5375 = vsyncpa [#allocation4], 1

</llo_original>
